<compile_context>
chip_gen: v7x
topology: tpu7x:2x2x1
jax: 0.10.0
libtpu: 0.0.40
codegen_flags: <defaults>
</compile_context>

<pallas_src>
import functools

import jax
import jax.numpy as jnp
from jax.experimental import pallas as pl
from jax.experimental.pallas import tpu as pltpu


def _round_up(x, m):
    return (x + m - 1) // m * m


def gru_lm_kernel(x_ref, w_ih_ref, w_hh_ref, b_gates_ref, b_hn_ref, w_head_ref,
                  out_ref, h_state, gi_ref, h_acc, *, chunk_len, hidden):
    """One (batch block, time chunk) grid step.

    x_ref:       (bB, tT, D)    embeddings for this chunk (batch-first)
    w_ih_ref:    (D, 3H)        fused input->gate weights, gate order [r, z, n]
    w_hh_ref:    (H, 3H)        fused hidden->gate weights
    b_gates_ref: (1, 3H)        [b_ir+b_hr, b_iz+b_hz, b_in]
    b_hn_ref:    (1, H)         b_hn (stays inside the r*(...) term)
    w_head_ref:  (H, V)         LM head
    out_ref:     (bB, tT, V)    logits block (batch-first, lane-dense)
    h_state:     (bB, H)        recurrent hidden state, persists across time chunks
    gi_ref:      (bB, tT, 3H)   precomputed input-side gate pre-activations
    h_acc:       (bB, tT, H)    per-chunk hidden states for the batched LM head
    """
    bB, tT, d_in = x_ref.shape

    @pl.when(pl.program_id(1) == 0)
    def _():
        h_state[...] = jnp.zeros_like(h_state)

    # (1) Hoisted input-side gate matmul: one big MXU op for the whole chunk.
    x_flat = x_ref[...].reshape(bB * tT, d_in)
    gi = jnp.dot(x_flat, w_ih_ref[...], preferred_element_type=jnp.float32)
    gi = gi + b_gates_ref[...]
    gi_ref[...] = gi.reshape(bB, tT, 3 * hidden)

    # Hoist the hidden-bias broadcast out of the serial loop.
    b_hn = jnp.broadcast_to(b_hn_ref[...], (bB, hidden))

    # (2) Serial recurrence: ONE fused (bB, H) @ (H, 3H) matmul per step.
    #     chunk_len is static -> fully unrolled, all indices static.
    mm_dtype = w_hh_ref.dtype
    h = h_state[...]
    for t in range(chunk_len):
        gi_t = gi_ref[:, t, :]                                      # (bB, 3H)
        gh = jnp.dot(h.astype(mm_dtype), w_hh_ref[...],
                     preferred_element_type=jnp.float32)            # (bB, 3H)
        r = jax.nn.sigmoid(gi_t[:, 0:hidden] + gh[:, 0:hidden])
        z = jax.nn.sigmoid(gi_t[:, hidden:2 * hidden] + gh[:, hidden:2 * hidden])
        n = jnp.tanh(gi_t[:, 2 * hidden:] + r * (gh[:, 2 * hidden:] + b_hn))
        h = (1.0 - z) * n + z * h
        h_acc[:, t, :] = h
    h_state[...] = h

    # (3) Batched LM head for the whole chunk: one big MXU op + dense store.
    hs = h_acc[...].reshape(bB * tT, hidden).astype(w_head_ref.dtype)
    logits = jnp.dot(hs, w_head_ref[...], preferred_element_type=jnp.float32)
    out_ref[...] = logits.reshape(bB, tT, -1).astype(out_ref.dtype)


def tiny_rnn_lm_forward(input_ids, params, *, time_chunk=8, block_b=None,
                        compute_dtype=jnp.float32):
    """input_ids: (B, T) int32 -> logits (B, T, V) float32 (matches TinyRNNLM.forward)."""
    emb = params["embed"]        # (V, D)
    w_ih = params["w_ih"]        # (3H, D)  torch weight_ih_l0 layout, gates [r, z, n]
    w_hh = params["w_hh"]        # (3H, H)  torch weight_hh_l0
    b_ih = params["b_ih"]        # (3H,)
    b_hh = params["b_hh"]        # (3H,)
    w_head = params["w_head"]    # (V, H)   torch nn.Linear weight layout

    B, T = input_ids.shape
    V, D = emb.shape
    H = w_hh.shape[1]

    assert time_chunk % 8 == 0, "time_chunk must be a multiple of 8 (sublane tiling)"
    B_pad = max(8, _round_up(B, 8))
    T_pad = _round_up(T, time_chunk)
    D_pad = _round_up(D, 128)
    H_pad = _round_up(H, 128)
    V_pad = _round_up(V, 128)
    if block_b is None:
        block_b = min(B_pad, 128)          # whole (small) padded batch per block
    assert block_b % 8 == 0 and B_pad % block_b == 0

    # ---- glue: embedding gather + zero padding (already batch-first, no transposes) ----
    x = jnp.take(emb, input_ids, axis=0).astype(compute_dtype)           # (B, T, D)
    x = jnp.pad(x, ((0, B_pad - B), (0, T_pad - T), (0, D_pad - D)))

    # ---- fuse / transpose / pad weights into MXU-friendly layouts ----
    def fuse_gates(w, in_dim, in_pad):       # (3H, in_dim) -> (in_pad, 3*H_pad)
        gates = [w[g * H:(g + 1) * H, :].T for g in range(3)]            # (in_dim, H)
        gates = [jnp.pad(g, ((0, in_pad - in_dim), (0, H_pad - H))) for g in gates]
        return jnp.concatenate(gates, axis=1).astype(compute_dtype)

    w_ih_f = fuse_gates(w_ih, D, D_pad)                                  # (D_pad, 3H_pad)
    w_hh_f = fuse_gates(w_hh, H, H_pad)                                  # (H_pad, 3H_pad)

    def pad_bias(b):
        return jnp.pad(b, (0, H_pad - H))

    b_gates = jnp.concatenate([pad_bias(b_ih[0:H] + b_hh[0:H]),
                               pad_bias(b_ih[H:2 * H] + b_hh[H:2 * H]),
                               pad_bias(b_ih[2 * H:])], axis=0)
    b_gates = b_gates.reshape(1, 3 * H_pad).astype(jnp.float32)
    b_hn = pad_bias(b_hh[2 * H:]).reshape(1, H_pad).astype(jnp.float32)

    w_head_f = jnp.pad(w_head.T, ((0, H_pad - H), (0, V_pad - V))).astype(compute_dtype)

    grid = (B_pad // block_b, T_pad // time_chunk)
    kernel = functools.partial(gru_lm_kernel, chunk_len=time_chunk, hidden=H_pad)

    logits_p = pl.pallas_call(
        kernel,
        out_shape=jax.ShapeDtypeStruct((B_pad, T_pad, V_pad), jnp.float32),
        grid=grid,
        in_specs=[
            pl.BlockSpec((block_b, time_chunk, D_pad), lambda b, t: (b, t, 0)),
            pl.BlockSpec((D_pad, 3 * H_pad), lambda b, t: (0, 0)),
            pl.BlockSpec((H_pad, 3 * H_pad), lambda b, t: (0, 0)),
            pl.BlockSpec((1, 3 * H_pad), lambda b, t: (0, 0)),
            pl.BlockSpec((1, H_pad), lambda b, t: (0, 0)),
            pl.BlockSpec((H_pad, V_pad), lambda b, t: (0, 0)),
        ],
        out_specs=pl.BlockSpec((block_b, time_chunk, V_pad), lambda b, t: (b, t, 0)),
        scratch_shapes=[
            pltpu.VMEM((block_b, H_pad), jnp.float32),                  # h_state
            pltpu.VMEM((block_b, time_chunk, 3 * H_pad), jnp.float32),  # gi
            pltpu.VMEM((block_b, time_chunk, H_pad), jnp.float32),      # h_acc
        ],
        compiler_params=pltpu.CompilerParams(
            dimension_semantics=("parallel", "arbitrary")),
    )(x, w_ih_f, w_hh_f, b_gates, b_hn, w_head_f)

    return logits_p[:B, :T, :V]


def tiny_rnn_lm_reference(input_ids, params):
    """Pure-JAX reference (torch.nn.GRU semantics) for validation."""
    emb, w_ih, w_hh = params["embed"], params["w_ih"], params["w_hh"]
    b_ih, b_hh, w_head = params["b_ih"], params["b_hh"], params["w_head"]
    H = w_hh.shape[1]
    x = jnp.take(emb, input_ids, axis=0)                  # (B, T, D)
    B = x.shape[0]

    def step(h, x_t):
        gi = x_t @ w_ih.T + b_ih                          # (B, 3H)
        gh = h @ w_hh.T + b_hh                            # (B, 3H)
        r = jax.nn.sigmoid(gi[:, :H] + gh[:, :H])
        z = jax.nn.sigmoid(gi[:, H:2 * H] + gh[:, H:2 * H])
        n = jnp.tanh(gi[:, 2 * H:] + r * gh[:, 2 * H:])
        h = (1.0 - z) * n + z * h
        return h, h

    h0 = jnp.zeros((B, H), jnp.float32)
    _, hs = jax.lax.scan(step, h0, jnp.swapaxes(x, 0, 1))  # (T, B, H)
    return jnp.einsum("tbh,vh->btv", hs, w_head)


def init_params(key, vocab_size, d_model, d_hidden):
    """Deterministic init mirroring the nn.Module's parameter shapes (torch layouts)."""
    k_emb, k_wih, k_whh, k_bih, k_bhh, k_head = jax.random.split(key, 6)
    bound = 1.0 / jnp.sqrt(jnp.float32(d_hidden))
    u = lambda k, shape: jax.random.uniform(k, shape, jnp.float32, -bound, bound)
    return {
        "embed": jax.random.normal(k_emb, (vocab_size, d_model), jnp.float32),
        "w_ih": u(k_wih, (3 * d_hidden, d_model)),
        "w_hh": u(k_whh, (3 * d_hidden, d_hidden)),
        "b_ih": u(k_bih, (3 * d_hidden,)),
        "b_hh": u(k_bhh, (3 * d_hidden,)),
        "w_head": u(k_head, (vocab_size, d_hidden)),
    }


if __name__ == "__main__":
    # Small shapes consistent with the module: (B, T) int token ids.
    B, T = 2, 16
    VOCAB, D_MODEL, D_HIDDEN = 128, 32, 32

    key = jax.random.PRNGKey(0)
    k_params, k_ids = jax.random.split(key)
    params = init_params(k_params, VOCAB, D_MODEL, D_HIDDEN)
    input_ids = jax.random.randint(k_ids, (B, T), 0, VOCAB, dtype=jnp.int32)

    logits = jax.jit(tiny_rnn_lm_forward)(input_ids, params)
    logits = jax.block_until_ready(logits)

    assert logits.shape == (B, T, VOCAB), logits.shape
    assert logits.dtype == jnp.float32

    # Validate against a pure-JAX reference (both sides full-f32 math).
    with jax.default_matmul_precision("highest"):
        ref = jax.jit(tiny_rnn_lm_reference)(input_ids, params)
    ref = jax.block_until_ready(ref)
    err = float(jnp.max(jnp.abs(logits - ref)))
    assert err < 2e-2, f"max abs error vs reference: {err}"

    print("KERNEL_OK")
</pallas_src>

<mosaic_0001>
module attributes {stable_mosaic.version = 11 : i64} {
  func.func @gru_lm_kernel(%arg0: i32, %arg1: i32, %arg2: memref<8x8x128xf32, #tpu.memory_space<vmem>>, %arg3: memref<128x384xf32, #tpu.memory_space<vmem>>, %arg4: memref<128x384xf32, #tpu.memory_space<vmem>>, %arg5: memref<1x384xf32, #tpu.memory_space<vmem>>, %arg6: memref<1x128xf32, #tpu.memory_space<vmem>>, %arg7: memref<128x128xf32, #tpu.memory_space<vmem>>, %arg8: memref<8x8x128xf32, #tpu.memory_space<vmem>>, %arg9: memref<8x128xf32, #tpu.memory_space<vmem>>, %arg10: memref<8x8x384xf32, #tpu.memory_space<vmem>>, %arg11: memref<8x8x128xf32, #tpu.memory_space<vmem>>) attributes {dimension_semantics = [#tpu.dimension_semantics<parallel>, #tpu.dimension_semantics<arbitrary>], iteration_bounds = array<i64: 1, 2>, scalar_prefetch = 0 : i64, scratch_operands = 3 : i64, tpu.core_type = #tpu.core_type<tc>, window_params = [{transform_indices = @transform_0, window_bounds = array<i64: 8, 8, 128>}, {pipeline_mode = #tpu.pipeline_mode<synchronous>, transform_indices = @transform_1, window_bounds = array<i64: 128, 384>}, {pipeline_mode = #tpu.pipeline_mode<synchronous>, transform_indices = @transform_2, window_bounds = array<i64: 128, 384>}, {pipeline_mode = #tpu.pipeline_mode<synchronous>, transform_indices = @transform_3, window_bounds = array<i64: 1, 384>}, {pipeline_mode = #tpu.pipeline_mode<synchronous>, transform_indices = @transform_4, window_bounds = array<i64: 1, 128>}, {pipeline_mode = #tpu.pipeline_mode<synchronous>, transform_indices = @transform_5, window_bounds = array<i64: 128, 128>}, {transform_indices = @transform_6, window_bounds = array<i64: 8, 8, 128>}]} {
    %c0_i32 = arith.constant 0 : i32
    %0 = arith.cmpi eq, %arg1, %c0_i32 : i32
    %1 = arith.extui %0 : i1 to i32
    %c0_i32_0 = arith.constant 0 : i32
    %2 = arith.cmpi ne, %1, %c0_i32_0 : i32
    scf.if %2 {
      %cst_114 = arith.constant 0.000000e+00 : f32
      %295 = vector.broadcast %cst_114 : f32 to vector<8x128xf32>
      %c0_115 = arith.constant 0 : index
      %c0_116 = arith.constant 0 : index
      %296 = vector.load %arg9[%c0_115, %c0_116] : memref<8x128xf32, #tpu.memory_space<vmem>>, vector<8x128xf32>
      tpu.vector_store %arg9[%c0_115, %c0_116], %295 {strides = array<i32>} : memref<8x128xf32, #tpu.memory_space<vmem>>, vector<8x128xf32>,
    } else {
    }
    %c0 = arith.constant 0 : index
    %c0_1 = arith.constant 0 : index
    %c0_2 = arith.constant 0 : index
    %3 = vector.load %arg2[%c0, %c0_1, %c0_2] : memref<8x8x128xf32, #tpu.memory_space<vmem>>, vector<8x8x128xf32>
    %4 = vector.shape_cast %3 : vector<8x8x128xf32> to vector<64x128xf32>
    %c0_3 = arith.constant 0 : index
    %c0_4 = arith.constant 0 : index
    %5 = vector.load %arg3[%c0_3, %c0_4] : memref<128x384xf32, #tpu.memory_space<vmem>>, vector<128x384xf32>
    %cst = arith.constant dense<0.000000e+00> : vector<64x384xf32>
    %6 = tpu.matmul %4, %5, %cst {dimension_numbers = #tpu.dot_dimension_numbers<[1], [0], [0], [1], [0, 0, 1, 1], [], []>} : vector<64x128xf32>, vector<128x384xf32>, vector<64x384xf32> -> vector<64x384xf32>
    %c0_5 = arith.constant 0 : index
    %c0_6 = arith.constant 0 : index
    %7 = vector.load %arg5[%c0_5, %c0_6] : memref<1x384xf32, #tpu.memory_space<vmem>>, vector<1x384xf32>
    %8 = vector.broadcast %7 : vector<1x384xf32> to vector<64x384xf32>
    %9 = arith.addf %6, %8 : vector<64x384xf32>
    %10 = vector.shape_cast %9 : vector<64x384xf32> to vector<8x8x384xf32>
    %c0_7 = arith.constant 0 : index
    %c0_8 = arith.constant 0 : index
    %c0_9 = arith.constant 0 : index
    %11 = vector.load %arg10[%c0_7, %c0_8, %c0_9] : memref<8x8x384xf32, #tpu.memory_space<vmem>>, vector<8x8x384xf32>
    tpu.vector_store %arg10[%c0_7, %c0_8, %c0_9], %10 {strides = array<i32>} : memref<8x8x384xf32, #tpu.memory_space<vmem>>, vector<8x8x384xf32>,
    %c0_10 = arith.constant 0 : index
    %c0_11 = arith.constant 0 : index
    %12 = vector.load %arg6[%c0_10, %c0_11] : memref<1x128xf32, #tpu.memory_space<vmem>>, vector<1x128xf32>
    %13 = vector.shape_cast %12 : vector<1x128xf32> to vector<1x128xf32>
    %14 = vector.broadcast %13 : vector<1x128xf32> to vector<8x128xf32>
    %c0_12 = arith.constant 0 : index
    %c0_13 = arith.constant 0 : index
    %15 = vector.load %arg9[%c0_12, %c0_13] : memref<8x128xf32, #tpu.memory_space<vmem>>, vector<8x128xf32>
    %c0_14 = arith.constant 0 : index
    %c0_15 = arith.constant 0 : index
    %c0_16 = arith.constant 0 : index
    %16 = vector.load %arg10[%c0_14, %c0_15, %c0_16] : memref<8x8x384xf32, #tpu.memory_space<vmem>>, vector<8x1x384xf32>
    %17 = vector.shape_cast %16 : vector<8x1x384xf32> to vector<8x384xf32>
    %c0_17 = arith.constant 0 : index
    %c0_18 = arith.constant 0 : index
    %18 = vector.load %arg4[%c0_17, %c0_18] : memref<128x384xf32, #tpu.memory_space<vmem>>, vector<128x384xf32>
    %cst_19 = arith.constant dense<0.000000e+00> : vector<8x384xf32>
    %19 = tpu.matmul %15, %18, %cst_19 {dimension_numbers = #tpu.dot_dimension_numbers<[1], [0], [0], [1], [0, 0, 1, 1], [], []>} : vector<8x128xf32>, vector<128x384xf32>, vector<8x384xf32> -> vector<8x384xf32>
    %20 = vector.extract_strided_slice %17 {offsets = [0, 0], sizes = [8, 128], strides = [1, 1]} : vector<8x384xf32> to vector<8x128xf32>
    %21 = vector.extract_strided_slice %19 {offsets = [0, 0], sizes = [8, 128], strides = [1, 1]} : vector<8x384xf32> to vector<8x128xf32>
    %22 = arith.addf %20, %21 : vector<8x128xf32>
    %23 = arith.negf %22 : vector<8x128xf32>
    %24 = math.exp %23 : vector<8x128xf32>
    %cst_20 = arith.constant 1.000000e+00 : f32
    %25 = vector.broadcast %cst_20 : f32 to vector<8x128xf32>
    %26 = arith.addf %25, %24 : vector<8x128xf32>
    %27 = arith.divf %25, %26 : vector<8x128xf32>
    %28 = vector.extract_strided_slice %17 {offsets = [0, 128], sizes = [8, 128], strides = [1, 1]} : vector<8x384xf32> to vector<8x128xf32>
    %29 = vector.extract_strided_slice %19 {offsets = [0, 128], sizes = [8, 128], strides = [1, 1]} : vector<8x384xf32> to vector<8x128xf32>
    %30 = arith.addf %28, %29 : vector<8x128xf32>
    %31 = arith.negf %30 : vector<8x128xf32>
    %32 = math.exp %31 : vector<8x128xf32>
    %cst_21 = arith.constant 1.000000e+00 : f32
    %33 = vector.broadcast %cst_21 : f32 to vector<8x128xf32>
    %34 = arith.addf %33, %32 : vector<8x128xf32>
    %35 = arith.divf %33, %34 : vector<8x128xf32>
    %36 = vector.extract_strided_slice %17 {offsets = [0, 256], sizes = [8, 128], strides = [1, 1]} : vector<8x384xf32> to vector<8x128xf32>
    %37 = vector.extract_strided_slice %19 {offsets = [0, 256], sizes = [8, 128], strides = [1, 1]} : vector<8x384xf32> to vector<8x128xf32>
    %38 = arith.addf %37, %14 : vector<8x128xf32>
    %39 = arith.mulf %27, %38 : vector<8x128xf32>
    %40 = arith.addf %36, %39 : vector<8x128xf32>
    %41 = math.tanh %40 : vector<8x128xf32>
    %cst_22 = arith.constant 1.000000e+00 : f32
    %42 = vector.broadcast %cst_22 : f32 to vector<8x128xf32>
    %43 = arith.subf %42, %35 : vector<8x128xf32>
    %44 = arith.mulf %43, %41 : vector<8x128xf32>
    %45 = arith.mulf %35, %15 : vector<8x128xf32>
    %46 = arith.addf %44, %45 : vector<8x128xf32>
    %c0_23 = arith.constant 0 : index
    %c0_24 = arith.constant 0 : index
    %c0_25 = arith.constant 0 : index
    %47 = vector.load %arg11[%c0_23, %c0_24, %c0_25] : memref<8x8x128xf32, #tpu.memory_space<vmem>>, vector<8x1x128xf32>
    %48 = vector.shape_cast %47 : vector<8x1x128xf32> to vector<8x128xf32>
    %49 = vector.shape_cast %46 : vector<8x128xf32> to vector<8x1x128xf32>
    tpu.vector_store %arg11[%c0_23, %c0_24, %c0_25], %49 {strides = array<i32>} : memref<8x8x128xf32, #tpu.memory_space<vmem>>, vector<8x1x128xf32>,
    %c0_26 = arith.constant 0 : index
    %c1 = arith.constant 1 : index
    %c0_27 = arith.constant 0 : index
    %50 = vector.load %arg10[%c0_26, %c1, %c0_27] : memref<8x8x384xf32, #tpu.memory_space<vmem>>, vector<8x1x384xf32>
    %51 = vector.shape_cast %50 : vector<8x1x384xf32> to vector<8x384xf32>
    %c0_28 = arith.constant 0 : index
    %c0_29 = arith.constant 0 : index
    %52 = vector.load %arg4[%c0_28, %c0_29] : memref<128x384xf32, #tpu.memory_space<vmem>>, vector<128x384xf32>
    %cst_30 = arith.constant dense<0.000000e+00> : vector<8x384xf32>
    %53 = tpu.matmul %46, %52, %cst_30 {dimension_numbers = #tpu.dot_dimension_numbers<[1], [0], [0], [1], [0, 0, 1, 1], [], []>} : vector<8x128xf32>, vector<128x384xf32>, vector<8x384xf32> -> vector<8x384xf32>
    %54 = vector.extract_strided_slice %51 {offsets = [0, 0], sizes = [8, 128], strides = [1, 1]} : vector<8x384xf32> to vector<8x128xf32>
    %55 = vector.extract_strided_slice %53 {offsets = [0, 0], sizes = [8, 128], strides = [1, 1]} : vector<8x384xf32> to vector<8x128xf32>
    %56 = arith.addf %54, %55 : vector<8x128xf32>
    %57 = arith.negf %56 : vector<8x128xf32>
    %58 = math.exp %57 : vector<8x128xf32>
    %cst_31 = arith.constant 1.000000e+00 : f32
    %59 = vector.broadcast %cst_31 : f32 to vector<8x128xf32>
    %60 = arith.addf %59, %58 : vector<8x128xf32>
    %61 = arith.divf %59, %60 : vector<8x128xf32>
    %62 = vector.extract_strided_slice %51 {offsets = [0, 128], sizes = [8, 128], strides = [1, 1]} : vector<8x384xf32> to vector<8x128xf32>
    %63 = vector.extract_strided_slice %53 {offsets = [0, 128], sizes = [8, 128], strides = [1, 1]} : vector<8x384xf32> to vector<8x128xf32>
    %64 = arith.addf %62, %63 : vector<8x128xf32>
    %65 = arith.negf %64 : vector<8x128xf32>
    %66 = math.exp %65 : vector<8x128xf32>
    %cst_32 = arith.constant 1.000000e+00 : f32
    %67 = vector.broadcast %cst_32 : f32 to vector<8x128xf32>
    %68 = arith.addf %67, %66 : vector<8x128xf32>
    %69 = arith.divf %67, %68 : vector<8x128xf32>
    %70 = vector.extract_strided_slice %51 {offsets = [0, 256], sizes = [8, 128], strides = [1, 1]} : vector<8x384xf32> to vector<8x128xf32>
    %71 = vector.extract_strided_slice %53 {offsets = [0, 256], sizes = [8, 128], strides = [1, 1]} : vector<8x384xf32> to vector<8x128xf32>
    %72 = arith.addf %71, %14 : vector<8x128xf32>
    %73 = arith.mulf %61, %72 : vector<8x128xf32>
    %74 = arith.addf %70, %73 : vector<8x128xf32>
    %75 = math.tanh %74 : vector<8x128xf32>
    %cst_33 = arith.constant 1.000000e+00 : f32
    %76 = vector.broadcast %cst_33 : f32 to vector<8x128xf32>
    %77 = arith.subf %76, %69 : vector<8x128xf32>
    %78 = arith.mulf %77, %75 : vector<8x128xf32>
    %79 = arith.mulf %69, %46 : vector<8x128xf32>
    %80 = arith.addf %78, %79 : vector<8x128xf32>
    %c0_34 = arith.constant 0 : index
    %c1_35 = arith.constant 1 : index
    %c0_36 = arith.constant 0 : index
    %81 = vector.load %arg11[%c0_34, %c1_35, %c0_36] : memref<8x8x128xf32, #tpu.memory_space<vmem>>, vector<8x1x128xf32>
    %82 = vector.shape_cast %81 : vector<8x1x128xf32> to vector<8x128xf32>
    %83 = vector.shape_cast %80 : vector<8x128xf32> to vector<8x1x128xf32>
    tpu.vector_store %arg11[%c0_34, %c1_35, %c0_36], %83 {strides = array<i32>} : memref<8x8x128xf32, #tpu.memory_space<vmem>>, vector<8x1x128xf32>,
    %c0_37 = arith.constant 0 : index
    %c2 = arith.constant 2 : index
    %c0_38 = arith.constant 0 : index
    %84 = vector.load %arg10[%c0_37, %c2, %c0_38] : memref<8x8x384xf32, #tpu.memory_space<vmem>>, vector<8x1x384xf32>
    %85 = vector.shape_cast %84 : vector<8x1x384xf32> to vector<8x384xf32>
    %c0_39 = arith.constant 0 : index
    %c0_40 = arith.constant 0 : index
    %86 = vector.load %arg4[%c0_39, %c0_40] : memref<128x384xf32, #tpu.memory_space<vmem>>, vector<128x384xf32>
    %cst_41 = arith.constant dense<0.000000e+00> : vector<8x384xf32>
    %87 = tpu.matmul %80, %86, %cst_41 {dimension_numbers = #tpu.dot_dimension_numbers<[1], [0], [0], [1], [0, 0, 1, 1], [], []>} : vector<8x128xf32>, vector<128x384xf32>, vector<8x384xf32> -> vector<8x384xf32>
    %88 = vector.extract_strided_slice %85 {offsets = [0, 0], sizes = [8, 128], strides = [1, 1]} : vector<8x384xf32> to vector<8x128xf32>
    %89 = vector.extract_strided_slice %87 {offsets = [0, 0], sizes = [8, 128], strides = [1, 1]} : vector<8x384xf32> to vector<8x128xf32>
    %90 = arith.addf %88, %89 : vector<8x128xf32>
    %91 = arith.negf %90 : vector<8x128xf32>
    %92 = math.exp %91 : vector<8x128xf32>
    %cst_42 = arith.constant 1.000000e+00 : f32
    %93 = vector.broadcast %cst_42 : f32 to vector<8x128xf32>
    %94 = arith.addf %93, %92 : vector<8x128xf32>
    %95 = arith.divf %93, %94 : vector<8x128xf32>
    %96 = vector.extract_strided_slice %85 {offsets = [0, 128], sizes = [8, 128], strides = [1, 1]} : vector<8x384xf32> to vector<8x128xf32>
    %97 = vector.extract_strided_slice %87 {offsets = [0, 128], sizes = [8, 128], strides = [1, 1]} : vector<8x384xf32> to vector<8x128xf32>
    %98 = arith.addf %96, %97 : vector<8x128xf32>
    %99 = arith.negf %98 : vector<8x128xf32>
    %100 = math.exp %99 : vector<8x128xf32>
    %cst_43 = arith.constant 1.000000e+00 : f32
    %101 = vector.broadcast %cst_43 : f32 to vector<8x128xf32>
    %102 = arith.addf %101, %100 : vector<8x128xf32>
    %103 = arith.divf %101, %102 : vector<8x128xf32>
    %104 = vector.extract_strided_slice %85 {offsets = [0, 256], sizes = [8, 128], strides = [1, 1]} : vector<8x384xf32> to vector<8x128xf32>
    %105 = vector.extract_strided_slice %87 {offsets = [0, 256], sizes = [8, 128], strides = [1, 1]} : vector<8x384xf32> to vector<8x128xf32>
    %106 = arith.addf %105, %14 : vector<8x128xf32>
    %107 = arith.mulf %95, %106 : vector<8x128xf32>
    %108 = arith.addf %104, %107 : vector<8x128xf32>
    %109 = math.tanh %108 : vector<8x128xf32>
    %cst_44 = arith.constant 1.000000e+00 : f32
    %110 = vector.broadcast %cst_44 : f32 to vector<8x128xf32>
    %111 = arith.subf %110, %103 : vector<8x128xf32>
    %112 = arith.mulf %111, %109 : vector<8x128xf32>
    %113 = arith.mulf %103, %80 : vector<8x128xf32>
    %114 = arith.addf %112, %113 : vector<8x128xf32>
    %c0_45 = arith.constant 0 : index
    %c2_46 = arith.constant 2 : index
    %c0_47 = arith.constant 0 : index
    %115 = vector.load %arg11[%c0_45, %c2_46, %c0_47] : memref<8x8x128xf32, #tpu.memory_space<vmem>>, vector<8x1x128xf32>
    %116 = vector.shape_cast %115 : vector<8x1x128xf32> to vector<8x128xf32>
    %117 = vector.shape_cast %114 : vector<8x128xf32> to vector<8x1x128xf32>
    tpu.vector_store %arg11[%c0_45, %c2_46, %c0_47], %117 {strides = array<i32>} : memref<8x8x128xf32, #tpu.memory_space<vmem>>, vector<8x1x128xf32>,
    %c0_48 = arith.constant 0 : index
    %c3 = arith.constant 3 : index
    %c0_49 = arith.constant 0 : index
    %118 = vector.load %arg10[%c0_48, %c3, %c0_49] : memref<8x8x384xf32, #tpu.memory_space<vmem>>, vector<8x1x384xf32>
    %119 = vector.shape_cast %118 : vector<8x1x384xf32> to vector<8x384xf32>
    %c0_50 = arith.constant 0 : index
    %c0_51 = arith.constant 0 : index
    %120 = vector.load %arg4[%c0_50, %c0_51] : memref<128x384xf32, #tpu.memory_space<vmem>>, vector<128x384xf32>
    %cst_52 = arith.constant dense<0.000000e+00> : vector<8x384xf32>
    %121 = tpu.matmul %114, %120, %cst_52 {dimension_numbers = #tpu.dot_dimension_numbers<[1], [0], [0], [1], [0, 0, 1, 1], [], []>} : vector<8x128xf32>, vector<128x384xf32>, vector<8x384xf32> -> vector<8x384xf32>
    %122 = vector.extract_strided_slice %119 {offsets = [0, 0], sizes = [8, 128], strides = [1, 1]} : vector<8x384xf32> to vector<8x128xf32>
    %123 = vector.extract_strided_slice %121 {offsets = [0, 0], sizes = [8, 128], strides = [1, 1]} : vector<8x384xf32> to vector<8x128xf32>
    %124 = arith.addf %122, %123 : vector<8x128xf32>
    %125 = arith.negf %124 : vector<8x128xf32>
    %126 = math.exp %125 : vector<8x128xf32>
    %cst_53 = arith.constant 1.000000e+00 : f32
    %127 = vector.broadcast %cst_53 : f32 to vector<8x128xf32>
    %128 = arith.addf %127, %126 : vector<8x128xf32>
    %129 = arith.divf %127, %128 : vector<8x128xf32>
    %130 = vector.extract_strided_slice %119 {offsets = [0, 128], sizes = [8, 128], strides = [1, 1]} : vector<8x384xf32> to vector<8x128xf32>
    %131 = vector.extract_strided_slice %121 {offsets = [0, 128], sizes = [8, 128], strides = [1, 1]} : vector<8x384xf32> to vector<8x128xf32>
    %132 = arith.addf %130, %131 : vector<8x128xf32>
    %133 = arith.negf %132 : vector<8x128xf32>
    %134 = math.exp %133 : vector<8x128xf32>
    %cst_54 = arith.constant 1.000000e+00 : f32
    %135 = vector.broadcast %cst_54 : f32 to vector<8x128xf32>
    %136 = arith.addf %135, %134 : vector<8x128xf32>
    %137 = arith.divf %135, %136 : vector<8x128xf32>
    %138 = vector.extract_strided_slice %119 {offsets = [0, 256], sizes = [8, 128], strides = [1, 1]} : vector<8x384xf32> to vector<8x128xf32>
    %139 = vector.extract_strided_slice %121 {offsets = [0, 256], sizes = [8, 128], strides = [1, 1]} : vector<8x384xf32> to vector<8x128xf32>
    %140 = arith.addf %139, %14 : vector<8x128xf32>
    %141 = arith.mulf %129, %140 : vector<8x128xf32>
    %142 = arith.addf %138, %141 : vector<8x128xf32>
    %143 = math.tanh %142 : vector<8x128xf32>
    %cst_55 = arith.constant 1.000000e+00 : f32
    %144 = vector.broadcast %cst_55 : f32 to vector<8x128xf32>
    %145 = arith.subf %144, %137 : vector<8x128xf32>
    %146 = arith.mulf %145, %143 : vector<8x128xf32>
    %147 = arith.mulf %137, %114 : vector<8x128xf32>
    %148 = arith.addf %146, %147 : vector<8x128xf32>
    %c0_56 = arith.constant 0 : index
    %c3_57 = arith.constant 3 : index
    %c0_58 = arith.constant 0 : index
    %149 = vector.load %arg11[%c0_56, %c3_57, %c0_58] : memref<8x8x128xf32, #tpu.memory_space<vmem>>, vector<8x1x128xf32>
    %150 = vector.shape_cast %149 : vector<8x1x128xf32> to vector<8x128xf32>
    %151 = vector.shape_cast %148 : vector<8x128xf32> to vector<8x1x128xf32>
    tpu.vector_store %arg11[%c0_56, %c3_57, %c0_58], %151 {strides = array<i32>} : memref<8x8x128xf32, #tpu.memory_space<vmem>>, vector<8x1x128xf32>,
    %c0_59 = arith.constant 0 : index
    %c4 = arith.constant 4 : index
    %c0_60 = arith.constant 0 : index
    %152 = vector.load %arg10[%c0_59, %c4, %c0_60] : memref<8x8x384xf32, #tpu.memory_space<vmem>>, vector<8x1x384xf32>
    %153 = vector.shape_cast %152 : vector<8x1x384xf32> to vector<8x384xf32>
    %c0_61 = arith.constant 0 : index
    %c0_62 = arith.constant 0 : index
    %154 = vector.load %arg4[%c0_61, %c0_62] : memref<128x384xf32, #tpu.memory_space<vmem>>, vector<128x384xf32>
    %cst_63 = arith.constant dense<0.000000e+00> : vector<8x384xf32>
    %155 = tpu.matmul %148, %154, %cst_63 {dimension_numbers = #tpu.dot_dimension_numbers<[1], [0], [0], [1], [0, 0, 1, 1], [], []>} : vector<8x128xf32>, vector<128x384xf32>, vector<8x384xf32> -> vector<8x384xf32>
    %156 = vector.extract_strided_slice %153 {offsets = [0, 0], sizes = [8, 128], strides = [1, 1]} : vector<8x384xf32> to vector<8x128xf32>
    %157 = vector.extract_strided_slice %155 {offsets = [0, 0], sizes = [8, 128], strides = [1, 1]} : vector<8x384xf32> to vector<8x128xf32>
    %158 = arith.addf %156, %157 : vector<8x128xf32>
    %159 = arith.negf %158 : vector<8x128xf32>
    %160 = math.exp %159 : vector<8x128xf32>
    %cst_64 = arith.constant 1.000000e+00 : f32
    %161 = vector.broadcast %cst_64 : f32 to vector<8x128xf32>
    %162 = arith.addf %161, %160 : vector<8x128xf32>
    %163 = arith.divf %161, %162 : vector<8x128xf32>
    %164 = vector.extract_strided_slice %153 {offsets = [0, 128], sizes = [8, 128], strides = [1, 1]} : vector<8x384xf32> to vector<8x128xf32>
    %165 = vector.extract_strided_slice %155 {offsets = [0, 128], sizes = [8, 128], strides = [1, 1]} : vector<8x384xf32> to vector<8x128xf32>
    %166 = arith.addf %164, %165 : vector<8x128xf32>
    %167 = arith.negf %166 : vector<8x128xf32>
    %168 = math.exp %167 : vector<8x128xf32>
    %cst_65 = arith.constant 1.000000e+00 : f32
    %169 = vector.broadcast %cst_65 : f32 to vector<8x128xf32>
    %170 = arith.addf %169, %168 : vector<8x128xf32>
    %171 = arith.divf %169, %170 : vector<8x128xf32>
    %172 = vector.extract_strided_slice %153 {offsets = [0, 256], sizes = [8, 128], strides = [1, 1]} : vector<8x384xf32> to vector<8x128xf32>
    %173 = vector.extract_strided_slice %155 {offsets = [0, 256], sizes = [8, 128], strides = [1, 1]} : vector<8x384xf32> to vector<8x128xf32>
    %174 = arith.addf %173, %14 : vector<8x128xf32>
    %175 = arith.mulf %163, %174 : vector<8x128xf32>
    %176 = arith.addf %172, %175 : vector<8x128xf32>
    %177 = math.tanh %176 : vector<8x128xf32>
    %cst_66 = arith.constant 1.000000e+00 : f32
    %178 = vector.broadcast %cst_66 : f32 to vector<8x128xf32>
    %179 = arith.subf %178, %171 : vector<8x128xf32>
    %180 = arith.mulf %179, %177 : vector<8x128xf32>
    %181 = arith.mulf %171, %148 : vector<8x128xf32>
    %182 = arith.addf %180, %181 : vector<8x128xf32>
    %c0_67 = arith.constant 0 : index
    %c4_68 = arith.constant 4 : index
    %c0_69 = arith.constant 0 : index
    %183 = vector.load %arg11[%c0_67, %c4_68, %c0_69] : memref<8x8x128xf32, #tpu.memory_space<vmem>>, vector<8x1x128xf32>
    %184 = vector.shape_cast %183 : vector<8x1x128xf32> to vector<8x128xf32>
    %185 = vector.shape_cast %182 : vector<8x128xf32> to vector<8x1x128xf32>
    tpu.vector_store %arg11[%c0_67, %c4_68, %c0_69], %185 {strides = array<i32>} : memref<8x8x128xf32, #tpu.memory_space<vmem>>, vector<8x1x128xf32>,
    %c0_70 = arith.constant 0 : index
    %c5 = arith.constant 5 : index
    %c0_71 = arith.constant 0 : index
    %186 = vector.load %arg10[%c0_70, %c5, %c0_71] : memref<8x8x384xf32, #tpu.memory_space<vmem>>, vector<8x1x384xf32>
    %187 = vector.shape_cast %186 : vector<8x1x384xf32> to vector<8x384xf32>
    %c0_72 = arith.constant 0 : index
    %c0_73 = arith.constant 0 : index
    %188 = vector.load %arg4[%c0_72, %c0_73] : memref<128x384xf32, #tpu.memory_space<vmem>>, vector<128x384xf32>
    %cst_74 = arith.constant dense<0.000000e+00> : vector<8x384xf32>
    %189 = tpu.matmul %182, %188, %cst_74 {dimension_numbers = #tpu.dot_dimension_numbers<[1], [0], [0], [1], [0, 0, 1, 1], [], []>} : vector<8x128xf32>, vector<128x384xf32>, vector<8x384xf32> -> vector<8x384xf32>
    %190 = vector.extract_strided_slice %187 {offsets = [0, 0], sizes = [8, 128], strides = [1, 1]} : vector<8x384xf32> to vector<8x128xf32>
    %191 = vector.extract_strided_slice %189 {offsets = [0, 0], sizes = [8, 128], strides = [1, 1]} : vector<8x384xf32> to vector<8x128xf32>
    %192 = arith.addf %190, %191 : vector<8x128xf32>
    %193 = arith.negf %192 : vector<8x128xf32>
    %194 = math.exp %193 : vector<8x128xf32>
    %cst_75 = arith.constant 1.000000e+00 : f32
    %195 = vector.broadcast %cst_75 : f32 to vector<8x128xf32>
    %196 = arith.addf %195, %194 : vector<8x128xf32>
    %197 = arith.divf %195, %196 : vector<8x128xf32>
    %198 = vector.extract_strided_slice %187 {offsets = [0, 128], sizes = [8, 128], strides = [1, 1]} : vector<8x384xf32> to vector<8x128xf32>
    %199 = vector.extract_strided_slice %189 {offsets = [0, 128], sizes = [8, 128], strides = [1, 1]} : vector<8x384xf32> to vector<8x128xf32>
    %200 = arith.addf %198, %199 : vector<8x128xf32>
    %201 = arith.negf %200 : vector<8x128xf32>
    %202 = math.exp %201 : vector<8x128xf32>
    %cst_76 = arith.constant 1.000000e+00 : f32
    %203 = vector.broadcast %cst_76 : f32 to vector<8x128xf32>
    %204 = arith.addf %203, %202 : vector<8x128xf32>
    %205 = arith.divf %203, %204 : vector<8x128xf32>
    %206 = vector.extract_strided_slice %187 {offsets = [0, 256], sizes = [8, 128], strides = [1, 1]} : vector<8x384xf32> to vector<8x128xf32>
    %207 = vector.extract_strided_slice %189 {offsets = [0, 256], sizes = [8, 128], strides = [1, 1]} : vector<8x384xf32> to vector<8x128xf32>
    %208 = arith.addf %207, %14 : vector<8x128xf32>
    %209 = arith.mulf %197, %208 : vector<8x128xf32>
    %210 = arith.addf %206, %209 : vector<8x128xf32>
    %211 = math.tanh %210 : vector<8x128xf32>
    %cst_77 = arith.constant 1.000000e+00 : f32
    %212 = vector.broadcast %cst_77 : f32 to vector<8x128xf32>
    %213 = arith.subf %212, %205 : vector<8x128xf32>
    %214 = arith.mulf %213, %211 : vector<8x128xf32>
    %215 = arith.mulf %205, %182 : vector<8x128xf32>
    %216 = arith.addf %214, %215 : vector<8x128xf32>
    %c0_78 = arith.constant 0 : index
    %c5_79 = arith.constant 5 : index
    %c0_80 = arith.constant 0 : index
    %217 = vector.load %arg11[%c0_78, %c5_79, %c0_80] : memref<8x8x128xf32, #tpu.memory_space<vmem>>, vector<8x1x128xf32>
    %218 = vector.shape_cast %217 : vector<8x1x128xf32> to vector<8x128xf32>
    %219 = vector.shape_cast %216 : vector<8x128xf32> to vector<8x1x128xf32>
    tpu.vector_store %arg11[%c0_78, %c5_79, %c0_80], %219 {strides = array<i32>} : memref<8x8x128xf32, #tpu.memory_space<vmem>>, vector<8x1x128xf32>,
    %c0_81 = arith.constant 0 : index
    %c6 = arith.constant 6 : index
    %c0_82 = arith.constant 0 : index
    %220 = vector.load %arg10[%c0_81, %c6, %c0_82] : memref<8x8x384xf32, #tpu.memory_space<vmem>>, vector<8x1x384xf32>
    %221 = vector.shape_cast %220 : vector<8x1x384xf32> to vector<8x384xf32>
    %c0_83 = arith.constant 0 : index
    %c0_84 = arith.constant 0 : index
    %222 = vector.load %arg4[%c0_83, %c0_84] : memref<128x384xf32, #tpu.memory_space<vmem>>, vector<128x384xf32>
    %cst_85 = arith.constant dense<0.000000e+00> : vector<8x384xf32>
    %223 = tpu.matmul %216, %222, %cst_85 {dimension_numbers = #tpu.dot_dimension_numbers<[1], [0], [0], [1], [0, 0, 1, 1], [], []>} : vector<8x128xf32>, vector<128x384xf32>, vector<8x384xf32> -> vector<8x384xf32>
    %224 = vector.extract_strided_slice %221 {offsets = [0, 0], sizes = [8, 128], strides = [1, 1]} : vector<8x384xf32> to vector<8x128xf32>
    %225 = vector.extract_strided_slice %223 {offsets = [0, 0], sizes = [8, 128], strides = [1, 1]} : vector<8x384xf32> to vector<8x128xf32>
    %226 = arith.addf %224, %225 : vector<8x128xf32>
    %227 = arith.negf %226 : vector<8x128xf32>
    %228 = math.exp %227 : vector<8x128xf32>
    %cst_86 = arith.constant 1.000000e+00 : f32
    %229 = vector.broadcast %cst_86 : f32 to vector<8x128xf32>
    %230 = arith.addf %229, %228 : vector<8x128xf32>
    %231 = arith.divf %229, %230 : vector<8x128xf32>
    %232 = vector.extract_strided_slice %221 {offsets = [0, 128], sizes = [8, 128], strides = [1, 1]} : vector<8x384xf32> to vector<8x128xf32>
    %233 = vector.extract_strided_slice %223 {offsets = [0, 128], sizes = [8, 128], strides = [1, 1]} : vector<8x384xf32> to vector<8x128xf32>
    %234 = arith.addf %232, %233 : vector<8x128xf32>
    %235 = arith.negf %234 : vector<8x128xf32>
    %236 = math.exp %235 : vector<8x128xf32>
    %cst_87 = arith.constant 1.000000e+00 : f32
    %237 = vector.broadcast %cst_87 : f32 to vector<8x128xf32>
    %238 = arith.addf %237, %236 : vector<8x128xf32>
    %239 = arith.divf %237, %238 : vector<8x128xf32>
    %240 = vector.extract_strided_slice %221 {offsets = [0, 256], sizes = [8, 128], strides = [1, 1]} : vector<8x384xf32> to vector<8x128xf32>
    %241 = vector.extract_strided_slice %223 {offsets = [0, 256], sizes = [8, 128], strides = [1, 1]} : vector<8x384xf32> to vector<8x128xf32>
    %242 = arith.addf %241, %14 : vector<8x128xf32>
    %243 = arith.mulf %231, %242 : vector<8x128xf32>
    %244 = arith.addf %240, %243 : vector<8x128xf32>
    %245 = math.tanh %244 : vector<8x128xf32>
    %cst_88 = arith.constant 1.000000e+00 : f32
    %246 = vector.broadcast %cst_88 : f32 to vector<8x128xf32>
    %247 = arith.subf %246, %239 : vector<8x128xf32>
    %248 = arith.mulf %247, %245 : vector<8x128xf32>
    %249 = arith.mulf %239, %216 : vector<8x128xf32>
    %250 = arith.addf %248, %249 : vector<8x128xf32>
    %c0_89 = arith.constant 0 : index
    %c6_90 = arith.constant 6 : index
    %c0_91 = arith.constant 0 : index
    %251 = vector.load %arg11[%c0_89, %c6_90, %c0_91] : memref<8x8x128xf32, #tpu.memory_space<vmem>>, vector<8x1x128xf32>
    %252 = vector.shape_cast %251 : vector<8x1x128xf32> to vector<8x128xf32>
    %253 = vector.shape_cast %250 : vector<8x128xf32> to vector<8x1x128xf32>
    tpu.vector_store %arg11[%c0_89, %c6_90, %c0_91], %253 {strides = array<i32>} : memref<8x8x128xf32, #tpu.memory_space<vmem>>, vector<8x1x128xf32>,
    %c0_92 = arith.constant 0 : index
    %c7 = arith.constant 7 : index
    %c0_93 = arith.constant 0 : index
    %254 = vector.load %arg10[%c0_92, %c7, %c0_93] : memref<8x8x384xf32, #tpu.memory_space<vmem>>, vector<8x1x384xf32>
    %255 = vector.shape_cast %254 : vector<8x1x384xf32> to vector<8x384xf32>
    %c0_94 = arith.constant 0 : index
    %c0_95 = arith.constant 0 : index
    %256 = vector.load %arg4[%c0_94, %c0_95] : memref<128x384xf32, #tpu.memory_space<vmem>>, vector<128x384xf32>
    %cst_96 = arith.constant dense<0.000000e+00> : vector<8x384xf32>
    %257 = tpu.matmul %250, %256, %cst_96 {dimension_numbers = #tpu.dot_dimension_numbers<[1], [0], [0], [1], [0, 0, 1, 1], [], []>} : vector<8x128xf32>, vector<128x384xf32>, vector<8x384xf32> -> vector<8x384xf32>
    %258 = vector.extract_strided_slice %255 {offsets = [0, 0], sizes = [8, 128], strides = [1, 1]} : vector<8x384xf32> to vector<8x128xf32>
    %259 = vector.extract_strided_slice %257 {offsets = [0, 0], sizes = [8, 128], strides = [1, 1]} : vector<8x384xf32> to vector<8x128xf32>
    %260 = arith.addf %258, %259 : vector<8x128xf32>
    %261 = arith.negf %260 : vector<8x128xf32>
    %262 = math.exp %261 : vector<8x128xf32>
    %cst_97 = arith.constant 1.000000e+00 : f32
    %263 = vector.broadcast %cst_97 : f32 to vector<8x128xf32>
    %264 = arith.addf %263, %262 : vector<8x128xf32>
    %265 = arith.divf %263, %264 : vector<8x128xf32>
    %266 = vector.extract_strided_slice %255 {offsets = [0, 128], sizes = [8, 128], strides = [1, 1]} : vector<8x384xf32> to vector<8x128xf32>
    %267 = vector.extract_strided_slice %257 {offsets = [0, 128], sizes = [8, 128], strides = [1, 1]} : vector<8x384xf32> to vector<8x128xf32>
    %268 = arith.addf %266, %267 : vector<8x128xf32>
    %269 = arith.negf %268 : vector<8x128xf32>
    %270 = math.exp %269 : vector<8x128xf32>
    %cst_98 = arith.constant 1.000000e+00 : f32
    %271 = vector.broadcast %cst_98 : f32 to vector<8x128xf32>
    %272 = arith.addf %271, %270 : vector<8x128xf32>
    %273 = arith.divf %271, %272 : vector<8x128xf32>
    %274 = vector.extract_strided_slice %255 {offsets = [0, 256], sizes = [8, 128], strides = [1, 1]} : vector<8x384xf32> to vector<8x128xf32>
    %275 = vector.extract_strided_slice %257 {offsets = [0, 256], sizes = [8, 128], strides = [1, 1]} : vector<8x384xf32> to vector<8x128xf32>
    %276 = arith.addf %275, %14 : vector<8x128xf32>
    %277 = arith.mulf %265, %276 : vector<8x128xf32>
    %278 = arith.addf %274, %277 : vector<8x128xf32>
    %279 = math.tanh %278 : vector<8x128xf32>
    %cst_99 = arith.constant 1.000000e+00 : f32
    %280 = vector.broadcast %cst_99 : f32 to vector<8x128xf32>
    %281 = arith.subf %280, %273 : vector<8x128xf32>
    %282 = arith.mulf %281, %279 : vector<8x128xf32>
    %283 = arith.mulf %273, %250 : vector<8x128xf32>
    %284 = arith.addf %282, %283 : vector<8x128xf32>
    %c0_100 = arith.constant 0 : index
    %c7_101 = arith.constant 7 : index
    %c0_102 = arith.constant 0 : index
    %285 = vector.load %arg11[%c0_100, %c7_101, %c0_102] : memref<8x8x128xf32, #tpu.memory_space<vmem>>, vector<8x1x128xf32>
    %286 = vector.shape_cast %285 : vector<8x1x128xf32> to vector<8x128xf32>
    %287 = vector.shape_cast %284 : vector<8x128xf32> to vector<8x1x128xf32>
    tpu.vector_store %arg11[%c0_100, %c7_101, %c0_102], %287 {strides = array<i32>} : memref<8x8x128xf32, #tpu.memory_space<vmem>>, vector<8x1x128xf32>,
    %c0_103 = arith.constant 0 : index
    %c0_104 = arith.constant 0 : index
    %288 = vector.load %arg9[%c0_103, %c0_104] : memref<8x128xf32, #tpu.memory_space<vmem>>, vector<8x128xf32>
    tpu.vector_store %arg9[%c0_103, %c0_104], %284 {strides = array<i32>} : memref<8x128xf32, #tpu.memory_space<vmem>>, vector<8x128xf32>,
    %c0_105 = arith.constant 0 : index
    %c0_106 = arith.constant 0 : index
    %c0_107 = arith.constant 0 : index
    %289 = vector.load %arg11[%c0_105, %c0_106, %c0_107] : memref<8x8x128xf32, #tpu.memory_space<vmem>>, vector<8x8x128xf32>
    %290 = vector.shape_cast %289 : vector<8x8x128xf32> to vector<64x128xf32>
    %c0_108 = arith.constant 0 : index
    %c0_109 = arith.constant 0 : index
    %291 = vector.load %arg7[%c0_108, %c0_109] : memref<128x128xf32, #tpu.memory_space<vmem>>, vector<128x128xf32>
    %cst_110 = arith.constant dense<0.000000e+00> : vector<64x128xf32>
    %292 = tpu.matmul %290, %291, %cst_110 {dimension_numbers = #tpu.dot_dimension_numbers<[1], [0], [0], [1], [0, 0, 1, 1], [], []>} : vector<64x128xf32>, vector<128x128xf32>, vector<64x128xf32> -> vector<64x128xf32>
    %293 = vector.shape_cast %292 : vector<64x128xf32> to vector<8x8x128xf32>
    %c0_111 = arith.constant 0 : index
    %c0_112 = arith.constant 0 : index
    %c0_113 = arith.constant 0 : index
    %294 = vector.load %arg8[%c0_111, %c0_112, %c0_113] : memref<8x8x128xf32, #tpu.memory_space<vmem>>, vector<8x8x128xf32>
    tpu.vector_store %arg8[%c0_111, %c0_112, %c0_113], %293 {strides = array<i32>} : memref<8x8x128xf32, #tpu.memory_space<vmem>>, vector<8x8x128xf32>,
    return
  }
  func.func @transform_0(%arg0: i32, %arg1: i32) -> (i32, i32, i32) {
    %c0_i32 = arith.constant 0 : i32
    %c0_i32_0 = arith.constant 0 : i32
    return %arg0, %arg1, %c0_i32 : i32, i32, i32
  }
  func.func @transform_1(%arg0: i32, %arg1: i32) -> (i32, i32) {
    %c0_i32 = arith.constant 0 : i32
    %c0_i32_0 = arith.constant 0 : i32
    %c0_i32_1 = arith.constant 0 : i32
    return %c0_i32, %c0_i32_0 : i32, i32
  }
  func.func @transform_2(%arg0: i32, %arg1: i32) -> (i32, i32) {
    %c0_i32 = arith.constant 0 : i32
    %c0_i32_0 = arith.constant 0 : i32
    %c0_i32_1 = arith.constant 0 : i32
    return %c0_i32, %c0_i32_0 : i32, i32
  }
  func.func @transform_3(%arg0: i32, %arg1: i32) -> (i32, i32) {
    %c0_i32 = arith.constant 0 : i32
    %c0_i32_0 = arith.constant 0 : i32
    %c0_i32_1 = arith.constant 0 : i32
    return %c0_i32, %c0_i32_0 : i32, i32
  }
  func.func @transform_4(%arg0: i32, %arg1: i32) -> (i32, i32) {
    %c0_i32 = arith.constant 0 : i32
    %c0_i32_0 = arith.constant 0 : i32
    %c0_i32_1 = arith.constant 0 : i32
    return %c0_i32, %c0_i32_0 : i32, i32
  }
  func.func @transform_5(%arg0: i32, %arg1: i32) -> (i32, i32) {
    %c0_i32 = arith.constant 0 : i32
    %c0_i32_0 = arith.constant 0 : i32
    %c0_i32_1 = arith.constant 0 : i32
    return %c0_i32, %c0_i32_0 : i32, i32
  }
  func.func @transform_6(%arg0: i32, %arg1: i32) -> (i32, i32, i32) {
    %c0_i32 = arith.constant 0 : i32
    %c0_i32_0 = arith.constant 0 : i32
    return %arg0, %arg1, %c0_i32 : i32, i32, i32
  }
}

</mosaic_0001>

<llo_original>
// kernel: tiny_rnn_lm_forward.1
$region0: #{tiny_rnn_lm_forward.1}
  #allocation0 [shape = 'u32[]', space=smem, size = 0x4, offset = 0x4, fixed_abs, tag = 'smem constant byte address 0x4 - core index']
  #allocation1 [shape = 'u32[144,128]{1,0:T(1,128)}', space=vmem, size = 0x12000, scoped, tag = 'internal scratch']
  #allocation2 [shape = 'f32[8,128]{1,0:T(8,128)}', space=vmem, size = 0x1000, scoped, tag = 'scratch operand']
  #allocation3 [shape = 'f32[8,8,384]{2,1,0:T(8,128)}', space=vmem, size = 0x18000, scoped, tag = 'scratch operand']
  #allocation4 [shape = 'f32[8,8,128]{2,1,0:T(8,128)}', space=vmem, size = 0x8000, scoped, tag = 'scratch operand']
  %s0 = inlined_call_operand.vmem [shape: f32[8,16,128], index: 0, kind: input, shape index: {}]
  %s1 = inlined_call_operand.vmem [shape: f32[128,384], index: 1, kind: input, shape index: {}]
  %s2 = inlined_call_operand.vmem [shape: f32[128,384], index: 2, kind: input, shape index: {}]
  %s3 = inlined_call_operand.vmem [shape: f32[1,384], index: 3, kind: input, shape index: {}]
  %s4 = inlined_call_operand.vmem [shape: f32[1,128], index: 4, kind: input, shape index: {}]
  %s5 = inlined_call_operand.vmem [shape: f32[128,128], index: 5, kind: input, shape index: {}]
  %s6 = inlined_call_operand.vmem [shape: f32[8,16,128], index: 6, kind: output, shape index: {}]
  %s7 = sld [smem:[#allocation0]]
  $region133: #{tiny_rnn_lm_forward.1} parent=0
    _
  %s9 = ssub.s32 1, %s7
  %s10 = scalar_select 0, %s9, %s7
  $region1: #{tiny_rnn_lm_forward.1} parent=0
    #allocation5 [shape = 'u8[65536]{0}', space=vmem, size = 0x10000, scoped, tag = 'input window, operand 0']
    #allocation6 [shape = 'u8[65536]{0}', space=vmem, size = 0x10000, scoped, tag = 'output window, operand 0']
    loop: start=0, step=1, limit=4
    $region2: #{tiny_rnn_lm_forward.1} parent=1 // loop_pre_header
      _
    $region3: #{tiny_rnn_lm_forward.1} parent=1 // loop_header
      %s12 = sphi 0, %s16
      %p13 = scmp.ge.s32.totalorder %s12, 4
      %s19 = sphi 0, %s31
      %s20 = sphi 0, %s27
      %s21 = sphi 0, %s19
      %s22 = sphi 0, %s20
      %s23 = sphi 0, %s21
      %s24 = sphi 0, %s22
      %s36 = sphi 0, %s38
      %s39 = sphi 0, %s36
      %s40 = sphi 0, %s39
      %s56 = sphi 0, %s40
      %s60 = sphi 0, %s60
      %s62 = sphi 0, %s60
      %s63 = sphi 0, %s62
      %s77 = sphi 0, %s63
      %s81 = sphi 0, %s81
      %s83 = sphi 0, %s81
      %s84 = sphi 0, %s83
      %s98 = sphi 0, %s84
      %s102 = sphi 0, %s102
      %s104 = sphi 0, %s102
      %s105 = sphi 0, %s104
      %s119 = sphi 0, %s105
      %s123 = sphi 0, %s123
      %s125 = sphi 0, %s123
      %s126 = sphi 0, %s125
      %s140 = sphi 0, %s126
      %s144 = sphi 0, %s144
      %s146 = sphi 0, %s144
      %s147 = sphi 0, %s146
      %s161 = sphi 0, %s147
      %s169 = sphi 0, %s171
      %s172 = sphi 0, %s169
      %s173 = sphi 0, %s172
      %s189 = sphi 0, %s173
    $region4: #{tiny_rnn_lm_forward.1} parent=1 // loop_header_branch
      %15 = sbr.rel (%p13) target = $region8
    $region5: #{tiny_rnn_lm_forward.1} parent=1 // loop_body
      %s17 = ssub.s32 %s12, 1
      %s18 = ssub.s32 %s12, 2
      %s25 = sadd.s32 1, %s20
      %p26 = scmp.ge.s32.totalorder %s25, 2
      %s27 = scalar_select %p26, 0, %s25
      %s28 = sadd.s32 1, %s19
      %s29 = scalar_select %p26, %s28, %s19
      %p30 = scmp.ge.s32.totalorder %s29, 1
      %s31 = scalar_select %p30, 0, %s29
      %s32 = ssub.s32 %s19, %s31
      %s33 = ssub.s32 %s20, %s27
      %s34 = sor.u32 %s32, %s33
      %p35 = scmp.eq.s32.totalorder %s34, 0
      %s37 = sadd.s32 %s36, 1
      %s38 = scalar_select %p35, %s36, %s37
      %p41 = pneg %p35
      %p42 = scmp.eq.s32.totalorder %s12, 1
      %p43 = por %p41, %p42
      %p44 = scmp.ne.s32.totalorder %s36, %s39
      %p45 = scmp.eq.s32.totalorder %s12, 0
      %p46 = por %p44, %p45
      %p47 = scmp.ne.s32.totalorder %s36, %s39
      %p48 = scmp.eq.s32.totalorder %s17, 1
      %p49 = por %p47, %p48
      %p50 = scmp.ne.s32.totalorder %s39, %s40
      %p51 = scmp.eq.s32.totalorder %s17, 0
      %p52 = por %p50, %p51
      %p53 = scmp.ne.s32.totalorder %s39, %s40
      %p54 = scmp.eq.s32.totalorder %s18, 1
      %p55 = por %p53, %p54
      %p57 = scmp.ne.s32.totalorder %s40, %s56
      %p58 = scmp.eq.s32.totalorder %s18, 0
      %p59 = por %p57, %p58
      %s61 = sadd.s32 %s60, 1
      %p64 = scmp.eq.s32.totalorder %s12, 1
      %p65 = scmp.ne.s32.totalorder %s60, %s62
      %p66 = scmp.eq.s32.totalorder %s12, 0
      %p67 = por %p65, %p66
      %p68 = scmp.ne.s32.totalorder %s60, %s62
      %p69 = scmp.eq.s32.totalorder %s17, 1
      %p70 = por %p68, %p69
      %p71 = scmp.ne.s32.totalorder %s62, %s63
      %p72 = scmp.eq.s32.totalorder %s17, 0
      %p73 = por %p71, %p72
      %p74 = scmp.ne.s32.totalorder %s62, %s63
      %p75 = scmp.eq.s32.totalorder %s18, 1
      %p76 = por %p74, %p75
      %p78 = scmp.ne.s32.totalorder %s63, %s77
      %p79 = scmp.eq.s32.totalorder %s18, 0
      %p80 = por %p78, %p79
      %s82 = sadd.s32 %s81, 1
      %p85 = scmp.eq.s32.totalorder %s12, 1
      %p86 = scmp.ne.s32.totalorder %s81, %s83
      %p87 = scmp.eq.s32.totalorder %s12, 0
      %p88 = por %p86, %p87
      %p89 = scmp.ne.s32.totalorder %s81, %s83
      %p90 = scmp.eq.s32.totalorder %s17, 1
      %p91 = por %p89, %p90
      %p92 = scmp.ne.s32.totalorder %s83, %s84
      %p93 = scmp.eq.s32.totalorder %s17, 0
      %p94 = por %p92, %p93
      %p95 = scmp.ne.s32.totalorder %s83, %s84
      %p96 = scmp.eq.s32.totalorder %s18, 1
      %p97 = por %p95, %p96
      %p99 = scmp.ne.s32.totalorder %s84, %s98
      %p100 = scmp.eq.s32.totalorder %s18, 0
      %p101 = por %p99, %p100
      %s103 = sadd.s32 %s102, 1
      %p106 = scmp.eq.s32.totalorder %s12, 1
      %p107 = scmp.ne.s32.totalorder %s102, %s104
      %p108 = scmp.eq.s32.totalorder %s12, 0
      %p109 = por %p107, %p108
      %p110 = scmp.ne.s32.totalorder %s102, %s104
      %p111 = scmp.eq.s32.totalorder %s17, 1
      %p112 = por %p110, %p111
      %p113 = scmp.ne.s32.totalorder %s104, %s105
      %p114 = scmp.eq.s32.totalorder %s17, 0
      %p115 = por %p113, %p114
      %p116 = scmp.ne.s32.totalorder %s104, %s105
      %p117 = scmp.eq.s32.totalorder %s18, 1
      %p118 = por %p116, %p117
      %p120 = scmp.ne.s32.totalorder %s105, %s119
      %p121 = scmp.eq.s32.totalorder %s18, 0
      %p122 = por %p120, %p121
      %s124 = sadd.s32 %s123, 1
      %p127 = scmp.eq.s32.totalorder %s12, 1
      %p128 = scmp.ne.s32.totalorder %s123, %s125
      %p129 = scmp.eq.s32.totalorder %s12, 0
      %p130 = por %p128, %p129
      %p131 = scmp.ne.s32.totalorder %s123, %s125
      %p132 = scmp.eq.s32.totalorder %s17, 1
      %p133 = por %p131, %p132
      %p134 = scmp.ne.s32.totalorder %s125, %s126
      %p135 = scmp.eq.s32.totalorder %s17, 0
      %p136 = por %p134, %p135
      %p137 = scmp.ne.s32.totalorder %s125, %s126
      %p138 = scmp.eq.s32.totalorder %s18, 1
      %p139 = por %p137, %p138
      %p141 = scmp.ne.s32.totalorder %s126, %s140
      %p142 = scmp.eq.s32.totalorder %s18, 0
      %p143 = por %p141, %p142
      %s145 = sadd.s32 %s144, 1
      %p148 = scmp.eq.s32.totalorder %s12, 1
      %p149 = scmp.ne.s32.totalorder %s144, %s146
      %p150 = scmp.eq.s32.totalorder %s12, 0
      %p151 = por %p149, %p150
      %p152 = scmp.ne.s32.totalorder %s144, %s146
      %p153 = scmp.eq.s32.totalorder %s17, 1
      %p154 = por %p152, %p153
      %p155 = scmp.ne.s32.totalorder %s146, %s147
      %p156 = scmp.eq.s32.totalorder %s17, 0
      %p157 = por %p155, %p156
      %p158 = scmp.ne.s32.totalorder %s146, %s147
      %p159 = scmp.eq.s32.totalorder %s18, 1
      %p160 = por %p158, %p159
      %p162 = scmp.ne.s32.totalorder %s147, %s161
      %p163 = scmp.eq.s32.totalorder %s18, 0
      %p164 = por %p162, %p163
      %s165 = ssub.s32 %s19, %s31
      %s166 = ssub.s32 %s20, %s27
      %s167 = sor.u32 %s165, %s166
      %p168 = scmp.eq.s32.totalorder %s167, 0
      %s170 = sadd.s32 %s169, 1
      %s171 = scalar_select %p168, %s169, %s170
      %p174 = pneg %p168
      %p175 = scmp.eq.s32.totalorder %s12, 1
      %p176 = por %p174, %p175
      %p177 = scmp.ne.s32.totalorder %s169, %s172
      %p178 = scmp.eq.s32.totalorder %s12, 0
      %p179 = por %p177, %p178
      %p180 = scmp.ne.s32.totalorder %s169, %s172
      %p181 = scmp.eq.s32.totalorder %s17, 1
      %p182 = por %p180, %p181
      %p183 = scmp.ne.s32.totalorder %s172, %s173
      %p184 = scmp.eq.s32.totalorder %s17, 0
      %p185 = por %p183, %p184
      %p186 = scmp.ne.s32.totalorder %s172, %s173
      %p187 = scmp.eq.s32.totalorder %s18, 1
      %p188 = por %p186, %p187
      %p190 = scmp.ne.s32.totalorder %s173, %s189
      %p191 = scmp.eq.s32.totalorder %s18, 0
      %p192 = por %p190, %p191
      %p193 = scmp.le.s32.totalorder 1, %s12
      %p194 = scmp.lt.s32.totalorder %s12, 3
      %p195 = pnand %p193, %p194
      %p196 = pneg %p195
      // Predicated region
      $region9: #{tiny_rnn_lm_forward.1} parent=5 // pred_check
        _
      $region10: #{tiny_rnn_lm_forward.1} parent=5 // pred_check_branch
        %198 = sbr.rel (%p195) target = $region12
      $region11: #{tiny_rnn_lm_forward.1} parent=5 // pred_region
        %s199 = ssub.s32 %s12, 1
        // Predicated region
        $region13: #{tiny_rnn_lm_forward.1} parent=11 // pred_check
          %p200 = pneg %p73
        $region14: #{tiny_rnn_lm_forward.1} parent=11 // pred_check_branch
          %202 = sbr.rel (%p200) target = $region16
        $region15: #{tiny_rnn_lm_forward.1} parent=11 // pred_region
          _
        $region16: #{tiny_rnn_lm_forward.1} parent=11 // pred_fallthru
          _
        // Predicated region
        $region17: #{tiny_rnn_lm_forward.1} parent=11 // pred_check
          %p203 = pneg %p94
        $region18: #{tiny_rnn_lm_forward.1} parent=11 // pred_check_branch
          %205 = sbr.rel (%p203) target = $region20
        $region19: #{tiny_rnn_lm_forward.1} parent=11 // pred_region
          _
        $region20: #{tiny_rnn_lm_forward.1} parent=11 // pred_fallthru
          _
        // Predicated region
        $region21: #{tiny_rnn_lm_forward.1} parent=11 // pred_check
          %p206 = pneg %p115
        $region22: #{tiny_rnn_lm_forward.1} parent=11 // pred_check_branch
          %208 = sbr.rel (%p206) target = $region24
        $region23: #{tiny_rnn_lm_forward.1} parent=11 // pred_region
          _
        $region24: #{tiny_rnn_lm_forward.1} parent=11 // pred_fallthru
          _
        // Predicated region
        $region25: #{tiny_rnn_lm_forward.1} parent=11 // pred_check
          %p209 = pneg %p136
        $region26: #{tiny_rnn_lm_forward.1} parent=11 // pred_check_branch
          %211 = sbr.rel (%p209) target = $region28
        $region27: #{tiny_rnn_lm_forward.1} parent=11 // pred_region
          _
        $region28: #{tiny_rnn_lm_forward.1} parent=11 // pred_fallthru
          _
        // Predicated region
        $region29: #{tiny_rnn_lm_forward.1} parent=11 // pred_check
          %p212 = pneg %p157
        $region30: #{tiny_rnn_lm_forward.1} parent=11 // pred_check_branch
          %214 = sbr.rel (%p212) target = $region32
        $region31: #{tiny_rnn_lm_forward.1} parent=11 // pred_region
          _
        $region32: #{tiny_rnn_lm_forward.1} parent=11 // pred_fallthru
          _
      $region12: #{tiny_rnn_lm_forward.1} parent=5 // pred_fallthru
        _
      %p215 = scmp.lt.s32.totalorder %s12, 2
      // Predicated region
      $region33: #{tiny_rnn_lm_forward.1} parent=5 // pred_check
        %p216 = pneg %p215
      $region34: #{tiny_rnn_lm_forward.1} parent=5 // pred_check_branch
        %218 = sbr.rel (%p216) target = $region36
      $region35: #{tiny_rnn_lm_forward.1} parent=5 // pred_region
        // Predicated region
        $region37: #{tiny_rnn_lm_forward.1} parent=35 // pred_check
          %p219 = pneg %p46
        $region38: #{tiny_rnn_lm_forward.1} parent=35 // pred_check_branch
          %221 = sbr.rel (%p219) target = $region40
        $region39: #{tiny_rnn_lm_forward.1} parent=35 // pred_region
          %s222 = sand.u32 %s36, 1
          %s223 = sand.u32 %s36, 1
          %s224 = smul.addr %s223, 64
          %s225 = scalar_lea.vmem [#allocation5], %s224
          %s226 = smul.u32 8, %s19
          %s227 = smul.addr %s226, 2
          %s228 = sadd.s32 %s20, %s227
          %s229 = smul.addr %s228, 8
          %s230 = scalar_lea.vmem %s0, %s229
          // Predicated region
          $region41: #{tiny_rnn_lm_forward.1} parent=39 // pred_check
            _
          $region42: #{tiny_rnn_lm_forward.1} parent=39 // pred_check_branch
            %232 = sbr.rel (0) target = $region44
          $region43: #{tiny_rnn_lm_forward.1} parent=39 // pred_region
            // Predicated region
            $region45: #{tiny_rnn_lm_forward.1} parent=43 // pred_check
              _
            $region46: #{tiny_rnn_lm_forward.1} parent=43 // pred_check_branch
              %234 = sbr.rel (0) target = $region48
            $region47: #{tiny_rnn_lm_forward.1} parent=43 // pred_region
              // Predicated region
              $region60: #{tiny_rnn_lm_forward.1} parent=47 // pred_check
                _
              $region61: #{tiny_rnn_lm_forward.1} parent=47 // pred_check_branch
                %263 = sbr.rel (0) target = $region63
              $region62: #{tiny_rnn_lm_forward.1} parent=47 // pred_region
                loop: start=0, step=1, limit=1
                $region64: #{tiny_rnn_lm_forward.1} parent=62 // loop_pre_header
                  _
                $region65: #{tiny_rnn_lm_forward.1} parent=62 // loop_header
                  %s265 = sphi 0, %s269
                  %p266 = scmp.ge.s32.totalorder %s265, 1
                  %s270 = sphi %s230, %s230
                  %s271 = sphi %s225, %s225
                $region66: #{tiny_rnn_lm_forward.1} parent=62 // loop_header_branch
                  %268 = sbr.rel (%p266) target = $region70
                $region67: #{tiny_rnn_lm_forward.1} parent=62 // loop_body
                  %v272 = vld [vmem:[%s270] sm:$0xff]
                  %273 = vst [vmem:[%s271] sm:$0xff] %v272
                  %v274 = vld [vmem:[%s270 + $0x10] sm:$0xff]
                  %275 = vst [vmem:[%s271 + $0x8] sm:$0xff] %v274
                  %v276 = vld [vmem:[%s270 + $0x20] sm:$0xff]
                  %277 = vst [vmem:[%s271 + $0x10] sm:$0xff] %v276
                  %v278 = vld [vmem:[%s270 + $0x30] sm:$0xff]
                  %279 = vst [vmem:[%s271 + $0x18] sm:$0xff] %v278
                  %v280 = vld [vmem:[%s270 + $0x40] sm:$0xff]
                  %281 = vst [vmem:[%s271 + $0x20] sm:$0xff] %v280
                  %v282 = vld [vmem:[%s270 + $0x50] sm:$0xff]
                  %283 = vst [vmem:[%s271 + $0x28] sm:$0xff] %v282
                  %v284 = vld [vmem:[%s270 + $0x60] sm:$0xff]
                  %285 = vst [vmem:[%s271 + $0x30] sm:$0xff] %v284
                  %v286 = vld [vmem:[%s270 + $0x70] sm:$0xff]
                  %287 = vst [vmem:[%s271 + $0x38] sm:$0xff] %v286
                $region68: #{tiny_rnn_lm_forward.1} parent=62 // loop_footer
                  %s269 = sadd.s32 1, %s265
                $region69: #{tiny_rnn_lm_forward.1} parent=62 // loop_footer_branch
                  %264 = sbr.rel target = $region65
                $region70: #{tiny_rnn_lm_forward.1} parent=62 // loop_exit
                  _
              $region63: #{tiny_rnn_lm_forward.1} parent=47 // pred_fallthru
                _
              // Predicated region
              $region71: #{tiny_rnn_lm_forward.1} parent=47 // pred_check
                _
              $region72: #{tiny_rnn_lm_forward.1} parent=47 // pred_check_branch
                %289 = sbr.rel target = $region74
              $region73: #{tiny_rnn_lm_forward.1} parent=47 // pred_region
                _
              $region74: #{tiny_rnn_lm_forward.1} parent=47 // pred_fallthru
                _
            $region48: #{tiny_rnn_lm_forward.1} parent=43 // pred_fallthru
              _
            // Predicated region
            $region49: #{tiny_rnn_lm_forward.1} parent=43 // pred_check
              _
            $region50: #{tiny_rnn_lm_forward.1} parent=43 // pred_check_branch
              %236 = sbr.rel target = $region52
            $region51: #{tiny_rnn_lm_forward.1} parent=43 // pred_region
              loop: start=0, step=1, limit=1
              $region53: #{tiny_rnn_lm_forward.1} parent=51 // loop_pre_header
                _
              $region54: #{tiny_rnn_lm_forward.1} parent=51 // loop_header
                %s239 = sphi 0, %s243
                %p240 = scmp.ge.s32.totalorder %s239, 1
                %s244 = sphi %s230, %s230
                %s245 = sphi %s225, %s225
              $region55: #{tiny_rnn_lm_forward.1} parent=51 // loop_header_branch
                %242 = sbr.rel (%p240) target = $region59
              $region56: #{tiny_rnn_lm_forward.1} parent=51 // loop_body
                %v246 = vld [vmem:[%s244] sm:$0xff]
                %247 = vst [vmem:[%s245] sm:$0xff] %v246
                %v248 = vld [vmem:[%s244 + $0x10] sm:$0xff]
                %249 = vst [vmem:[%s245 + $0x8] sm:$0xff] %v248
                %v250 = vld [vmem:[%s244 + $0x20] sm:$0xff]
                %251 = vst [vmem:[%s245 + $0x10] sm:$0xff] %v250
                %v252 = vld [vmem:[%s244 + $0x30] sm:$0xff]
                %253 = vst [vmem:[%s245 + $0x18] sm:$0xff] %v252
                %v254 = vld [vmem:[%s244 + $0x40] sm:$0xff]
                %255 = vst [vmem:[%s245 + $0x20] sm:$0xff] %v254
                %v256 = vld [vmem:[%s244 + $0x50] sm:$0xff]
                %257 = vst [vmem:[%s245 + $0x28] sm:$0xff] %v256
                %v258 = vld [vmem:[%s244 + $0x60] sm:$0xff]
                %259 = vst [vmem:[%s245 + $0x30] sm:$0xff] %v258
                %v260 = vld [vmem:[%s244 + $0x70] sm:$0xff]
                %261 = vst [vmem:[%s245 + $0x38] sm:$0xff] %v260
              $region57: #{tiny_rnn_lm_forward.1} parent=51 // loop_footer
                %s243 = sadd.s32 1, %s239
              $region58: #{tiny_rnn_lm_forward.1} parent=51 // loop_footer_branch
                %238 = sbr.rel target = $region54
              $region59: #{tiny_rnn_lm_forward.1} parent=51 // loop_exit
                _
            $region52: #{tiny_rnn_lm_forward.1} parent=43 // pred_fallthru
              _
          $region44: #{tiny_rnn_lm_forward.1} parent=39 // pred_fallthru
            _
          %290 = vnop
        $region40: #{tiny_rnn_lm_forward.1} parent=35 // pred_fallthru
          _
      $region36: #{tiny_rnn_lm_forward.1} parent=5 // pred_fallthru
        _
      %p291 = scmp.le.s32.totalorder 1, %s12
      %p292 = scmp.lt.s32.totalorder %s12, 3
      %p293 = pnand %p291, %p292
      %p294 = pneg %p293
      // Predicated region
      $region75: #{tiny_rnn_lm_forward.1} parent=5 // pred_check
        _
      $region76: #{tiny_rnn_lm_forward.1} parent=5 // pred_check_branch
        %296 = sbr.rel (%p293) target = $region78
      $region77: #{tiny_rnn_lm_forward.1} parent=5 // pred_region
        %s297 = ssub.s32 %s12, 1
        %s298 = sand.u32 %s39, 1
        %s299 = sand.u32 %s39, 1
        %s300 = smul.addr %s299, 64
        %s301 = scalar_lea.vmem [#allocation5], %s300
        // Predicated region
        $region79: #{tiny_rnn_lm_forward.1} parent=77 // pred_check
          %p302 = pneg %p52
        $region80: #{tiny_rnn_lm_forward.1} parent=77 // pred_check_branch
          %304 = sbr.rel (%p302) target = $region82
        $region81: #{tiny_rnn_lm_forward.1} parent=77 // pred_region
          _
        $region82: #{tiny_rnn_lm_forward.1} parent=77 // pred_fallthru
          _
        %s305 = sand.u32 %s39, 1
        %s306 = sand.u32 %s39, 1
        %s307 = smul.addr %s306, 64
        %s308 = scalar_lea.vmem [#allocation5], %s307
        %p309 = pneg %p52
        %p310 = pneg %p49
        %p311 = pneg %p73
        %p312 = pneg %p70
        %p313 = pneg %p94
        %p314 = pneg %p91
        %p315 = pneg %p115
        %p316 = pneg %p112
        %p317 = pneg %p136
        %p318 = pneg %p133
        %p319 = pneg %p157
        %p320 = pneg %p154
        %p321 = pneg %p185
        %p322 = pneg %p182
        %s323 = sand.u32 %s172, 1
        %s324 = sand.u32 %s172, 1
        %s325 = smul.addr %s324, 64
        %s326 = scalar_lea.vmem [#allocation6], %s325
        %s327 = smul.u32 8, %s21
        %s328 = smul.u32 8, %s21
        %p329 = scmp.eq.s32.totalorder %s22, 0
        // Predicated region
        $region83: #{tiny_rnn_lm_forward.1} parent=77 // pred_check
          %p330 = pneg %p329
        $region84: #{tiny_rnn_lm_forward.1} parent=77 // pred_check_branch
          %332 = sbr.rel (%p330) target = $region86
        $region85: #{tiny_rnn_lm_forward.1} parent=77 // pred_region
          %333 = vst [vmem:[#allocation2] sm:$0xff] 0.0
        $region86: #{tiny_rnn_lm_forward.1} parent=77 // pred_fallthru
          _
        %v334 = vld [vmem:[%s301] sm:$0xff]
        %v335 = vld [vmem:[%s301 + $0x8] sm:$0xff]
        %v336 = vld [vmem:[%s301 + $0x10] sm:$0xff]
        %v337 = vld [vmem:[%s301 + $0x18] sm:$0xff]
        %v338 = vld [vmem:[%s301 + $0x20] sm:$0xff]
        %v339 = vld [vmem:[%s301 + $0x28] sm:$0xff]
        %v340 = vld [vmem:[%s301 + $0x30] sm:$0xff]
        %v341 = vld [vmem:[%s301 + $0x38] sm:$0xff]
        %v342 = vld [vmem:[%s1] sm:$0xff]
        %v343 = vld [vmem:[%s1 + $0x8] sm:$0xff]
        %v344 = vld [vmem:[%s1 + $0x10] sm:$0xff]
        %v345 = vld [vmem:[%s1 + $0x18] sm:$0xff]
        %v346 = vld [vmem:[%s1 + $0x20] sm:$0xff]
        %v347 = vld [vmem:[%s1 + $0x28] sm:$0xff]
        %v348 = vld [vmem:[%s1 + $0x30] sm:$0xff]
        %v349 = vld [vmem:[%s1 + $0x38] sm:$0xff]
        %v350 = vld [vmem:[%s1 + $0x40] sm:$0xff]
        %v351 = vld [vmem:[%s1 + $0x48] sm:$0xff]
        %v352 = vld [vmem:[%s1 + $0x50] sm:$0xff]
        %v353 = vld [vmem:[%s1 + $0x58] sm:$0xff]
        %v354 = vld [vmem:[%s1 + $0x60] sm:$0xff]
        %v355 = vld [vmem:[%s1 + $0x68] sm:$0xff]
        %v356 = vld [vmem:[%s1 + $0x70] sm:$0xff]
        %v357 = vld [vmem:[%s1 + $0x78] sm:$0xff]
        %v358 = vld [vmem:[%s1 + $0x80] sm:$0xff]
        %v359 = vld [vmem:[%s1 + $0x88] sm:$0xff]
        %v360 = vld [vmem:[%s1 + $0x90] sm:$0xff]
        %v361 = vld [vmem:[%s1 + $0x98] sm:$0xff]
        %v362 = vld [vmem:[%s1 + $0xa0] sm:$0xff]
        %v363 = vld [vmem:[%s1 + $0xa8] sm:$0xff]
        %v364 = vld [vmem:[%s1 + $0xb0] sm:$0xff]
        %v365 = vld [vmem:[%s1 + $0xb8] sm:$0xff]
        %v366 = vld [vmem:[%s1 + $0xc0] sm:$0xff]
        %v367 = vld [vmem:[%s1 + $0xc8] sm:$0xff]
        %v368 = vld [vmem:[%s1 + $0xd0] sm:$0xff]
        %v369 = vld [vmem:[%s1 + $0xd8] sm:$0xff]
        %v370 = vld [vmem:[%s1 + $0xe0] sm:$0xff]
        %v371 = vld [vmem:[%s1 + $0xe8] sm:$0xff]
        %v372 = vld [vmem:[%s1 + $0xf0] sm:$0xff]
        %v373 = vld [vmem:[%s1 + $0xf8] sm:$0xff]
        %v374 = vld [vmem:[%s1 + $0x100] sm:$0xff]
        %v375 = vld [vmem:[%s1 + $0x108] sm:$0xff]
        %v376 = vld [vmem:[%s1 + $0x110] sm:$0xff]
        %v377 = vld [vmem:[%s1 + $0x118] sm:$0xff]
        %v378 = vld [vmem:[%s1 + $0x120] sm:$0xff]
        %v379 = vld [vmem:[%s1 + $0x128] sm:$0xff]
        %v380 = vld [vmem:[%s1 + $0x130] sm:$0xff]
        %v381 = vld [vmem:[%s1 + $0x138] sm:$0xff]
        %v382 = vld [vmem:[%s1 + $0x140] sm:$0xff]
        %v383 = vld [vmem:[%s1 + $0x148] sm:$0xff]
        %v384 = vld [vmem:[%s1 + $0x150] sm:$0xff]
        %v385 = vld [vmem:[%s1 + $0x158] sm:$0xff]
        %v386 = vld [vmem:[%s1 + $0x160] sm:$0xff]
        %v387 = vld [vmem:[%s1 + $0x168] sm:$0xff]
        %v388 = vld [vmem:[%s1 + $0x170] sm:$0xff]
        %v389 = vld [vmem:[%s1 + $0x178] sm:$0xff]
        %v390 = vld [vmem:[%s3] sm:$0x7]
        %v392 = vlaneseq
        %v393 = vshrl.u32 %v392, 7
        %v394 = vsub.s32 0, %v393
        %v395 = vrot.slane %v390, %v394
        %v396 = vlaneseq
        %v397 = vshrl.u32 %v396, 7
        %v398 = vsub.s32 1, %v397
        %v399 = vrot.slane %v390, %v398
        %v400 = vlaneseq
        %v401 = vshrl.u32 %v400, 7
        %v402 = vsub.s32 2, %v401
        %v403 = vrot.slane %v390, %v402
        %407 = vmatprep.subr.mxu0 %v343
        %408 = vmatpush1.msra.mxu0 %v342
        %409 = vmatprep.subr.mxu0 %v346
        %410 = vmatpush1.msra.mxu0 %v345
        %411 = vmatprep.subr.mxu0 %v349
        %412 = vmatpush1.msra.mxu0 %v348
        %413 = vmatprep.subr.mxu0 %v352
        %414 = vmatpush1.msra.mxu0 %v351
        %415 = vmatprep.subr.mxu0 %v355
        %416 = vmatpush1.msra.mxu0 %v354
        %417 = vmatprep.subr.mxu0 %v358
        %418 = vmatpush1.msra.mxu0 %v357
        %419 = vmatprep.subr.mxu0 %v361
        %420 = vmatpush1.msra.mxu0 %v360
        %421 = vmatprep.subr.mxu0 %v364
        %422 = vmatpush1.msra.mxu0 %v363
        %423 = vmatprep.subr.mxu0 %v367
        %424 = vmatpush1.msra.mxu0 %v366
        %425 = vmatprep.subr.mxu0 %v370
        %426 = vmatpush1.msra.mxu0 %v369
        %427 = vmatprep.subr.mxu0 %v373
        %428 = vmatpush1.msra.mxu0 %v372
        %429 = vmatprep.subr.mxu0 %v376
        %430 = vmatpush1.msra.mxu0 %v375
        %431 = vmatprep.subr.mxu0 %v379
        %432 = vmatpush1.msra.mxu0 %v378
        %433 = vmatprep.subr.mxu0 %v382
        %434 = vmatpush1.msra.mxu0 %v381
        %435 = vmatprep.subr.mxu0 %v385
        %436 = vmatpush1.msra.mxu0 %v384
        %437 = vmatprep.subr.mxu0 %v388
        %438 = vmatpush1.msra.mxu0 %v387
        %439 = vmatprep.subr.mxu0 0.0
        %440 = vmatpush1.msra.mxu0 0.0
        %441 = vmatprep.subr.mxu0 0.0
        %442 = vmatpush1.msra.mxu0 0.0
        %443 = vmatprep.subr.mxu0 0.0
        %444 = vmatpush1.msra.mxu0 0.0
        %445 = vmatprep.subr.mxu0 0.0
        %446 = vmatpush1.msra.mxu0 0.0
        %447 = vmatprep.subr.mxu0 0.0
        %448 = vmatpush1.msra.mxu0 0.0
        %449 = vmatprep.subr.mxu0 0.0
        %450 = vmatpush1.msra.mxu0 0.0
        %451 = vmatprep.subr.mxu0 0.0
        %452 = vmatpush1.msra.mxu0 0.0
        %453 = vmatprep.subr.mxu0 0.0
        %454 = vmatpush1.msra.mxu0 0.0
        %455 = vmatprep.subr.mxu0 0.0
        %456 = vmatpush1.msra.mxu0 0.0
        %457 = vmatprep.subr.mxu0 0.0
        %458 = vmatpush1.msra.mxu0 0.0
        %459 = vmatprep.subr.mxu0 0.0
        %460 = vmatpush1.msra.mxu0 0.0
        %461 = vmatprep.subr.mxu0 0.0
        %462 = vmatpush1.msra.mxu0 0.0
        %463 = vmatprep.subr.mxu0 0.0
        %464 = vmatpush1.msra.mxu0 0.0
        %465 = vmatprep.subr.mxu0 0.0
        %466 = vmatpush1.msra.mxu0 0.0
        %467 = vmatprep.subr.mxu0 0.0
        %468 = vmatpush1.msra.mxu0 0.0
        %469 = vmatprep.subr.mxu0 0.0
        %470 = vmatpush1.msra.mxu0 0.0
        %471 = vmatprep.mubr.f32.mxu0 0.0
        %472 = vmatmul.mubr.f32.gmra.mrb[0].mxu0 %v334
        %v473 = vpop.f32.mrb[0].mxu0
        %v474 = vadd.f32 %v395, %v473
        %v475 = vpop.f32.mrb[0].mxu0
        %v476 = vadd.f32 %v399, %v475
        %477 = vmatprep.mubr.f32.mxu0 0.0
        %478 = vmatmul.mubr.f32.gmra.mrb[0].mxu0 %v335
        %v479 = vpop.f32.mrb[0].mxu0
        %v480 = vadd.f32 %v395, %v479
        %v481 = vpop.f32.mrb[0].mxu0
        %v482 = vadd.f32 %v399, %v481
        %483 = vmatprep.mubr.f32.mxu0 0.0
        %484 = vmatmul.mubr.f32.gmra.mrb[0].mxu0 %v336
        %v485 = vpop.f32.mrb[0].mxu0
        %v486 = vadd.f32 %v395, %v485
        %v487 = vpop.f32.mrb[0].mxu0
        %v488 = vadd.f32 %v399, %v487
        %489 = vmatprep.mubr.f32.mxu0 0.0
        %490 = vmatmul.mubr.f32.gmra.mrb[0].mxu0 %v337
        %v491 = vpop.f32.mrb[0].mxu0
        %v492 = vadd.f32 %v395, %v491
        %v493 = vpop.f32.mrb[0].mxu0
        %v494 = vadd.f32 %v399, %v493
        %495 = vmatprep.mubr.f32.mxu0 0.0
        %496 = vmatmul.mubr.f32.gmra.mrb[0].mxu0 %v338
        %v497 = vpop.f32.mrb[0].mxu0
        %v498 = vadd.f32 %v395, %v497
        %v499 = vpop.f32.mrb[0].mxu0
        %v500 = vadd.f32 %v399, %v499
        %501 = vmatprep.mubr.f32.mxu0 0.0
        %502 = vmatmul.mubr.f32.gmra.mrb[0].mxu0 %v339
        %v503 = vpop.f32.mrb[0].mxu0
        %v504 = vadd.f32 %v395, %v503
        %v505 = vpop.f32.mrb[0].mxu0
        %v506 = vadd.f32 %v399, %v505
        %507 = vmatprep.mubr.f32.mxu0 0.0
        %508 = vmatmul.mubr.f32.gmra.mrb[0].mxu0 %v340
        %v509 = vpop.f32.mrb[0].mxu0
        %v510 = vadd.f32 %v395, %v509
        %v511 = vpop.f32.mrb[0].mxu0
        %v512 = vadd.f32 %v399, %v511
        %513 = vmatprep.mubr.f32.mxu0 0.0
        %514 = vmatmul.mubr.f32.gmra.mrb[0].mxu0 %v341
        %v515 = vpop.f32.mrb[0].mxu0
        %v516 = vadd.f32 %v395, %v515
        %v517 = vpop.f32.mrb[0].mxu0
        %v518 = vadd.f32 %v399, %v517
        %519 = vdwg.mxu0
        %520 = vmatprep.subr.mxu0 0.0
        %521 = vmatpush1.msra.mxu0 %v344
        %522 = vmatprep.subr.mxu0 0.0
        %523 = vmatpush1.msra.mxu0 %v347
        %524 = vmatprep.subr.mxu0 0.0
        %525 = vmatpush1.msra.mxu0 %v350
        %526 = vmatprep.subr.mxu0 0.0
        %527 = vmatpush1.msra.mxu0 %v353
        %528 = vmatprep.subr.mxu0 0.0
        %529 = vmatpush1.msra.mxu0 %v356
        %530 = vmatprep.subr.mxu0 0.0
        %531 = vmatpush1.msra.mxu0 %v359
        %532 = vmatprep.subr.mxu0 0.0
        %533 = vmatpush1.msra.mxu0 %v362
        %534 = vmatprep.subr.mxu0 0.0
        %535 = vmatpush1.msra.mxu0 %v365
        %536 = vmatprep.subr.mxu0 0.0
        %537 = vmatpush1.msra.mxu0 %v368
        %538 = vmatprep.subr.mxu0 0.0
        %539 = vmatpush1.msra.mxu0 %v371
        %540 = vmatprep.subr.mxu0 0.0
        %541 = vmatpush1.msra.mxu0 %v374
        %542 = vmatprep.subr.mxu0 0.0
        %543 = vmatpush1.msra.mxu0 %v377
        %544 = vmatprep.subr.mxu0 0.0
        %545 = vmatpush1.msra.mxu0 %v380
        %546 = vmatprep.subr.mxu0 0.0
        %547 = vmatpush1.msra.mxu0 %v383
        %548 = vmatprep.subr.mxu0 0.0
        %549 = vmatpush1.msra.mxu0 %v386
        %550 = vmatprep.subr.mxu0 0.0
        %551 = vmatpush1.msra.mxu0 %v389
        %552 = vmatprep.subr.mxu0 0.0
        %553 = vmatpush1.msra.mxu0 0.0
        %554 = vmatprep.subr.mxu0 0.0
        %555 = vmatpush1.msra.mxu0 0.0
        %556 = vmatprep.subr.mxu0 0.0
        %557 = vmatpush1.msra.mxu0 0.0
        %558 = vmatprep.subr.mxu0 0.0
        %559 = vmatpush1.msra.mxu0 0.0
        %560 = vmatprep.subr.mxu0 0.0
        %561 = vmatpush1.msra.mxu0 0.0
        %562 = vmatprep.subr.mxu0 0.0
        %563 = vmatpush1.msra.mxu0 0.0
        %564 = vmatprep.subr.mxu0 0.0
        %565 = vmatpush1.msra.mxu0 0.0
        %566 = vmatprep.subr.mxu0 0.0
        %567 = vmatpush1.msra.mxu0 0.0
        %568 = vmatprep.subr.mxu0 0.0
        %569 = vmatpush1.msra.mxu0 0.0
        %570 = vmatprep.subr.mxu0 0.0
        %571 = vmatpush1.msra.mxu0 0.0
        %572 = vmatprep.subr.mxu0 0.0
        %573 = vmatpush1.msra.mxu0 0.0
        %574 = vmatprep.subr.mxu0 0.0
        %575 = vmatpush1.msra.mxu0 0.0
        %576 = vmatprep.subr.mxu0 0.0
        %577 = vmatpush1.msra.mxu0 0.0
        %578 = vmatprep.subr.mxu0 0.0
        %579 = vmatpush1.msra.mxu0 0.0
        %580 = vmatprep.subr.mxu0 0.0
        %581 = vmatpush1.msra.mxu0 0.0
        %582 = vmatprep.subr.mxu0 0.0
        %583 = vmatpush1.msra.mxu0 0.0
        %584 = vmatprep.mubr.f32.mxu0 0.0
        %585 = vmatmul.mubr.f32.gmra.mrb[0].mxu0 %v334
        %v586 = vpop.f32.mrb[0].mxu0
        %v587 = vadd.f32 %v403, %v586
        %v588 = vpop.f32.mrb[0].mxu0
        %589 = vmatprep.mubr.f32.mxu0 0.0
        %590 = vmatmul.mubr.f32.gmra.mrb[0].mxu0 %v335
        %v591 = vpop.f32.mrb[0].mxu0
        %v592 = vadd.f32 %v403, %v591
        %v593 = vpop.f32.mrb[0].mxu0
        %594 = vmatprep.mubr.f32.mxu0 0.0
        %595 = vmatmul.mubr.f32.gmra.mrb[0].mxu0 %v336
        %v596 = vpop.f32.mrb[0].mxu0
        %v597 = vadd.f32 %v403, %v596
        %v598 = vpop.f32.mrb[0].mxu0
        %599 = vmatprep.mubr.f32.mxu0 0.0
        %600 = vmatmul.mubr.f32.gmra.mrb[0].mxu0 %v337
        %v601 = vpop.f32.mrb[0].mxu0
        %v602 = vadd.f32 %v403, %v601
        %v603 = vpop.f32.mrb[0].mxu0
        %604 = vmatprep.mubr.f32.mxu0 0.0
        %605 = vmatmul.mubr.f32.gmra.mrb[0].mxu0 %v338
        %v606 = vpop.f32.mrb[0].mxu0
        %v607 = vadd.f32 %v403, %v606
        %v608 = vpop.f32.mrb[0].mxu0
        %609 = vmatprep.mubr.f32.mxu0 0.0
        %610 = vmatmul.mubr.f32.gmra.mrb[0].mxu0 %v339
        %v611 = vpop.f32.mrb[0].mxu0
        %v612 = vadd.f32 %v403, %v611
        %v613 = vpop.f32.mrb[0].mxu0
        %614 = vmatprep.mubr.f32.mxu0 0.0
        %615 = vmatmul.mubr.f32.gmra.mrb[0].mxu0 %v340
        %v616 = vpop.f32.mrb[0].mxu0
        %v617 = vadd.f32 %v403, %v616
        %v618 = vpop.f32.mrb[0].mxu0
        %619 = vmatprep.mubr.f32.mxu0 0.0
        %620 = vmatmul.mubr.f32.gmra.mrb[0].mxu0 %v341
        %v621 = vpop.f32.mrb[0].mxu0
        %v622 = vadd.f32 %v403, %v621
        %v623 = vpop.f32.mrb[0].mxu0
        %624 = vdwg.mxu0
        %625 = vst [vmem:[#allocation3] sm:$0xff] %v474
        %626 = vst [vmem:[#allocation3 + $0x8] sm:$0xff] %v476
        %627 = vst [vmem:[#allocation3 + $0x10] sm:$0xff] %v587
        %628 = vst [vmem:[#allocation3 + $0x18] sm:$0xff] %v480
        %629 = vst [vmem:[#allocation3 + $0x20] sm:$0xff] %v482
        %630 = vst [vmem:[#allocation3 + $0x28] sm:$0xff] %v592
        %631 = vst [vmem:[#allocation3 + $0x30] sm:$0xff] %v486
        %632 = vst [vmem:[#allocation3 + $0x38] sm:$0xff] %v488
        %633 = vst [vmem:[#allocation3 + $0x40] sm:$0xff] %v597
        %634 = vst [vmem:[#allocation3 + $0x48] sm:$0xff] %v492
        %635 = vst [vmem:[#allocation3 + $0x50] sm:$0xff] %v494
        %636 = vst [vmem:[#allocation3 + $0x58] sm:$0xff] %v602
        %637 = vst [vmem:[#allocation3 + $0x60] sm:$0xff] %v498
        %638 = vst [vmem:[#allocation3 + $0x68] sm:$0xff] %v500
        %639 = vst [vmem:[#allocation3 + $0x70] sm:$0xff] %v607
        %640 = vst [vmem:[#allocation3 + $0x78] sm:$0xff] %v504
        %641 = vst [vmem:[#allocation3 + $0x80] sm:$0xff] %v506
        %642 = vst [vmem:[#allocation3 + $0x88] sm:$0xff] %v612
        %643 = vst [vmem:[#allocation3 + $0x90] sm:$0xff] %v510
        %644 = vst [vmem:[#allocation3 + $0x98] sm:$0xff] %v512
        %645 = vst [vmem:[#allocation3 + $0xa0] sm:$0xff] %v617
        %646 = vst [vmem:[#allocation3 + $0xa8] sm:$0xff] %v516
        %647 = vst [vmem:[#allocation3 + $0xb0] sm:$0xff] %v518
        %648 = vst [vmem:[#allocation3 + $0xb8] sm:$0xff] %v622
        %v649 = vld [vmem:[%s4] sm:$0x1]
        %v651 = vlaneseq
        %v652 = vshrl.u32 %v651, 7
        %v653 = vsub.s32 0, %v652
        %v654 = vrot.slane %v649, %v653
        %v656 = vld [vmem:[#allocation2] sm:$0xff]
        %v657 = vld [vmem:[#allocation3] ss:$8 sm:$0x7]
        %s658 = scalar_lea.vmem [#allocation3], 24
        %v659 = vld [vmem:[%s658] ss:$8 sm:$0x7]
        %s660 = scalar_lea.vmem [#allocation3], 48
        %v661 = vld [vmem:[%s660] ss:$8 sm:$0x7]
        %s662 = scalar_lea.vmem [#allocation3], 72
        %v663 = vld [vmem:[%s662] ss:$8 sm:$0x7]
        %s664 = scalar_lea.vmem [#allocation3], 96
        %v665 = vld [vmem:[%s664] ss:$8 sm:$0x7]
        %s666 = scalar_lea.vmem [#allocation3], 120
        %v667 = vld [vmem:[%s666] ss:$8 sm:$0x7]
        %s668 = scalar_lea.vmem [#allocation3], 144
        %v669 = vld [vmem:[%s668] ss:$8 sm:$0x7]
        %s670 = scalar_lea.vmem [#allocation3], 168
        %v671 = vld [vmem:[%s670] ss:$8 sm:$0x7]
        %v672 = vld [vmem:[%s2] sm:$0xff]
        %v673 = vld [vmem:[%s2 + $0x8] sm:$0xff]
        %v674 = vld [vmem:[%s2 + $0x10] sm:$0xff]
        %v675 = vld [vmem:[%s2 + $0x18] sm:$0xff]
        %v676 = vld [vmem:[%s2 + $0x20] sm:$0xff]
        %v677 = vld [vmem:[%s2 + $0x28] sm:$0xff]
        %v678 = vld [vmem:[%s2 + $0x30] sm:$0xff]
        %v679 = vld [vmem:[%s2 + $0x38] sm:$0xff]
        %v680 = vld [vmem:[%s2 + $0x40] sm:$0xff]
        %v681 = vld [vmem:[%s2 + $0x48] sm:$0xff]
        %v682 = vld [vmem:[%s2 + $0x50] sm:$0xff]
        %v683 = vld [vmem:[%s2 + $0x58] sm:$0xff]
        %v684 = vld [vmem:[%s2 + $0x60] sm:$0xff]
        %v685 = vld [vmem:[%s2 + $0x68] sm:$0xff]
        %v686 = vld [vmem:[%s2 + $0x70] sm:$0xff]
        %v687 = vld [vmem:[%s2 + $0x78] sm:$0xff]
        %v688 = vld [vmem:[%s2 + $0x80] sm:$0xff]
        %v689 = vld [vmem:[%s2 + $0x88] sm:$0xff]
        %v690 = vld [vmem:[%s2 + $0x90] sm:$0xff]
        %v691 = vld [vmem:[%s2 + $0x98] sm:$0xff]
        %v692 = vld [vmem:[%s2 + $0xa0] sm:$0xff]
        %v693 = vld [vmem:[%s2 + $0xa8] sm:$0xff]
        %v694 = vld [vmem:[%s2 + $0xb0] sm:$0xff]
        %v695 = vld [vmem:[%s2 + $0xb8] sm:$0xff]
        %v696 = vld [vmem:[%s2 + $0xc0] sm:$0xff]
        %v697 = vld [vmem:[%s2 + $0xc8] sm:$0xff]
        %v698 = vld [vmem:[%s2 + $0xd0] sm:$0xff]
        %v699 = vld [vmem:[%s2 + $0xd8] sm:$0xff]
        %v700 = vld [vmem:[%s2 + $0xe0] sm:$0xff]
        %v701 = vld [vmem:[%s2 + $0xe8] sm:$0xff]
        %v702 = vld [vmem:[%s2 + $0xf0] sm:$0xff]
        %v703 = vld [vmem:[%s2 + $0xf8] sm:$0xff]
        %v704 = vld [vmem:[%s2 + $0x100] sm:$0xff]
        %v705 = vld [vmem:[%s2 + $0x108] sm:$0xff]
        %v706 = vld [vmem:[%s2 + $0x110] sm:$0xff]
        %v707 = vld [vmem:[%s2 + $0x118] sm:$0xff]
        %v708 = vld [vmem:[%s2 + $0x120] sm:$0xff]
        %v709 = vld [vmem:[%s2 + $0x128] sm:$0xff]
        %v710 = vld [vmem:[%s2 + $0x130] sm:$0xff]
        %v711 = vld [vmem:[%s2 + $0x138] sm:$0xff]
        %v712 = vld [vmem:[%s2 + $0x140] sm:$0xff]
        %v713 = vld [vmem:[%s2 + $0x148] sm:$0xff]
        %v714 = vld [vmem:[%s2 + $0x150] sm:$0xff]
        %v715 = vld [vmem:[%s2 + $0x158] sm:$0xff]
        %v716 = vld [vmem:[%s2 + $0x160] sm:$0xff]
        %v717 = vld [vmem:[%s2 + $0x168] sm:$0xff]
        %v718 = vld [vmem:[%s2 + $0x170] sm:$0xff]
        %v719 = vld [vmem:[%s2 + $0x178] sm:$0xff]
        %720 = vmatprep.subr.mxu0 %v673
        %721 = vmatpush1.msra.mxu0 %v672
        %722 = vmatprep.subr.mxu0 %v676
        %723 = vmatpush1.msra.mxu0 %v675
        %724 = vmatprep.subr.mxu0 %v679
        %725 = vmatpush1.msra.mxu0 %v678
        %726 = vmatprep.subr.mxu0 %v682
        %727 = vmatpush1.msra.mxu0 %v681
        %728 = vmatprep.subr.mxu0 %v685
        %729 = vmatpush1.msra.mxu0 %v684
        %730 = vmatprep.subr.mxu0 %v688
        %731 = vmatpush1.msra.mxu0 %v687
        %732 = vmatprep.subr.mxu0 %v691
        %733 = vmatpush1.msra.mxu0 %v690
        %734 = vmatprep.subr.mxu0 %v694
        %735 = vmatpush1.msra.mxu0 %v693
        %736 = vmatprep.subr.mxu0 %v697
        %737 = vmatpush1.msra.mxu0 %v696
        %738 = vmatprep.subr.mxu0 %v700
        %739 = vmatpush1.msra.mxu0 %v699
        %740 = vmatprep.subr.mxu0 %v703
        %741 = vmatpush1.msra.mxu0 %v702
        %742 = vmatprep.subr.mxu0 %v706
        %743 = vmatpush1.msra.mxu0 %v705
        %744 = vmatprep.subr.mxu0 %v709
        %745 = vmatpush1.msra.mxu0 %v708
        %746 = vmatprep.subr.mxu0 %v712
        %747 = vmatpush1.msra.mxu0 %v711
        %748 = vmatprep.subr.mxu0 %v715
        %749 = vmatpush1.msra.mxu0 %v714
        %750 = vmatprep.subr.mxu0 %v718
        %751 = vmatpush1.msra.mxu0 %v717
        %752 = vmatprep.subr.mxu0 0.0
        %753 = vmatpush1.msra.mxu0 0.0
        %754 = vmatprep.subr.mxu0 0.0
        %755 = vmatpush1.msra.mxu0 0.0
        %756 = vmatprep.subr.mxu0 0.0
        %757 = vmatpush1.msra.mxu0 0.0
        %758 = vmatprep.subr.mxu0 0.0
        %759 = vmatpush1.msra.mxu0 0.0
        %760 = vmatprep.subr.mxu0 0.0
        %761 = vmatpush1.msra.mxu0 0.0
        %762 = vmatprep.subr.mxu0 0.0
        %763 = vmatpush1.msra.mxu0 0.0
        %764 = vmatprep.subr.mxu0 0.0
        %765 = vmatpush1.msra.mxu0 0.0
        %766 = vmatprep.subr.mxu0 0.0
        %767 = vmatpush1.msra.mxu0 0.0
        %768 = vmatprep.subr.mxu0 0.0
        %769 = vmatpush1.msra.mxu0 0.0
        %770 = vmatprep.subr.mxu0 0.0
        %771 = vmatpush1.msra.mxu0 0.0
        %772 = vmatprep.subr.mxu0 0.0
        %773 = vmatpush1.msra.mxu0 0.0
        %774 = vmatprep.subr.mxu0 0.0
        %775 = vmatpush1.msra.mxu0 0.0
        %776 = vmatprep.subr.mxu0 0.0
        %777 = vmatpush1.msra.mxu0 0.0
        %778 = vmatprep.subr.mxu0 0.0
        %779 = vmatpush1.msra.mxu0 0.0
        %780 = vmatprep.subr.mxu0 0.0
        %781 = vmatpush1.msra.mxu0 0.0
        %782 = vmatprep.subr.mxu0 0.0
        %783 = vmatpush1.msra.mxu0 0.0
        %784 = vmatprep.mubr.f32.mxu0 0.0
        %785 = vmatmul.mubr.f32.gmra.mrb[0].mxu0 %v656
        %v786 = vpop.f32.mrb[0].mxu0
        %v787 = vadd.f32 0.0, %v786
        %v788 = vpop.f32.mrb[0].mxu0
        %v789 = vadd.f32 0.0, %v788
        %790 = vdwg.mxu0
        %791 = vmatprep.subr.mxu0 0.0
        %792 = vmatpush1.msra.mxu0 %v674
        %793 = vmatprep.subr.mxu0 0.0
        %794 = vmatpush1.msra.mxu0 %v677
        %795 = vmatprep.subr.mxu0 0.0
        %796 = vmatpush1.msra.mxu0 %v680
        %797 = vmatprep.subr.mxu0 0.0
        %798 = vmatpush1.msra.mxu0 %v683
        %799 = vmatprep.subr.mxu0 0.0
        %800 = vmatpush1.msra.mxu0 %v686
        %801 = vmatprep.subr.mxu0 0.0
        %802 = vmatpush1.msra.mxu0 %v689
        %803 = vmatprep.subr.mxu0 0.0
        %804 = vmatpush1.msra.mxu0 %v692
        %805 = vmatprep.subr.mxu0 0.0
        %806 = vmatpush1.msra.mxu0 %v695
        %807 = vmatprep.subr.mxu0 0.0
        %808 = vmatpush1.msra.mxu0 %v698
        %809 = vmatprep.subr.mxu0 0.0
        %810 = vmatpush1.msra.mxu0 %v701
        %811 = vmatprep.subr.mxu0 0.0
        %812 = vmatpush1.msra.mxu0 %v704
        %813 = vmatprep.subr.mxu0 0.0
        %814 = vmatpush1.msra.mxu0 %v707
        %815 = vmatprep.subr.mxu0 0.0
        %816 = vmatpush1.msra.mxu0 %v710
        %817 = vmatprep.subr.mxu0 0.0
        %818 = vmatpush1.msra.mxu0 %v713
        %819 = vmatprep.subr.mxu0 0.0
        %820 = vmatpush1.msra.mxu0 %v716
        %821 = vmatprep.subr.mxu0 0.0
        %822 = vmatpush1.msra.mxu0 %v719
        %823 = vmatprep.subr.mxu0 0.0
        %824 = vmatpush1.msra.mxu0 0.0
        %825 = vmatprep.subr.mxu0 0.0
        %826 = vmatpush1.msra.mxu0 0.0
        %827 = vmatprep.subr.mxu0 0.0
        %828 = vmatpush1.msra.mxu0 0.0
        %829 = vmatprep.subr.mxu0 0.0
        %830 = vmatpush1.msra.mxu0 0.0
        %831 = vmatprep.subr.mxu0 0.0
        %832 = vmatpush1.msra.mxu0 0.0
        %833 = vmatprep.subr.mxu0 0.0
        %834 = vmatpush1.msra.mxu0 0.0
        %835 = vmatprep.subr.mxu0 0.0
        %836 = vmatpush1.msra.mxu0 0.0
        %837 = vmatprep.subr.mxu0 0.0
        %838 = vmatpush1.msra.mxu0 0.0
        %839 = vmatprep.subr.mxu0 0.0
        %840 = vmatpush1.msra.mxu0 0.0
        %841 = vmatprep.subr.mxu0 0.0
        %842 = vmatpush1.msra.mxu0 0.0
        %843 = vmatprep.subr.mxu0 0.0
        %844 = vmatpush1.msra.mxu0 0.0
        %845 = vmatprep.subr.mxu0 0.0
        %846 = vmatpush1.msra.mxu0 0.0
        %847 = vmatprep.subr.mxu0 0.0
        %848 = vmatpush1.msra.mxu0 0.0
        %849 = vmatprep.subr.mxu0 0.0
        %850 = vmatpush1.msra.mxu0 0.0
        %851 = vmatprep.subr.mxu0 0.0
        %852 = vmatpush1.msra.mxu0 0.0
        %853 = vmatprep.subr.mxu0 0.0
        %854 = vmatpush1.msra.mxu0 0.0
        %855 = vmatprep.mubr.f32.mxu0 0.0
        %856 = vmatmul.mubr.f32.gmra.mrb[0].mxu0 %v656
        %v857 = vpop.f32.mrb[0].mxu0
        %v858 = vadd.f32 0.0, %v857
        %v859 = vpop.f32.mrb[0].mxu0
        %860 = vdwg.mxu0
        %v862 = vcombine.high %v787, %v787
        %v864 = vunpack.c.l.s4 1966171168
        %v865 = vunpack.c.0.s8 %v864
        %v866 = vlaneseq
        %v867 = vshrl.u32 %v866, 7
        %v868 = vsub.s32 %v865, %v867
        %v869 = vrot.slane %v787, %v868
        %v871 = vunpack.c.l.s4 1966171168
        %v872 = vunpack.c.0.s8 %v871
        %v873 = vlaneseq
        %v874 = vshrl.u32 %v873, 7
        %v875 = vsub.s32 %v872, %v874
        %v876 = vrot.slane %v862, %v875
        %v877 = vcombine.high %v869, %v869
        %v878 = vcombine.high %v876, %v876
        %v880 = vunpack.c.l.s4 1966171168
        %v881 = vunpack.c.0.s8 %v880
        %v882 = vlaneseq
        %v883 = vshrl.u32 %v882, 7
        %v884 = vsub.s32 %v881, %v883
        %v885 = vrot.slane %v869, %v884
        %v887 = vunpack.c.l.s4 1966171168
        %v888 = vunpack.c.0.s8 %v887
        %v889 = vlaneseq
        %v890 = vshrl.u32 %v889, 7
        %v891 = vsub.s32 %v888, %v890
        %v892 = vrot.slane %v876, %v891
        %v894 = vunpack.c.l.s4 1966171168
        %v895 = vunpack.c.0.s8 %v894
        %v896 = vlaneseq
        %v897 = vshrl.u32 %v896, 7
        %v898 = vsub.s32 %v895, %v897
        %v899 = vrot.slane %v877, %v898
        %v901 = vunpack.c.l.s4 1966171168
        %v902 = vunpack.c.0.s8 %v901
        %v903 = vlaneseq
        %v904 = vshrl.u32 %v903, 7
        %v905 = vsub.s32 %v902, %v904
        %v906 = vrot.slane %v878, %v905
        %v907 = vcombine.high %v885, %v885
        %v908 = vcombine.high %v892, %v892
        %v909 = vcombine.high %v899, %v899
        %v910 = vcombine.high %v906, %v906
        %v919 = vadd.f32 %v657, %v885
        %v920 = vadd.f32 %v659, %v899
        %v921 = vadd.f32 %v661, %v907
        %v922 = vadd.f32 %v663, %v909
        %v923 = vadd.f32 %v665, %v892
        %v924 = vadd.f32 %v667, %v906
        %v925 = vadd.f32 %v669, %v908
        %v926 = vadd.f32 %v671, %v910
        %v927 = vxor.u32 %v919, 2147483648
        %v928 = vxor.u32 %v920, 2147483648
        %v929 = vxor.u32 %v921, 2147483648
        %v930 = vxor.u32 %v922, 2147483648
        %v931 = vxor.u32 %v923, 2147483648
        %v932 = vxor.u32 %v924, 2147483648
        %v933 = vxor.u32 %v925, 2147483648
        %v934 = vxor.u32 %v926, 2147483648
        %v935 = vmul.f32 %v927, 1.442695
        %v936 = vpow.pop %v935
        %v937 = vmul.f32 %v928, 1.442695
        %v938 = vpow.pop %v937
        %v939 = vmul.f32 %v929, 1.442695
        %v940 = vpow.pop %v939
        %v941 = vmul.f32 %v930, 1.442695
        %v942 = vpow.pop %v941
        %v943 = vmul.f32 %v931, 1.442695
        %v944 = vpow.pop %v943
        %v945 = vmul.f32 %v932, 1.442695
        %v946 = vpow.pop %v945
        %v947 = vmul.f32 %v933, 1.442695
        %v948 = vpow.pop %v947
        %v949 = vmul.f32 %v934, 1.442695
        %v950 = vpow.pop %v949
        %v951 = vadd.f32 %v936, 1.0
        %v952 = vadd.f32 %v938, 1.0
        %v953 = vadd.f32 %v940, 1.0
        %v954 = vadd.f32 %v942, 1.0
        %v955 = vadd.f32 %v944, 1.0
        %v956 = vadd.f32 %v946, 1.0
        %v957 = vadd.f32 %v948, 1.0
        %v958 = vadd.f32 %v950, 1.0
        %v959 = vrcp.pop %v951
        %v960 = vmul.f32 1.0, %v959
        %v961 = vrcp.pop %v952
        %v962 = vmul.f32 1.0, %v961
        %v963 = vrcp.pop %v953
        %v964 = vmul.f32 1.0, %v963
        %v965 = vrcp.pop %v954
        %v966 = vmul.f32 1.0, %v965
        %v967 = vrcp.pop %v955
        %v968 = vmul.f32 1.0, %v967
        %v969 = vrcp.pop %v956
        %v970 = vmul.f32 1.0, %v969
        %v971 = vrcp.pop %v957
        %v972 = vmul.f32 1.0, %v971
        %v973 = vrcp.pop %v958
        %v974 = vmul.f32 1.0, %v973
        %v983 = vrot.slane %v657, 1
        %v984 = vrot.slane %v659, 1
        %v985 = vrot.slane %v661, 1
        %v986 = vrot.slane %v663, 1
        %v987 = vrot.slane %v665, 1
        %v988 = vrot.slane %v667, 1
        %v989 = vrot.slane %v669, 1
        %v990 = vrot.slane %v671, 1
        %v1000 = vcombine.high %v789, %v789
        %v1002 = vunpack.c.l.s4 1966171168
        %v1003 = vunpack.c.0.s8 %v1002
        %v1004 = vlaneseq
        %v1005 = vshrl.u32 %v1004, 7
        %v1006 = vsub.s32 %v1003, %v1005
        %v1007 = vrot.slane %v789, %v1006
        %v1009 = vunpack.c.l.s4 1966171168
        %v1010 = vunpack.c.0.s8 %v1009
        %v1011 = vlaneseq
        %v1012 = vshrl.u32 %v1011, 7
        %v1013 = vsub.s32 %v1010, %v1012
        %v1014 = vrot.slane %v1000, %v1013
        %v1015 = vcombine.high %v1007, %v1007
        %v1016 = vcombine.high %v1014, %v1014
        %v1018 = vunpack.c.l.s4 1966171168
        %v1019 = vunpack.c.0.s8 %v1018
        %v1020 = vlaneseq
        %v1021 = vshrl.u32 %v1020, 7
        %v1022 = vsub.s32 %v1019, %v1021
        %v1023 = vrot.slane %v1007, %v1022
        %v1025 = vunpack.c.l.s4 1966171168
        %v1026 = vunpack.c.0.s8 %v1025
        %v1027 = vlaneseq
        %v1028 = vshrl.u32 %v1027, 7
        %v1029 = vsub.s32 %v1026, %v1028
        %v1030 = vrot.slane %v1014, %v1029
        %v1032 = vunpack.c.l.s4 1966171168
        %v1033 = vunpack.c.0.s8 %v1032
        %v1034 = vlaneseq
        %v1035 = vshrl.u32 %v1034, 7
        %v1036 = vsub.s32 %v1033, %v1035
        %v1037 = vrot.slane %v1015, %v1036
        %v1039 = vunpack.c.l.s4 1966171168
        %v1040 = vunpack.c.0.s8 %v1039
        %v1041 = vlaneseq
        %v1042 = vshrl.u32 %v1041, 7
        %v1043 = vsub.s32 %v1040, %v1042
        %v1044 = vrot.slane %v1016, %v1043
        %v1045 = vcombine.high %v1023, %v1023
        %v1046 = vcombine.high %v1030, %v1030
        %v1047 = vcombine.high %v1037, %v1037
        %v1048 = vcombine.high %v1044, %v1044
        %v1057 = vadd.f32 %v983, %v1023
        %v1058 = vadd.f32 %v984, %v1037
        %v1059 = vadd.f32 %v985, %v1045
        %v1060 = vadd.f32 %v986, %v1047
        %v1061 = vadd.f32 %v987, %v1030
        %v1062 = vadd.f32 %v988, %v1044
        %v1063 = vadd.f32 %v989, %v1046
        %v1064 = vadd.f32 %v990, %v1048
        %v1065 = vxor.u32 %v1057, 2147483648
        %v1066 = vxor.u32 %v1058, 2147483648
        %v1067 = vxor.u32 %v1059, 2147483648
        %v1068 = vxor.u32 %v1060, 2147483648
        %v1069 = vxor.u32 %v1061, 2147483648
        %v1070 = vxor.u32 %v1062, 2147483648
        %v1071 = vxor.u32 %v1063, 2147483648
        %v1072 = vxor.u32 %v1064, 2147483648
        %v1073 = vmul.f32 %v1065, 1.442695
        %v1074 = vpow.pop %v1073
        %v1075 = vmul.f32 %v1066, 1.442695
        %v1076 = vpow.pop %v1075
        %v1077 = vmul.f32 %v1067, 1.442695
        %v1078 = vpow.pop %v1077
        %v1079 = vmul.f32 %v1068, 1.442695
        %v1080 = vpow.pop %v1079
        %v1081 = vmul.f32 %v1069, 1.442695
        %v1082 = vpow.pop %v1081
        %v1083 = vmul.f32 %v1070, 1.442695
        %v1084 = vpow.pop %v1083
        %v1085 = vmul.f32 %v1071, 1.442695
        %v1086 = vpow.pop %v1085
        %v1087 = vmul.f32 %v1072, 1.442695
        %v1088 = vpow.pop %v1087
        %v1089 = vadd.f32 %v1074, 1.0
        %v1090 = vadd.f32 %v1076, 1.0
        %v1091 = vadd.f32 %v1078, 1.0
        %v1092 = vadd.f32 %v1080, 1.0
        %v1093 = vadd.f32 %v1082, 1.0
        %v1094 = vadd.f32 %v1084, 1.0
        %v1095 = vadd.f32 %v1086, 1.0
        %v1096 = vadd.f32 %v1088, 1.0
        %v1097 = vrcp.pop %v1089
        %v1098 = vmul.f32 1.0, %v1097
        %v1099 = vrcp.pop %v1090
        %v1100 = vmul.f32 1.0, %v1099
        %v1101 = vrcp.pop %v1091
        %v1102 = vmul.f32 1.0, %v1101
        %v1103 = vrcp.pop %v1092
        %v1104 = vmul.f32 1.0, %v1103
        %v1105 = vrcp.pop %v1093
        %v1106 = vmul.f32 1.0, %v1105
        %v1107 = vrcp.pop %v1094
        %v1108 = vmul.f32 1.0, %v1107
        %v1109 = vrcp.pop %v1095
        %v1110 = vmul.f32 1.0, %v1109
        %v1111 = vrcp.pop %v1096
        %v1112 = vmul.f32 1.0, %v1111
        %v1113 = vadd.f32 %v858, %v654
        %v1115 = vcombine.high %v1113, %v1113
        %v1117 = vunpack.c.l.s4 1966171168
        %v1118 = vunpack.c.0.s8 %v1117
        %v1119 = vlaneseq
        %v1120 = vshrl.u32 %v1119, 7
        %v1121 = vsub.s32 %v1118, %v1120
        %v1122 = vrot.slane %v1113, %v1121
        %v1124 = vunpack.c.l.s4 1966171168
        %v1125 = vunpack.c.0.s8 %v1124
        %v1126 = vlaneseq
        %v1127 = vshrl.u32 %v1126, 7
        %v1128 = vsub.s32 %v1125, %v1127
        %v1129 = vrot.slane %v1115, %v1128
        %v1130 = vcombine.high %v1122, %v1122
        %v1131 = vcombine.high %v1129, %v1129
        %v1133 = vunpack.c.l.s4 1966171168
        %v1134 = vunpack.c.0.s8 %v1133
        %v1135 = vlaneseq
        %v1136 = vshrl.u32 %v1135, 7
        %v1137 = vsub.s32 %v1134, %v1136
        %v1138 = vrot.slane %v1122, %v1137
        %v1140 = vunpack.c.l.s4 1966171168
        %v1141 = vunpack.c.0.s8 %v1140
        %v1142 = vlaneseq
        %v1143 = vshrl.u32 %v1142, 7
        %v1144 = vsub.s32 %v1141, %v1143
        %v1145 = vrot.slane %v1129, %v1144
        %v1147 = vunpack.c.l.s4 1966171168
        %v1148 = vunpack.c.0.s8 %v1147
        %v1149 = vlaneseq
        %v1150 = vshrl.u32 %v1149, 7
        %v1151 = vsub.s32 %v1148, %v1150
        %v1152 = vrot.slane %v1130, %v1151
        %v1154 = vunpack.c.l.s4 1966171168
        %v1155 = vunpack.c.0.s8 %v1154
        %v1156 = vlaneseq
        %v1157 = vshrl.u32 %v1156, 7
        %v1158 = vsub.s32 %v1155, %v1157
        %v1159 = vrot.slane %v1131, %v1158
        %v1160 = vcombine.high %v1138, %v1138
        %v1161 = vcombine.high %v1145, %v1145
        %v1162 = vcombine.high %v1152, %v1152
        %v1163 = vcombine.high %v1159, %v1159
        %v1172 = vmul.f32 %v960, %v1138
        %v1173 = vmul.f32 %v962, %v1152
        %v1174 = vmul.f32 %v964, %v1160
        %v1175 = vmul.f32 %v966, %v1162
        %v1176 = vmul.f32 %v968, %v1145
        %v1177 = vmul.f32 %v970, %v1159
        %v1178 = vmul.f32 %v972, %v1161
        %v1179 = vmul.f32 %v974, %v1163
        %v1180 = vrot.slane %v657, 2
        %v1181 = vrot.slane %v659, 2
        %v1182 = vrot.slane %v661, 2
        %v1183 = vrot.slane %v663, 2
        %v1184 = vrot.slane %v665, 2
        %v1185 = vrot.slane %v667, 2
        %v1186 = vrot.slane %v669, 2
        %v1187 = vrot.slane %v671, 2
        %v1196 = vadd.f32 %v1180, %v1172
        %v1197 = vadd.f32 %v1181, %v1173
        %v1198 = vadd.f32 %v1182, %v1174
        %v1199 = vadd.f32 %v1183, %v1175
        %v1200 = vadd.f32 %v1184, %v1176
        %v1201 = vadd.f32 %v1185, %v1177
        %v1202 = vadd.f32 %v1186, %v1178
        %v1203 = vadd.f32 %v1187, %v1179
        %v1204 = vtanh.pop %v1196
        %v1205 = vtanh.pop %v1197
        %v1206 = vtanh.pop %v1198
        %v1207 = vtanh.pop %v1199
        %v1208 = vtanh.pop %v1200
        %v1209 = vtanh.pop %v1201
        %v1210 = vtanh.pop %v1202
        %v1211 = vtanh.pop %v1203
        %v1212 = vsub.f32 1.0, %v1098
        %v1213 = vsub.f32 1.0, %v1100
        %v1214 = vsub.f32 1.0, %v1102
        %v1215 = vsub.f32 1.0, %v1104
        %v1216 = vsub.f32 1.0, %v1106
        %v1217 = vsub.f32 1.0, %v1108
        %v1218 = vsub.f32 1.0, %v1110
        %v1219 = vsub.f32 1.0, %v1112
        %v1220 = vmul.f32 %v1212, %v1204
        %v1221 = vmul.f32 %v1213, %v1205
        %v1222 = vmul.f32 %v1214, %v1206
        %v1223 = vmul.f32 %v1215, %v1207
        %v1224 = vmul.f32 %v1216, %v1208
        %v1225 = vmul.f32 %v1217, %v1209
        %v1226 = vmul.f32 %v1218, %v1210
        %v1227 = vmul.f32 %v1219, %v1211
        %v1229 = vcombine.high %v656, %v656
        %v1231 = vunpack.c.l.s4 1966171168
        %v1232 = vunpack.c.0.s8 %v1231
        %v1233 = vlaneseq
        %v1234 = vshrl.u32 %v1233, 7
        %v1235 = vsub.s32 %v1232, %v1234
        %v1236 = vrot.slane %v656, %v1235
        %v1238 = vunpack.c.l.s4 1966171168
        %v1239 = vunpack.c.0.s8 %v1238
        %v1240 = vlaneseq
        %v1241 = vshrl.u32 %v1240, 7
        %v1242 = vsub.s32 %v1239, %v1241
        %v1243 = vrot.slane %v1229, %v1242
        %v1244 = vcombine.high %v1236, %v1236
        %v1245 = vcombine.high %v1243, %v1243
        %v1247 = vunpack.c.l.s4 1966171168
        %v1248 = vunpack.c.0.s8 %v1247
        %v1249 = vlaneseq
        %v1250 = vshrl.u32 %v1249, 7
        %v1251 = vsub.s32 %v1248, %v1250
        %v1252 = vrot.slane %v1236, %v1251
        %v1254 = vunpack.c.l.s4 1966171168
        %v1255 = vunpack.c.0.s8 %v1254
        %v1256 = vlaneseq
        %v1257 = vshrl.u32 %v1256, 7
        %v1258 = vsub.s32 %v1255, %v1257
        %v1259 = vrot.slane %v1243, %v1258
        %v1261 = vunpack.c.l.s4 1966171168
        %v1262 = vunpack.c.0.s8 %v1261
        %v1263 = vlaneseq
        %v1264 = vshrl.u32 %v1263, 7
        %v1265 = vsub.s32 %v1262, %v1264
        %v1266 = vrot.slane %v1244, %v1265
        %v1268 = vunpack.c.l.s4 1966171168
        %v1269 = vunpack.c.0.s8 %v1268
        %v1270 = vlaneseq
        %v1271 = vshrl.u32 %v1270, 7
        %v1272 = vsub.s32 %v1269, %v1271
        %v1273 = vrot.slane %v1245, %v1272
        %v1274 = vcombine.high %v1252, %v1252
        %v1275 = vcombine.high %v1259, %v1259
        %v1276 = vcombine.high %v1266, %v1266
        %v1277 = vcombine.high %v1273, %v1273
        %v1286 = vmul.f32 %v1098, %v1252
        %v1287 = vmul.f32 %v1100, %v1266
        %v1288 = vmul.f32 %v1102, %v1274
        %v1289 = vmul.f32 %v1104, %v1276
        %v1290 = vmul.f32 %v1106, %v1259
        %v1291 = vmul.f32 %v1108, %v1273
        %v1292 = vmul.f32 %v1110, %v1275
        %v1293 = vmul.f32 %v1112, %v1277
        %v1294 = vadd.f32 %v1220, %v1286
        %v1295 = vadd.f32 %v1221, %v1287
        %v1296 = vadd.f32 %v1222, %v1288
        %v1297 = vadd.f32 %v1223, %v1289
        %v1298 = vadd.f32 %v1224, %v1290
        %v1299 = vadd.f32 %v1225, %v1291
        %v1300 = vadd.f32 %v1226, %v1292
        %v1301 = vadd.f32 %v1227, %v1293
        %1302 = vst [vmem:[#allocation4] sm:$0x1] %v1294
        %1303 = vst [vmem:[#allocation4 + $0x8] sm:$0x1] %v1295
        %1304 = vst [vmem:[#allocation4 + $0x10] sm:$0x1] %v1296
        %1305 = vst [vmem:[#allocation4 + $0x18] sm:$0x1] %v1297
        %1306 = vst [vmem:[#allocation4 + $0x20] sm:$0x1] %v1298
        %1307 = vst [vmem:[#allocation4 + $0x28] sm:$0x1] %v1299
        %1308 = vst [vmem:[#allocation4 + $0x30] sm:$0x1] %v1300
        %1309 = vst [vmem:[#allocation4 + $0x38] sm:$0x1] %v1301
        %s1310 = scalar_lea.vmem [#allocation3], 1
        %v1311 = vld [vmem:[%s1310] ss:$8 sm:$0x7]
        %s1312 = scalar_lea.vmem [#allocation3], 25
        %v1313 = vld [vmem:[%s1312] ss:$8 sm:$0x7]
        %s1314 = scalar_lea.vmem [#allocation3], 49
        %v1315 = vld [vmem:[%s1314] ss:$8 sm:$0x7]
        %s1316 = scalar_lea.vmem [#allocation3], 73
        %v1317 = vld [vmem:[%s1316] ss:$8 sm:$0x7]
        %s1318 = scalar_lea.vmem [#allocation3], 97
        %v1319 = vld [vmem:[%s1318] ss:$8 sm:$0x7]
        %s1320 = scalar_lea.vmem [#allocation3], 121
        %v1321 = vld [vmem:[%s1320] ss:$8 sm:$0x7]
        %s1322 = scalar_lea.vmem [#allocation3], 145
        %v1323 = vld [vmem:[%s1322] ss:$8 sm:$0x7]
        %s1324 = scalar_lea.vmem [#allocation3], 169
        %v1325 = vld [vmem:[%s1324] ss:$8 sm:$0x7]
        %v1326 = vld [vmem:[%s2] sm:$0xff]
        %v1327 = vld [vmem:[%s2 + $0x8] sm:$0xff]
        %v1328 = vld [vmem:[%s2 + $0x10] sm:$0xff]
        %v1329 = vld [vmem:[%s2 + $0x18] sm:$0xff]
        %v1330 = vld [vmem:[%s2 + $0x20] sm:$0xff]
        %v1331 = vld [vmem:[%s2 + $0x28] sm:$0xff]
        %v1332 = vld [vmem:[%s2 + $0x30] sm:$0xff]
        %v1333 = vld [vmem:[%s2 + $0x38] sm:$0xff]
        %v1334 = vld [vmem:[%s2 + $0x40] sm:$0xff]
        %v1335 = vld [vmem:[%s2 + $0x48] sm:$0xff]
        %v1336 = vld [vmem:[%s2 + $0x50] sm:$0xff]
        %v1337 = vld [vmem:[%s2 + $0x58] sm:$0xff]
        %v1338 = vld [vmem:[%s2 + $0x60] sm:$0xff]
        %v1339 = vld [vmem:[%s2 + $0x68] sm:$0xff]
        %v1340 = vld [vmem:[%s2 + $0x70] sm:$0xff]
        %v1341 = vld [vmem:[%s2 + $0x78] sm:$0xff]
        %v1342 = vld [vmem:[%s2 + $0x80] sm:$0xff]
        %v1343 = vld [vmem:[%s2 + $0x88] sm:$0xff]
        %v1344 = vld [vmem:[%s2 + $0x90] sm:$0xff]
        %v1345 = vld [vmem:[%s2 + $0x98] sm:$0xff]
        %v1346 = vld [vmem:[%s2 + $0xa0] sm:$0xff]
        %v1347 = vld [vmem:[%s2 + $0xa8] sm:$0xff]
        %v1348 = vld [vmem:[%s2 + $0xb0] sm:$0xff]
        %v1349 = vld [vmem:[%s2 + $0xb8] sm:$0xff]
        %v1350 = vld [vmem:[%s2 + $0xc0] sm:$0xff]
        %v1351 = vld [vmem:[%s2 + $0xc8] sm:$0xff]
        %v1352 = vld [vmem:[%s2 + $0xd0] sm:$0xff]
        %v1353 = vld [vmem:[%s2 + $0xd8] sm:$0xff]
        %v1354 = vld [vmem:[%s2 + $0xe0] sm:$0xff]
        %v1355 = vld [vmem:[%s2 + $0xe8] sm:$0xff]
        %v1356 = vld [vmem:[%s2 + $0xf0] sm:$0xff]
        %v1357 = vld [vmem:[%s2 + $0xf8] sm:$0xff]
        %v1358 = vld [vmem:[%s2 + $0x100] sm:$0xff]
        %v1359 = vld [vmem:[%s2 + $0x108] sm:$0xff]
        %v1360 = vld [vmem:[%s2 + $0x110] sm:$0xff]
        %v1361 = vld [vmem:[%s2 + $0x118] sm:$0xff]
        %v1362 = vld [vmem:[%s2 + $0x120] sm:$0xff]
        %v1363 = vld [vmem:[%s2 + $0x128] sm:$0xff]
        %v1364 = vld [vmem:[%s2 + $0x130] sm:$0xff]
        %v1365 = vld [vmem:[%s2 + $0x138] sm:$0xff]
        %v1366 = vld [vmem:[%s2 + $0x140] sm:$0xff]
        %v1367 = vld [vmem:[%s2 + $0x148] sm:$0xff]
        %v1368 = vld [vmem:[%s2 + $0x150] sm:$0xff]
        %v1369 = vld [vmem:[%s2 + $0x158] sm:$0xff]
        %v1370 = vld [vmem:[%s2 + $0x160] sm:$0xff]
        %v1371 = vld [vmem:[%s2 + $0x168] sm:$0xff]
        %v1372 = vld [vmem:[%s2 + $0x170] sm:$0xff]
        %v1373 = vld [vmem:[%s2 + $0x178] sm:$0xff]
        %v1382 = vcombine.low %v1294, %v1295
        %v1383 = vcombine.low %v1296, %v1297
        %v1384 = vcombine.low %v1298, %v1299
        %v1385 = vcombine.low %v1300, %v1301
        %v1387 = vunpack.c.l.s4 1966171168
        %v1388 = vunpack.c.0.s8 %v1387
        %v1389 = vlaneseq
        %v1390 = vshrl.u32 %v1389, 7
        %v1391 = vsub.s32 %v1388, %v1390
        %v1392 = vrot.slane %v1382, %v1391
        %v1394 = vunpack.c.l.s4 1966171168
        %v1395 = vunpack.c.0.s8 %v1394
        %v1396 = vlaneseq
        %v1397 = vshrl.u32 %v1396, 7
        %v1398 = vsub.s32 %v1395, %v1397
        %v1399 = vrot.slane %v1383, %v1398
        %v1401 = vunpack.c.l.s4 1966171168
        %v1402 = vunpack.c.0.s8 %v1401
        %v1403 = vlaneseq
        %v1404 = vshrl.u32 %v1403, 7
        %v1405 = vsub.s32 %v1402, %v1404
        %v1406 = vrot.slane %v1384, %v1405
        %v1408 = vunpack.c.l.s4 1966171168
        %v1409 = vunpack.c.0.s8 %v1408
        %v1410 = vlaneseq
        %v1411 = vshrl.u32 %v1410, 7
        %v1412 = vsub.s32 %v1409, %v1411
        %v1413 = vrot.slane %v1385, %v1412
        %v1414 = vcombine.low %v1392, %v1399
        %v1415 = vcombine.low %v1406, %v1413
        %v1417 = vunpack.c.l.s4 1966171168
        %v1418 = vunpack.c.0.s8 %v1417
        %v1419 = vlaneseq
        %v1420 = vshrl.u32 %v1419, 7
        %v1421 = vsub.s32 %v1418, %v1420
        %v1422 = vrot.slane %v1414, %v1421
        %v1424 = vunpack.c.l.s4 1966171168
        %v1425 = vunpack.c.0.s8 %v1424
        %v1426 = vlaneseq
        %v1427 = vshrl.u32 %v1426, 7
        %v1428 = vsub.s32 %v1425, %v1427
        %v1429 = vrot.slane %v1415, %v1428
        %v1430 = vcombine.low %v1422, %v1429
        %1432 = vmatprep.subr.mxu0 %v1327
        %1433 = vmatpush1.msra.mxu0 %v1326
        %1434 = vmatprep.subr.mxu0 %v1330
        %1435 = vmatpush1.msra.mxu0 %v1329
        %1436 = vmatprep.subr.mxu0 %v1333
        %1437 = vmatpush1.msra.mxu0 %v1332
        %1438 = vmatprep.subr.mxu0 %v1336
        %1439 = vmatpush1.msra.mxu0 %v1335
        %1440 = vmatprep.subr.mxu0 %v1339
        %1441 = vmatpush1.msra.mxu0 %v1338
        %1442 = vmatprep.subr.mxu0 %v1342
        %1443 = vmatpush1.msra.mxu0 %v1341
        %1444 = vmatprep.subr.mxu0 %v1345
        %1445 = vmatpush1.msra.mxu0 %v1344
        %1446 = vmatprep.subr.mxu0 %v1348
        %1447 = vmatpush1.msra.mxu0 %v1347
        %1448 = vmatprep.subr.mxu0 %v1351
        %1449 = vmatpush1.msra.mxu0 %v1350
        %1450 = vmatprep.subr.mxu0 %v1354
        %1451 = vmatpush1.msra.mxu0 %v1353
        %1452 = vmatprep.subr.mxu0 %v1357
        %1453 = vmatpush1.msra.mxu0 %v1356
        %1454 = vmatprep.subr.mxu0 %v1360
        %1455 = vmatpush1.msra.mxu0 %v1359
        %1456 = vmatprep.subr.mxu0 %v1363
        %1457 = vmatpush1.msra.mxu0 %v1362
        %1458 = vmatprep.subr.mxu0 %v1366
        %1459 = vmatpush1.msra.mxu0 %v1365
        %1460 = vmatprep.subr.mxu0 %v1369
        %1461 = vmatpush1.msra.mxu0 %v1368
        %1462 = vmatprep.subr.mxu0 %v1372
        %1463 = vmatpush1.msra.mxu0 %v1371
        %1464 = vmatprep.subr.mxu0 0.0
        %1465 = vmatpush1.msra.mxu0 0.0
        %1466 = vmatprep.subr.mxu0 0.0
        %1467 = vmatpush1.msra.mxu0 0.0
        %1468 = vmatprep.subr.mxu0 0.0
        %1469 = vmatpush1.msra.mxu0 0.0
        %1470 = vmatprep.subr.mxu0 0.0
        %1471 = vmatpush1.msra.mxu0 0.0
        %1472 = vmatprep.subr.mxu0 0.0
        %1473 = vmatpush1.msra.mxu0 0.0
        %1474 = vmatprep.subr.mxu0 0.0
        %1475 = vmatpush1.msra.mxu0 0.0
        %1476 = vmatprep.subr.mxu0 0.0
        %1477 = vmatpush1.msra.mxu0 0.0
        %1478 = vmatprep.subr.mxu0 0.0
        %1479 = vmatpush1.msra.mxu0 0.0
        %1480 = vmatprep.subr.mxu0 0.0
        %1481 = vmatpush1.msra.mxu0 0.0
        %1482 = vmatprep.subr.mxu0 0.0
        %1483 = vmatpush1.msra.mxu0 0.0
        %1484 = vmatprep.subr.mxu0 0.0
        %1485 = vmatpush1.msra.mxu0 0.0
        %1486 = vmatprep.subr.mxu0 0.0
        %1487 = vmatpush1.msra.mxu0 0.0
        %1488 = vmatprep.subr.mxu0 0.0
        %1489 = vmatpush1.msra.mxu0 0.0
        %1490 = vmatprep.subr.mxu0 0.0
        %1491 = vmatpush1.msra.mxu0 0.0
        %1492 = vmatprep.subr.mxu0 0.0
        %1493 = vmatpush1.msra.mxu0 0.0
        %1494 = vmatprep.subr.mxu0 0.0
        %1495 = vmatpush1.msra.mxu0 0.0
        %1496 = vmatprep.mubr.f32.mxu0 0.0
        %1497 = vmatmul.mubr.f32.gmra.mrb[0].mxu0 %v1430
        %v1498 = vpop.f32.mrb[0].mxu0
        %v1499 = vadd.f32 0.0, %v1498
        %v1500 = vpop.f32.mrb[0].mxu0
        %v1501 = vadd.f32 0.0, %v1500
        %1502 = vdwg.mxu0
        %1503 = vmatprep.subr.mxu0 0.0
        %1504 = vmatpush1.msra.mxu0 %v1328
        %1505 = vmatprep.subr.mxu0 0.0
        %1506 = vmatpush1.msra.mxu0 %v1331
        %1507 = vmatprep.subr.mxu0 0.0
        %1508 = vmatpush1.msra.mxu0 %v1334
        %1509 = vmatprep.subr.mxu0 0.0
        %1510 = vmatpush1.msra.mxu0 %v1337
        %1511 = vmatprep.subr.mxu0 0.0
        %1512 = vmatpush1.msra.mxu0 %v1340
        %1513 = vmatprep.subr.mxu0 0.0
        %1514 = vmatpush1.msra.mxu0 %v1343
        %1515 = vmatprep.subr.mxu0 0.0
        %1516 = vmatpush1.msra.mxu0 %v1346
        %1517 = vmatprep.subr.mxu0 0.0
        %1518 = vmatpush1.msra.mxu0 %v1349
        %1519 = vmatprep.subr.mxu0 0.0
        %1520 = vmatpush1.msra.mxu0 %v1352
        %1521 = vmatprep.subr.mxu0 0.0
        %1522 = vmatpush1.msra.mxu0 %v1355
        %1523 = vmatprep.subr.mxu0 0.0
        %1524 = vmatpush1.msra.mxu0 %v1358
        %1525 = vmatprep.subr.mxu0 0.0
        %1526 = vmatpush1.msra.mxu0 %v1361
        %1527 = vmatprep.subr.mxu0 0.0
        %1528 = vmatpush1.msra.mxu0 %v1364
        %1529 = vmatprep.subr.mxu0 0.0
        %1530 = vmatpush1.msra.mxu0 %v1367
        %1531 = vmatprep.subr.mxu0 0.0
        %1532 = vmatpush1.msra.mxu0 %v1370
        %1533 = vmatprep.subr.mxu0 0.0
        %1534 = vmatpush1.msra.mxu0 %v1373
        %1535 = vmatprep.subr.mxu0 0.0
        %1536 = vmatpush1.msra.mxu0 0.0
        %1537 = vmatprep.subr.mxu0 0.0
        %1538 = vmatpush1.msra.mxu0 0.0
        %1539 = vmatprep.subr.mxu0 0.0
        %1540 = vmatpush1.msra.mxu0 0.0
        %1541 = vmatprep.subr.mxu0 0.0
        %1542 = vmatpush1.msra.mxu0 0.0
        %1543 = vmatprep.subr.mxu0 0.0
        %1544 = vmatpush1.msra.mxu0 0.0
        %1545 = vmatprep.subr.mxu0 0.0
        %1546 = vmatpush1.msra.mxu0 0.0
        %1547 = vmatprep.subr.mxu0 0.0
        %1548 = vmatpush1.msra.mxu0 0.0
        %1549 = vmatprep.subr.mxu0 0.0
        %1550 = vmatpush1.msra.mxu0 0.0
        %1551 = vmatprep.subr.mxu0 0.0
        %1552 = vmatpush1.msra.mxu0 0.0
        %1553 = vmatprep.subr.mxu0 0.0
        %1554 = vmatpush1.msra.mxu0 0.0
        %1555 = vmatprep.subr.mxu0 0.0
        %1556 = vmatpush1.msra.mxu0 0.0
        %1557 = vmatprep.subr.mxu0 0.0
        %1558 = vmatpush1.msra.mxu0 0.0
        %1559 = vmatprep.subr.mxu0 0.0
        %1560 = vmatpush1.msra.mxu0 0.0
        %1561 = vmatprep.subr.mxu0 0.0
        %1562 = vmatpush1.msra.mxu0 0.0
        %1563 = vmatprep.subr.mxu0 0.0
        %1564 = vmatpush1.msra.mxu0 0.0
        %1565 = vmatprep.subr.mxu0 0.0
        %1566 = vmatpush1.msra.mxu0 0.0
        %1567 = vmatprep.mubr.f32.mxu0 0.0
        %1568 = vmatmul.mubr.f32.gmra.mrb[0].mxu0 %v1430
        %v1569 = vpop.f32.mrb[0].mxu0
        %v1570 = vadd.f32 0.0, %v1569
        %v1571 = vpop.f32.mrb[0].mxu0
        %1572 = vdwg.mxu0
        %v1574 = vcombine.high %v1499, %v1499
        %v1576 = vunpack.c.l.s4 1966171168
        %v1577 = vunpack.c.0.s8 %v1576
        %v1578 = vlaneseq
        %v1579 = vshrl.u32 %v1578, 7
        %v1580 = vsub.s32 %v1577, %v1579
        %v1581 = vrot.slane %v1499, %v1580
        %v1583 = vunpack.c.l.s4 1966171168
        %v1584 = vunpack.c.0.s8 %v1583
        %v1585 = vlaneseq
        %v1586 = vshrl.u32 %v1585, 7
        %v1587 = vsub.s32 %v1584, %v1586
        %v1588 = vrot.slane %v1574, %v1587
        %v1589 = vcombine.high %v1581, %v1581
        %v1590 = vcombine.high %v1588, %v1588
        %v1592 = vunpack.c.l.s4 1966171168
        %v1593 = vunpack.c.0.s8 %v1592
        %v1594 = vlaneseq
        %v1595 = vshrl.u32 %v1594, 7
        %v1596 = vsub.s32 %v1593, %v1595
        %v1597 = vrot.slane %v1581, %v1596
        %v1599 = vunpack.c.l.s4 1966171168
        %v1600 = vunpack.c.0.s8 %v1599
        %v1601 = vlaneseq
        %v1602 = vshrl.u32 %v1601, 7
        %v1603 = vsub.s32 %v1600, %v1602
        %v1604 = vrot.slane %v1588, %v1603
        %v1606 = vunpack.c.l.s4 1966171168
        %v1607 = vunpack.c.0.s8 %v1606
        %v1608 = vlaneseq
        %v1609 = vshrl.u32 %v1608, 7
        %v1610 = vsub.s32 %v1607, %v1609
        %v1611 = vrot.slane %v1589, %v1610
        %v1613 = vunpack.c.l.s4 1966171168
        %v1614 = vunpack.c.0.s8 %v1613
        %v1615 = vlaneseq
        %v1616 = vshrl.u32 %v1615, 7
        %v1617 = vsub.s32 %v1614, %v1616
        %v1618 = vrot.slane %v1590, %v1617
        %v1619 = vcombine.high %v1597, %v1597
        %v1620 = vcombine.high %v1604, %v1604
        %v1621 = vcombine.high %v1611, %v1611
        %v1622 = vcombine.high %v1618, %v1618
        %v1631 = vadd.f32 %v1311, %v1597
        %v1632 = vadd.f32 %v1313, %v1611
        %v1633 = vadd.f32 %v1315, %v1619
        %v1634 = vadd.f32 %v1317, %v1621
        %v1635 = vadd.f32 %v1319, %v1604
        %v1636 = vadd.f32 %v1321, %v1618
        %v1637 = vadd.f32 %v1323, %v1620
        %v1638 = vadd.f32 %v1325, %v1622
        %v1639 = vxor.u32 %v1631, 2147483648
        %v1640 = vxor.u32 %v1632, 2147483648
        %v1641 = vxor.u32 %v1633, 2147483648
        %v1642 = vxor.u32 %v1634, 2147483648
        %v1643 = vxor.u32 %v1635, 2147483648
        %v1644 = vxor.u32 %v1636, 2147483648
        %v1645 = vxor.u32 %v1637, 2147483648
        %v1646 = vxor.u32 %v1638, 2147483648
        %v1647 = vmul.f32 %v1639, 1.442695
        %v1648 = vpow.pop %v1647
        %v1649 = vmul.f32 %v1640, 1.442695
        %v1650 = vpow.pop %v1649
        %v1651 = vmul.f32 %v1641, 1.442695
        %v1652 = vpow.pop %v1651
        %v1653 = vmul.f32 %v1642, 1.442695
        %v1654 = vpow.pop %v1653
        %v1655 = vmul.f32 %v1643, 1.442695
        %v1656 = vpow.pop %v1655
        %v1657 = vmul.f32 %v1644, 1.442695
        %v1658 = vpow.pop %v1657
        %v1659 = vmul.f32 %v1645, 1.442695
        %v1660 = vpow.pop %v1659
        %v1661 = vmul.f32 %v1646, 1.442695
        %v1662 = vpow.pop %v1661
        %v1663 = vadd.f32 %v1648, 1.0
        %v1664 = vadd.f32 %v1650, 1.0
        %v1665 = vadd.f32 %v1652, 1.0
        %v1666 = vadd.f32 %v1654, 1.0
        %v1667 = vadd.f32 %v1656, 1.0
        %v1668 = vadd.f32 %v1658, 1.0
        %v1669 = vadd.f32 %v1660, 1.0
        %v1670 = vadd.f32 %v1662, 1.0
        %v1671 = vrcp.pop %v1663
        %v1672 = vmul.f32 1.0, %v1671
        %v1673 = vrcp.pop %v1664
        %v1674 = vmul.f32 1.0, %v1673
        %v1675 = vrcp.pop %v1665
        %v1676 = vmul.f32 1.0, %v1675
        %v1677 = vrcp.pop %v1666
        %v1678 = vmul.f32 1.0, %v1677
        %v1679 = vrcp.pop %v1667
        %v1680 = vmul.f32 1.0, %v1679
        %v1681 = vrcp.pop %v1668
        %v1682 = vmul.f32 1.0, %v1681
        %v1683 = vrcp.pop %v1669
        %v1684 = vmul.f32 1.0, %v1683
        %v1685 = vrcp.pop %v1670
        %v1686 = vmul.f32 1.0, %v1685
        %v1695 = vrot.slane %v1311, 1
        %v1696 = vrot.slane %v1313, 1
        %v1697 = vrot.slane %v1315, 1
        %v1698 = vrot.slane %v1317, 1
        %v1699 = vrot.slane %v1319, 1
        %v1700 = vrot.slane %v1321, 1
        %v1701 = vrot.slane %v1323, 1
        %v1702 = vrot.slane %v1325, 1
        %v1712 = vcombine.high %v1501, %v1501
        %v1714 = vunpack.c.l.s4 1966171168
        %v1715 = vunpack.c.0.s8 %v1714
        %v1716 = vlaneseq
        %v1717 = vshrl.u32 %v1716, 7
        %v1718 = vsub.s32 %v1715, %v1717
        %v1719 = vrot.slane %v1501, %v1718
        %v1721 = vunpack.c.l.s4 1966171168
        %v1722 = vunpack.c.0.s8 %v1721
        %v1723 = vlaneseq
        %v1724 = vshrl.u32 %v1723, 7
        %v1725 = vsub.s32 %v1722, %v1724
        %v1726 = vrot.slane %v1712, %v1725
        %v1727 = vcombine.high %v1719, %v1719
        %v1728 = vcombine.high %v1726, %v1726
        %v1730 = vunpack.c.l.s4 1966171168
        %v1731 = vunpack.c.0.s8 %v1730
        %v1732 = vlaneseq
        %v1733 = vshrl.u32 %v1732, 7
        %v1734 = vsub.s32 %v1731, %v1733
        %v1735 = vrot.slane %v1719, %v1734
        %v1737 = vunpack.c.l.s4 1966171168
        %v1738 = vunpack.c.0.s8 %v1737
        %v1739 = vlaneseq
        %v1740 = vshrl.u32 %v1739, 7
        %v1741 = vsub.s32 %v1738, %v1740
        %v1742 = vrot.slane %v1726, %v1741
        %v1744 = vunpack.c.l.s4 1966171168
        %v1745 = vunpack.c.0.s8 %v1744
        %v1746 = vlaneseq
        %v1747 = vshrl.u32 %v1746, 7
        %v1748 = vsub.s32 %v1745, %v1747
        %v1749 = vrot.slane %v1727, %v1748
        %v1751 = vunpack.c.l.s4 1966171168
        %v1752 = vunpack.c.0.s8 %v1751
        %v1753 = vlaneseq
        %v1754 = vshrl.u32 %v1753, 7
        %v1755 = vsub.s32 %v1752, %v1754
        %v1756 = vrot.slane %v1728, %v1755
        %v1757 = vcombine.high %v1735, %v1735
        %v1758 = vcombine.high %v1742, %v1742
        %v1759 = vcombine.high %v1749, %v1749
        %v1760 = vcombine.high %v1756, %v1756
        %v1769 = vadd.f32 %v1695, %v1735
        %v1770 = vadd.f32 %v1696, %v1749
        %v1771 = vadd.f32 %v1697, %v1757
        %v1772 = vadd.f32 %v1698, %v1759
        %v1773 = vadd.f32 %v1699, %v1742
        %v1774 = vadd.f32 %v1700, %v1756
        %v1775 = vadd.f32 %v1701, %v1758
        %v1776 = vadd.f32 %v1702, %v1760
        %v1777 = vxor.u32 %v1769, 2147483648
        %v1778 = vxor.u32 %v1770, 2147483648
        %v1779 = vxor.u32 %v1771, 2147483648
        %v1780 = vxor.u32 %v1772, 2147483648
        %v1781 = vxor.u32 %v1773, 2147483648
        %v1782 = vxor.u32 %v1774, 2147483648
        %v1783 = vxor.u32 %v1775, 2147483648
        %v1784 = vxor.u32 %v1776, 2147483648
        %v1785 = vmul.f32 %v1777, 1.442695
        %v1786 = vpow.pop %v1785
        %v1787 = vmul.f32 %v1778, 1.442695
        %v1788 = vpow.pop %v1787
        %v1789 = vmul.f32 %v1779, 1.442695
        %v1790 = vpow.pop %v1789
        %v1791 = vmul.f32 %v1780, 1.442695
        %v1792 = vpow.pop %v1791
        %v1793 = vmul.f32 %v1781, 1.442695
        %v1794 = vpow.pop %v1793
        %v1795 = vmul.f32 %v1782, 1.442695
        %v1796 = vpow.pop %v1795
        %v1797 = vmul.f32 %v1783, 1.442695
        %v1798 = vpow.pop %v1797
        %v1799 = vmul.f32 %v1784, 1.442695
        %v1800 = vpow.pop %v1799
        %v1801 = vadd.f32 %v1786, 1.0
        %v1802 = vadd.f32 %v1788, 1.0
        %v1803 = vadd.f32 %v1790, 1.0
        %v1804 = vadd.f32 %v1792, 1.0
        %v1805 = vadd.f32 %v1794, 1.0
        %v1806 = vadd.f32 %v1796, 1.0
        %v1807 = vadd.f32 %v1798, 1.0
        %v1808 = vadd.f32 %v1800, 1.0
        %v1809 = vrcp.pop %v1801
        %v1810 = vmul.f32 1.0, %v1809
        %v1811 = vrcp.pop %v1802
        %v1812 = vmul.f32 1.0, %v1811
        %v1813 = vrcp.pop %v1803
        %v1814 = vmul.f32 1.0, %v1813
        %v1815 = vrcp.pop %v1804
        %v1816 = vmul.f32 1.0, %v1815
        %v1817 = vrcp.pop %v1805
        %v1818 = vmul.f32 1.0, %v1817
        %v1819 = vrcp.pop %v1806
        %v1820 = vmul.f32 1.0, %v1819
        %v1821 = vrcp.pop %v1807
        %v1822 = vmul.f32 1.0, %v1821
        %v1823 = vrcp.pop %v1808
        %v1824 = vmul.f32 1.0, %v1823
        %v1825 = vadd.f32 %v1570, %v654
        %v1827 = vcombine.high %v1825, %v1825
        %v1829 = vunpack.c.l.s4 1966171168
        %v1830 = vunpack.c.0.s8 %v1829
        %v1831 = vlaneseq
        %v1832 = vshrl.u32 %v1831, 7
        %v1833 = vsub.s32 %v1830, %v1832
        %v1834 = vrot.slane %v1825, %v1833
        %v1836 = vunpack.c.l.s4 1966171168
        %v1837 = vunpack.c.0.s8 %v1836
        %v1838 = vlaneseq
        %v1839 = vshrl.u32 %v1838, 7
        %v1840 = vsub.s32 %v1837, %v1839
        %v1841 = vrot.slane %v1827, %v1840
        %v1842 = vcombine.high %v1834, %v1834
        %v1843 = vcombine.high %v1841, %v1841
        %v1845 = vunpack.c.l.s4 1966171168
        %v1846 = vunpack.c.0.s8 %v1845
        %v1847 = vlaneseq
        %v1848 = vshrl.u32 %v1847, 7
        %v1849 = vsub.s32 %v1846, %v1848
        %v1850 = vrot.slane %v1834, %v1849
        %v1852 = vunpack.c.l.s4 1966171168
        %v1853 = vunpack.c.0.s8 %v1852
        %v1854 = vlaneseq
        %v1855 = vshrl.u32 %v1854, 7
        %v1856 = vsub.s32 %v1853, %v1855
        %v1857 = vrot.slane %v1841, %v1856
        %v1859 = vunpack.c.l.s4 1966171168
        %v1860 = vunpack.c.0.s8 %v1859
        %v1861 = vlaneseq
        %v1862 = vshrl.u32 %v1861, 7
        %v1863 = vsub.s32 %v1860, %v1862
        %v1864 = vrot.slane %v1842, %v1863
        %v1866 = vunpack.c.l.s4 1966171168
        %v1867 = vunpack.c.0.s8 %v1866
        %v1868 = vlaneseq
        %v1869 = vshrl.u32 %v1868, 7
        %v1870 = vsub.s32 %v1867, %v1869
        %v1871 = vrot.slane %v1843, %v1870
        %v1872 = vcombine.high %v1850, %v1850
        %v1873 = vcombine.high %v1857, %v1857
        %v1874 = vcombine.high %v1864, %v1864
        %v1875 = vcombine.high %v1871, %v1871
        %v1884 = vmul.f32 %v1672, %v1850
        %v1885 = vmul.f32 %v1674, %v1864
        %v1886 = vmul.f32 %v1676, %v1872
        %v1887 = vmul.f32 %v1678, %v1874
        %v1888 = vmul.f32 %v1680, %v1857
        %v1889 = vmul.f32 %v1682, %v1871
        %v1890 = vmul.f32 %v1684, %v1873
        %v1891 = vmul.f32 %v1686, %v1875
        %v1892 = vrot.slane %v1311, 2
        %v1893 = vrot.slane %v1313, 2
        %v1894 = vrot.slane %v1315, 2
        %v1895 = vrot.slane %v1317, 2
        %v1896 = vrot.slane %v1319, 2
        %v1897 = vrot.slane %v1321, 2
        %v1898 = vrot.slane %v1323, 2
        %v1899 = vrot.slane %v1325, 2
        %v1908 = vadd.f32 %v1892, %v1884
        %v1909 = vadd.f32 %v1893, %v1885
        %v1910 = vadd.f32 %v1894, %v1886
        %v1911 = vadd.f32 %v1895, %v1887
        %v1912 = vadd.f32 %v1896, %v1888
        %v1913 = vadd.f32 %v1897, %v1889
        %v1914 = vadd.f32 %v1898, %v1890
        %v1915 = vadd.f32 %v1899, %v1891
        %v1916 = vtanh.pop %v1908
        %v1917 = vtanh.pop %v1909
        %v1918 = vtanh.pop %v1910
        %v1919 = vtanh.pop %v1911
        %v1920 = vtanh.pop %v1912
        %v1921 = vtanh.pop %v1913
        %v1922 = vtanh.pop %v1914
        %v1923 = vtanh.pop %v1915
        %v1924 = vsub.f32 1.0, %v1810
        %v1925 = vsub.f32 1.0, %v1812
        %v1926 = vsub.f32 1.0, %v1814
        %v1927 = vsub.f32 1.0, %v1816
        %v1928 = vsub.f32 1.0, %v1818
        %v1929 = vsub.f32 1.0, %v1820
        %v1930 = vsub.f32 1.0, %v1822
        %v1931 = vsub.f32 1.0, %v1824
        %v1932 = vmul.f32 %v1924, %v1916
        %v1933 = vmul.f32 %v1925, %v1917
        %v1934 = vmul.f32 %v1926, %v1918
        %v1935 = vmul.f32 %v1927, %v1919
        %v1936 = vmul.f32 %v1928, %v1920
        %v1937 = vmul.f32 %v1929, %v1921
        %v1938 = vmul.f32 %v1930, %v1922
        %v1939 = vmul.f32 %v1931, %v1923
        %v1940 = vmul.f32 %v1810, %v1294
        %v1941 = vmul.f32 %v1812, %v1295
        %v1942 = vmul.f32 %v1814, %v1296
        %v1943 = vmul.f32 %v1816, %v1297
        %v1944 = vmul.f32 %v1818, %v1298
        %v1945 = vmul.f32 %v1820, %v1299
        %v1946 = vmul.f32 %v1822, %v1300
        %v1947 = vmul.f32 %v1824, %v1301
        %v1948 = vadd.f32 %v1932, %v1940
        %v1949 = vadd.f32 %v1933, %v1941
        %v1950 = vadd.f32 %v1934, %v1942
        %v1951 = vadd.f32 %v1935, %v1943
        %v1952 = vadd.f32 %v1936, %v1944
        %v1953 = vadd.f32 %v1937, %v1945
        %v1954 = vadd.f32 %v1938, %v1946
        %v1955 = vadd.f32 %v1939, %v1947
        %1956 = vst [vmem:[#allocation4 + $0x1] sm:$0x1] %v1948
        %1957 = vst [vmem:[#allocation4 + $0x9] sm:$0x1] %v1949
        %1958 = vst [vmem:[#allocation4 + $0x11] sm:$0x1] %v1950
        %1959 = vst [vmem:[#allocation4 + $0x19] sm:$0x1] %v1951
        %1960 = vst [vmem:[#allocation4 + $0x21] sm:$0x1] %v1952
        %1961 = vst [vmem:[#allocation4 + $0x29] sm:$0x1] %v1953
        %1962 = vst [vmem:[#allocation4 + $0x31] sm:$0x1] %v1954
        %1963 = vst [vmem:[#allocation4 + $0x39] sm:$0x1] %v1955
        %s1964 = scalar_lea.vmem [#allocation3], 2
        %v1965 = vld [vmem:[%s1964] ss:$8 sm:$0x7]
        %s1966 = scalar_lea.vmem [#allocation3], 26
        %v1967 = vld [vmem:[%s1966] ss:$8 sm:$0x7]
        %s1968 = scalar_lea.vmem [#allocation3], 50
        %v1969 = vld [vmem:[%s1968] ss:$8 sm:$0x7]
        %s1970 = scalar_lea.vmem [#allocation3], 74
        %v1971 = vld [vmem:[%s1970] ss:$8 sm:$0x7]
        %s1972 = scalar_lea.vmem [#allocation3], 98
        %v1973 = vld [vmem:[%s1972] ss:$8 sm:$0x7]
        %s1974 = scalar_lea.vmem [#allocation3], 122
        %v1975 = vld [vmem:[%s1974] ss:$8 sm:$0x7]
        %s1976 = scalar_lea.vmem [#allocation3], 146
        %v1977 = vld [vmem:[%s1976] ss:$8 sm:$0x7]
        %s1978 = scalar_lea.vmem [#allocation3], 170
        %v1979 = vld [vmem:[%s1978] ss:$8 sm:$0x7]
        %v1980 = vld [vmem:[%s2] sm:$0xff]
        %v1981 = vld [vmem:[%s2 + $0x8] sm:$0xff]
        %v1982 = vld [vmem:[%s2 + $0x10] sm:$0xff]
        %v1983 = vld [vmem:[%s2 + $0x18] sm:$0xff]
        %v1984 = vld [vmem:[%s2 + $0x20] sm:$0xff]
        %v1985 = vld [vmem:[%s2 + $0x28] sm:$0xff]
        %v1986 = vld [vmem:[%s2 + $0x30] sm:$0xff]
        %v1987 = vld [vmem:[%s2 + $0x38] sm:$0xff]
        %v1988 = vld [vmem:[%s2 + $0x40] sm:$0xff]
        %v1989 = vld [vmem:[%s2 + $0x48] sm:$0xff]
        %v1990 = vld [vmem:[%s2 + $0x50] sm:$0xff]
        %v1991 = vld [vmem:[%s2 + $0x58] sm:$0xff]
        %v1992 = vld [vmem:[%s2 + $0x60] sm:$0xff]
        %v1993 = vld [vmem:[%s2 + $0x68] sm:$0xff]
        %v1994 = vld [vmem:[%s2 + $0x70] sm:$0xff]
        %v1995 = vld [vmem:[%s2 + $0x78] sm:$0xff]
        %v1996 = vld [vmem:[%s2 + $0x80] sm:$0xff]
        %v1997 = vld [vmem:[%s2 + $0x88] sm:$0xff]
        %v1998 = vld [vmem:[%s2 + $0x90] sm:$0xff]
        %v1999 = vld [vmem:[%s2 + $0x98] sm:$0xff]
        %v2000 = vld [vmem:[%s2 + $0xa0] sm:$0xff]
        %v2001 = vld [vmem:[%s2 + $0xa8] sm:$0xff]
        %v2002 = vld [vmem:[%s2 + $0xb0] sm:$0xff]
        %v2003 = vld [vmem:[%s2 + $0xb8] sm:$0xff]
        %v2004 = vld [vmem:[%s2 + $0xc0] sm:$0xff]
        %v2005 = vld [vmem:[%s2 + $0xc8] sm:$0xff]
        %v2006 = vld [vmem:[%s2 + $0xd0] sm:$0xff]
        %v2007 = vld [vmem:[%s2 + $0xd8] sm:$0xff]
        %v2008 = vld [vmem:[%s2 + $0xe0] sm:$0xff]
        %v2009 = vld [vmem:[%s2 + $0xe8] sm:$0xff]
        %v2010 = vld [vmem:[%s2 + $0xf0] sm:$0xff]
        %v2011 = vld [vmem:[%s2 + $0xf8] sm:$0xff]
        %v2012 = vld [vmem:[%s2 + $0x100] sm:$0xff]
        %v2013 = vld [vmem:[%s2 + $0x108] sm:$0xff]
        %v2014 = vld [vmem:[%s2 + $0x110] sm:$0xff]
        %v2015 = vld [vmem:[%s2 + $0x118] sm:$0xff]
        %v2016 = vld [vmem:[%s2 + $0x120] sm:$0xff]
        %v2017 = vld [vmem:[%s2 + $0x128] sm:$0xff]
        %v2018 = vld [vmem:[%s2 + $0x130] sm:$0xff]
        %v2019 = vld [vmem:[%s2 + $0x138] sm:$0xff]
        %v2020 = vld [vmem:[%s2 + $0x140] sm:$0xff]
        %v2021 = vld [vmem:[%s2 + $0x148] sm:$0xff]
        %v2022 = vld [vmem:[%s2 + $0x150] sm:$0xff]
        %v2023 = vld [vmem:[%s2 + $0x158] sm:$0xff]
        %v2024 = vld [vmem:[%s2 + $0x160] sm:$0xff]
        %v2025 = vld [vmem:[%s2 + $0x168] sm:$0xff]
        %v2026 = vld [vmem:[%s2 + $0x170] sm:$0xff]
        %v2027 = vld [vmem:[%s2 + $0x178] sm:$0xff]
        %v2036 = vcombine.low %v1948, %v1949
        %v2037 = vcombine.low %v1950, %v1951
        %v2038 = vcombine.low %v1952, %v1953
        %v2039 = vcombine.low %v1954, %v1955
        %v2041 = vunpack.c.l.s4 1966171168
        %v2042 = vunpack.c.0.s8 %v2041
        %v2043 = vlaneseq
        %v2044 = vshrl.u32 %v2043, 7
        %v2045 = vsub.s32 %v2042, %v2044
        %v2046 = vrot.slane %v2036, %v2045
        %v2048 = vunpack.c.l.s4 1966171168
        %v2049 = vunpack.c.0.s8 %v2048
        %v2050 = vlaneseq
        %v2051 = vshrl.u32 %v2050, 7
        %v2052 = vsub.s32 %v2049, %v2051
        %v2053 = vrot.slane %v2037, %v2052
        %v2055 = vunpack.c.l.s4 1966171168
        %v2056 = vunpack.c.0.s8 %v2055
        %v2057 = vlaneseq
        %v2058 = vshrl.u32 %v2057, 7
        %v2059 = vsub.s32 %v2056, %v2058
        %v2060 = vrot.slane %v2038, %v2059
        %v2062 = vunpack.c.l.s4 1966171168
        %v2063 = vunpack.c.0.s8 %v2062
        %v2064 = vlaneseq
        %v2065 = vshrl.u32 %v2064, 7
        %v2066 = vsub.s32 %v2063, %v2065
        %v2067 = vrot.slane %v2039, %v2066
        %v2068 = vcombine.low %v2046, %v2053
        %v2069 = vcombine.low %v2060, %v2067
        %v2071 = vunpack.c.l.s4 1966171168
        %v2072 = vunpack.c.0.s8 %v2071
        %v2073 = vlaneseq
        %v2074 = vshrl.u32 %v2073, 7
        %v2075 = vsub.s32 %v2072, %v2074
        %v2076 = vrot.slane %v2068, %v2075
        %v2078 = vunpack.c.l.s4 1966171168
        %v2079 = vunpack.c.0.s8 %v2078
        %v2080 = vlaneseq
        %v2081 = vshrl.u32 %v2080, 7
        %v2082 = vsub.s32 %v2079, %v2081
        %v2083 = vrot.slane %v2069, %v2082
        %v2084 = vcombine.low %v2076, %v2083
        %2086 = vmatprep.subr.mxu0 %v1981
        %2087 = vmatpush1.msra.mxu0 %v1980
        %2088 = vmatprep.subr.mxu0 %v1984
        %2089 = vmatpush1.msra.mxu0 %v1983
        %2090 = vmatprep.subr.mxu0 %v1987
        %2091 = vmatpush1.msra.mxu0 %v1986
        %2092 = vmatprep.subr.mxu0 %v1990
        %2093 = vmatpush1.msra.mxu0 %v1989
        %2094 = vmatprep.subr.mxu0 %v1993
        %2095 = vmatpush1.msra.mxu0 %v1992
        %2096 = vmatprep.subr.mxu0 %v1996
        %2097 = vmatpush1.msra.mxu0 %v1995
        %2098 = vmatprep.subr.mxu0 %v1999
        %2099 = vmatpush1.msra.mxu0 %v1998
        %2100 = vmatprep.subr.mxu0 %v2002
        %2101 = vmatpush1.msra.mxu0 %v2001
        %2102 = vmatprep.subr.mxu0 %v2005
        %2103 = vmatpush1.msra.mxu0 %v2004
        %2104 = vmatprep.subr.mxu0 %v2008
        %2105 = vmatpush1.msra.mxu0 %v2007
        %2106 = vmatprep.subr.mxu0 %v2011
        %2107 = vmatpush1.msra.mxu0 %v2010
        %2108 = vmatprep.subr.mxu0 %v2014
        %2109 = vmatpush1.msra.mxu0 %v2013
        %2110 = vmatprep.subr.mxu0 %v2017
        %2111 = vmatpush1.msra.mxu0 %v2016
        %2112 = vmatprep.subr.mxu0 %v2020
        %2113 = vmatpush1.msra.mxu0 %v2019
        %2114 = vmatprep.subr.mxu0 %v2023
        %2115 = vmatpush1.msra.mxu0 %v2022
        %2116 = vmatprep.subr.mxu0 %v2026
        %2117 = vmatpush1.msra.mxu0 %v2025
        %2118 = vmatprep.subr.mxu0 0.0
        %2119 = vmatpush1.msra.mxu0 0.0
        %2120 = vmatprep.subr.mxu0 0.0
        %2121 = vmatpush1.msra.mxu0 0.0
        %2122 = vmatprep.subr.mxu0 0.0
        %2123 = vmatpush1.msra.mxu0 0.0
        %2124 = vmatprep.subr.mxu0 0.0
        %2125 = vmatpush1.msra.mxu0 0.0
        %2126 = vmatprep.subr.mxu0 0.0
        %2127 = vmatpush1.msra.mxu0 0.0
        %2128 = vmatprep.subr.mxu0 0.0
        %2129 = vmatpush1.msra.mxu0 0.0
        %2130 = vmatprep.subr.mxu0 0.0
        %2131 = vmatpush1.msra.mxu0 0.0
        %2132 = vmatprep.subr.mxu0 0.0
        %2133 = vmatpush1.msra.mxu0 0.0
        %2134 = vmatprep.subr.mxu0 0.0
        %2135 = vmatpush1.msra.mxu0 0.0
        %2136 = vmatprep.subr.mxu0 0.0
        %2137 = vmatpush1.msra.mxu0 0.0
        %2138 = vmatprep.subr.mxu0 0.0
        %2139 = vmatpush1.msra.mxu0 0.0
        %2140 = vmatprep.subr.mxu0 0.0
        %2141 = vmatpush1.msra.mxu0 0.0
        %2142 = vmatprep.subr.mxu0 0.0
        %2143 = vmatpush1.msra.mxu0 0.0
        %2144 = vmatprep.subr.mxu0 0.0
        %2145 = vmatpush1.msra.mxu0 0.0
        %2146 = vmatprep.subr.mxu0 0.0
        %2147 = vmatpush1.msra.mxu0 0.0
        %2148 = vmatprep.subr.mxu0 0.0
        %2149 = vmatpush1.msra.mxu0 0.0
        %2150 = vmatprep.mubr.f32.mxu0 0.0
        %2151 = vmatmul.mubr.f32.gmra.mrb[0].mxu0 %v2084
        %v2152 = vpop.f32.mrb[0].mxu0
        %v2153 = vadd.f32 0.0, %v2152
        %v2154 = vpop.f32.mrb[0].mxu0
        %v2155 = vadd.f32 0.0, %v2154
        %2156 = vdwg.mxu0
        %2157 = vmatprep.subr.mxu0 0.0
        %2158 = vmatpush1.msra.mxu0 %v1982
        %2159 = vmatprep.subr.mxu0 0.0
        %2160 = vmatpush1.msra.mxu0 %v1985
        %2161 = vmatprep.subr.mxu0 0.0
        %2162 = vmatpush1.msra.mxu0 %v1988
        %2163 = vmatprep.subr.mxu0 0.0
        %2164 = vmatpush1.msra.mxu0 %v1991
        %2165 = vmatprep.subr.mxu0 0.0
        %2166 = vmatpush1.msra.mxu0 %v1994
        %2167 = vmatprep.subr.mxu0 0.0
        %2168 = vmatpush1.msra.mxu0 %v1997
        %2169 = vmatprep.subr.mxu0 0.0
        %2170 = vmatpush1.msra.mxu0 %v2000
        %2171 = vmatprep.subr.mxu0 0.0
        %2172 = vmatpush1.msra.mxu0 %v2003
        %2173 = vmatprep.subr.mxu0 0.0
        %2174 = vmatpush1.msra.mxu0 %v2006
        %2175 = vmatprep.subr.mxu0 0.0
        %2176 = vmatpush1.msra.mxu0 %v2009
        %2177 = vmatprep.subr.mxu0 0.0
        %2178 = vmatpush1.msra.mxu0 %v2012
        %2179 = vmatprep.subr.mxu0 0.0
        %2180 = vmatpush1.msra.mxu0 %v2015
        %2181 = vmatprep.subr.mxu0 0.0
        %2182 = vmatpush1.msra.mxu0 %v2018
        %2183 = vmatprep.subr.mxu0 0.0
        %2184 = vmatpush1.msra.mxu0 %v2021
        %2185 = vmatprep.subr.mxu0 0.0
        %2186 = vmatpush1.msra.mxu0 %v2024
        %2187 = vmatprep.subr.mxu0 0.0
        %2188 = vmatpush1.msra.mxu0 %v2027
        %2189 = vmatprep.subr.mxu0 0.0
        %2190 = vmatpush1.msra.mxu0 0.0
        %2191 = vmatprep.subr.mxu0 0.0
        %2192 = vmatpush1.msra.mxu0 0.0
        %2193 = vmatprep.subr.mxu0 0.0
        %2194 = vmatpush1.msra.mxu0 0.0
        %2195 = vmatprep.subr.mxu0 0.0
        %2196 = vmatpush1.msra.mxu0 0.0
        %2197 = vmatprep.subr.mxu0 0.0
        %2198 = vmatpush1.msra.mxu0 0.0
        %2199 = vmatprep.subr.mxu0 0.0
        %2200 = vmatpush1.msra.mxu0 0.0
        %2201 = vmatprep.subr.mxu0 0.0
        %2202 = vmatpush1.msra.mxu0 0.0
        %2203 = vmatprep.subr.mxu0 0.0
        %2204 = vmatpush1.msra.mxu0 0.0
        %2205 = vmatprep.subr.mxu0 0.0
        %2206 = vmatpush1.msra.mxu0 0.0
        %2207 = vmatprep.subr.mxu0 0.0
        %2208 = vmatpush1.msra.mxu0 0.0
        %2209 = vmatprep.subr.mxu0 0.0
        %2210 = vmatpush1.msra.mxu0 0.0
        %2211 = vmatprep.subr.mxu0 0.0
        %2212 = vmatpush1.msra.mxu0 0.0
        %2213 = vmatprep.subr.mxu0 0.0
        %2214 = vmatpush1.msra.mxu0 0.0
        %2215 = vmatprep.subr.mxu0 0.0
        %2216 = vmatpush1.msra.mxu0 0.0
        %2217 = vmatprep.subr.mxu0 0.0
        %2218 = vmatpush1.msra.mxu0 0.0
        %2219 = vmatprep.subr.mxu0 0.0
        %2220 = vmatpush1.msra.mxu0 0.0
        %2221 = vmatprep.mubr.f32.mxu0 0.0
        %2222 = vmatmul.mubr.f32.gmra.mrb[0].mxu0 %v2084
        %v2223 = vpop.f32.mrb[0].mxu0
        %v2224 = vadd.f32 0.0, %v2223
        %v2225 = vpop.f32.mrb[0].mxu0
        %2226 = vdwg.mxu0
        %v2228 = vcombine.high %v2153, %v2153
        %v2230 = vunpack.c.l.s4 1966171168
        %v2231 = vunpack.c.0.s8 %v2230
        %v2232 = vlaneseq
        %v2233 = vshrl.u32 %v2232, 7
        %v2234 = vsub.s32 %v2231, %v2233
        %v2235 = vrot.slane %v2153, %v2234
        %v2237 = vunpack.c.l.s4 1966171168
        %v2238 = vunpack.c.0.s8 %v2237
        %v2239 = vlaneseq
        %v2240 = vshrl.u32 %v2239, 7
        %v2241 = vsub.s32 %v2238, %v2240
        %v2242 = vrot.slane %v2228, %v2241
        %v2243 = vcombine.high %v2235, %v2235
        %v2244 = vcombine.high %v2242, %v2242
        %v2246 = vunpack.c.l.s4 1966171168
        %v2247 = vunpack.c.0.s8 %v2246
        %v2248 = vlaneseq
        %v2249 = vshrl.u32 %v2248, 7
        %v2250 = vsub.s32 %v2247, %v2249
        %v2251 = vrot.slane %v2235, %v2250
        %v2253 = vunpack.c.l.s4 1966171168
        %v2254 = vunpack.c.0.s8 %v2253
        %v2255 = vlaneseq
        %v2256 = vshrl.u32 %v2255, 7
        %v2257 = vsub.s32 %v2254, %v2256
        %v2258 = vrot.slane %v2242, %v2257
        %v2260 = vunpack.c.l.s4 1966171168
        %v2261 = vunpack.c.0.s8 %v2260
        %v2262 = vlaneseq
        %v2263 = vshrl.u32 %v2262, 7
        %v2264 = vsub.s32 %v2261, %v2263
        %v2265 = vrot.slane %v2243, %v2264
        %v2267 = vunpack.c.l.s4 1966171168
        %v2268 = vunpack.c.0.s8 %v2267
        %v2269 = vlaneseq
        %v2270 = vshrl.u32 %v2269, 7
        %v2271 = vsub.s32 %v2268, %v2270
        %v2272 = vrot.slane %v2244, %v2271
        %v2273 = vcombine.high %v2251, %v2251
        %v2274 = vcombine.high %v2258, %v2258
        %v2275 = vcombine.high %v2265, %v2265
        %v2276 = vcombine.high %v2272, %v2272
        %v2285 = vadd.f32 %v1965, %v2251
        %v2286 = vadd.f32 %v1967, %v2265
        %v2287 = vadd.f32 %v1969, %v2273
        %v2288 = vadd.f32 %v1971, %v2275
        %v2289 = vadd.f32 %v1973, %v2258
        %v2290 = vadd.f32 %v1975, %v2272
        %v2291 = vadd.f32 %v1977, %v2274
        %v2292 = vadd.f32 %v1979, %v2276
        %v2293 = vxor.u32 %v2285, 2147483648
        %v2294 = vxor.u32 %v2286, 2147483648
        %v2295 = vxor.u32 %v2287, 2147483648
        %v2296 = vxor.u32 %v2288, 2147483648
        %v2297 = vxor.u32 %v2289, 2147483648
        %v2298 = vxor.u32 %v2290, 2147483648
        %v2299 = vxor.u32 %v2291, 2147483648
        %v2300 = vxor.u32 %v2292, 2147483648
        %v2301 = vmul.f32 %v2293, 1.442695
        %v2302 = vpow.pop %v2301
        %v2303 = vmul.f32 %v2294, 1.442695
        %v2304 = vpow.pop %v2303
        %v2305 = vmul.f32 %v2295, 1.442695
        %v2306 = vpow.pop %v2305
        %v2307 = vmul.f32 %v2296, 1.442695
        %v2308 = vpow.pop %v2307
        %v2309 = vmul.f32 %v2297, 1.442695
        %v2310 = vpow.pop %v2309
        %v2311 = vmul.f32 %v2298, 1.442695
        %v2312 = vpow.pop %v2311
        %v2313 = vmul.f32 %v2299, 1.442695
        %v2314 = vpow.pop %v2313
        %v2315 = vmul.f32 %v2300, 1.442695
        %v2316 = vpow.pop %v2315
        %v2317 = vadd.f32 %v2302, 1.0
        %v2318 = vadd.f32 %v2304, 1.0
        %v2319 = vadd.f32 %v2306, 1.0
        %v2320 = vadd.f32 %v2308, 1.0
        %v2321 = vadd.f32 %v2310, 1.0
        %v2322 = vadd.f32 %v2312, 1.0
        %v2323 = vadd.f32 %v2314, 1.0
        %v2324 = vadd.f32 %v2316, 1.0
        %v2325 = vrcp.pop %v2317
        %v2326 = vmul.f32 1.0, %v2325
        %v2327 = vrcp.pop %v2318
        %v2328 = vmul.f32 1.0, %v2327
        %v2329 = vrcp.pop %v2319
        %v2330 = vmul.f32 1.0, %v2329
        %v2331 = vrcp.pop %v2320
        %v2332 = vmul.f32 1.0, %v2331
        %v2333 = vrcp.pop %v2321
        %v2334 = vmul.f32 1.0, %v2333
        %v2335 = vrcp.pop %v2322
        %v2336 = vmul.f32 1.0, %v2335
        %v2337 = vrcp.pop %v2323
        %v2338 = vmul.f32 1.0, %v2337
        %v2339 = vrcp.pop %v2324
        %v2340 = vmul.f32 1.0, %v2339
        %v2349 = vrot.slane %v1965, 1
        %v2350 = vrot.slane %v1967, 1
        %v2351 = vrot.slane %v1969, 1
        %v2352 = vrot.slane %v1971, 1
        %v2353 = vrot.slane %v1973, 1
        %v2354 = vrot.slane %v1975, 1
        %v2355 = vrot.slane %v1977, 1
        %v2356 = vrot.slane %v1979, 1
        %v2366 = vcombine.high %v2155, %v2155
        %v2368 = vunpack.c.l.s4 1966171168
        %v2369 = vunpack.c.0.s8 %v2368
        %v2370 = vlaneseq
        %v2371 = vshrl.u32 %v2370, 7
        %v2372 = vsub.s32 %v2369, %v2371
        %v2373 = vrot.slane %v2155, %v2372
        %v2375 = vunpack.c.l.s4 1966171168
        %v2376 = vunpack.c.0.s8 %v2375
        %v2377 = vlaneseq
        %v2378 = vshrl.u32 %v2377, 7
        %v2379 = vsub.s32 %v2376, %v2378
        %v2380 = vrot.slane %v2366, %v2379
        %v2381 = vcombine.high %v2373, %v2373
        %v2382 = vcombine.high %v2380, %v2380
        %v2384 = vunpack.c.l.s4 1966171168
        %v2385 = vunpack.c.0.s8 %v2384
        %v2386 = vlaneseq
        %v2387 = vshrl.u32 %v2386, 7
        %v2388 = vsub.s32 %v2385, %v2387
        %v2389 = vrot.slane %v2373, %v2388
        %v2391 = vunpack.c.l.s4 1966171168
        %v2392 = vunpack.c.0.s8 %v2391
        %v2393 = vlaneseq
        %v2394 = vshrl.u32 %v2393, 7
        %v2395 = vsub.s32 %v2392, %v2394
        %v2396 = vrot.slane %v2380, %v2395
        %v2398 = vunpack.c.l.s4 1966171168
        %v2399 = vunpack.c.0.s8 %v2398
        %v2400 = vlaneseq
        %v2401 = vshrl.u32 %v2400, 7
        %v2402 = vsub.s32 %v2399, %v2401
        %v2403 = vrot.slane %v2381, %v2402
        %v2405 = vunpack.c.l.s4 1966171168
        %v2406 = vunpack.c.0.s8 %v2405
        %v2407 = vlaneseq
        %v2408 = vshrl.u32 %v2407, 7
        %v2409 = vsub.s32 %v2406, %v2408
        %v2410 = vrot.slane %v2382, %v2409
        %v2411 = vcombine.high %v2389, %v2389
        %v2412 = vcombine.high %v2396, %v2396
        %v2413 = vcombine.high %v2403, %v2403
        %v2414 = vcombine.high %v2410, %v2410
        %v2423 = vadd.f32 %v2349, %v2389
        %v2424 = vadd.f32 %v2350, %v2403
        %v2425 = vadd.f32 %v2351, %v2411
        %v2426 = vadd.f32 %v2352, %v2413
        %v2427 = vadd.f32 %v2353, %v2396
        %v2428 = vadd.f32 %v2354, %v2410
        %v2429 = vadd.f32 %v2355, %v2412
        %v2430 = vadd.f32 %v2356, %v2414
        %v2431 = vxor.u32 %v2423, 2147483648
        %v2432 = vxor.u32 %v2424, 2147483648
        %v2433 = vxor.u32 %v2425, 2147483648
        %v2434 = vxor.u32 %v2426, 2147483648
        %v2435 = vxor.u32 %v2427, 2147483648
        %v2436 = vxor.u32 %v2428, 2147483648
        %v2437 = vxor.u32 %v2429, 2147483648
        %v2438 = vxor.u32 %v2430, 2147483648
        %v2439 = vmul.f32 %v2431, 1.442695
        %v2440 = vpow.pop %v2439
        %v2441 = vmul.f32 %v2432, 1.442695
        %v2442 = vpow.pop %v2441
        %v2443 = vmul.f32 %v2433, 1.442695
        %v2444 = vpow.pop %v2443
        %v2445 = vmul.f32 %v2434, 1.442695
        %v2446 = vpow.pop %v2445
        %v2447 = vmul.f32 %v2435, 1.442695
        %v2448 = vpow.pop %v2447
        %v2449 = vmul.f32 %v2436, 1.442695
        %v2450 = vpow.pop %v2449
        %v2451 = vmul.f32 %v2437, 1.442695
        %v2452 = vpow.pop %v2451
        %v2453 = vmul.f32 %v2438, 1.442695
        %v2454 = vpow.pop %v2453
        %v2455 = vadd.f32 %v2440, 1.0
        %v2456 = vadd.f32 %v2442, 1.0
        %v2457 = vadd.f32 %v2444, 1.0
        %v2458 = vadd.f32 %v2446, 1.0
        %v2459 = vadd.f32 %v2448, 1.0
        %v2460 = vadd.f32 %v2450, 1.0
        %v2461 = vadd.f32 %v2452, 1.0
        %v2462 = vadd.f32 %v2454, 1.0
        %v2463 = vrcp.pop %v2455
        %v2464 = vmul.f32 1.0, %v2463
        %v2465 = vrcp.pop %v2456
        %v2466 = vmul.f32 1.0, %v2465
        %v2467 = vrcp.pop %v2457
        %v2468 = vmul.f32 1.0, %v2467
        %v2469 = vrcp.pop %v2458
        %v2470 = vmul.f32 1.0, %v2469
        %v2471 = vrcp.pop %v2459
        %v2472 = vmul.f32 1.0, %v2471
        %v2473 = vrcp.pop %v2460
        %v2474 = vmul.f32 1.0, %v2473
        %v2475 = vrcp.pop %v2461
        %v2476 = vmul.f32 1.0, %v2475
        %v2477 = vrcp.pop %v2462
        %v2478 = vmul.f32 1.0, %v2477
        %v2479 = vadd.f32 %v2224, %v654
        %v2481 = vcombine.high %v2479, %v2479
        %v2483 = vunpack.c.l.s4 1966171168
        %v2484 = vunpack.c.0.s8 %v2483
        %v2485 = vlaneseq
        %v2486 = vshrl.u32 %v2485, 7
        %v2487 = vsub.s32 %v2484, %v2486
        %v2488 = vrot.slane %v2479, %v2487
        %v2490 = vunpack.c.l.s4 1966171168
        %v2491 = vunpack.c.0.s8 %v2490
        %v2492 = vlaneseq
        %v2493 = vshrl.u32 %v2492, 7
        %v2494 = vsub.s32 %v2491, %v2493
        %v2495 = vrot.slane %v2481, %v2494
        %v2496 = vcombine.high %v2488, %v2488
        %v2497 = vcombine.high %v2495, %v2495
        %v2499 = vunpack.c.l.s4 1966171168
        %v2500 = vunpack.c.0.s8 %v2499
        %v2501 = vlaneseq
        %v2502 = vshrl.u32 %v2501, 7
        %v2503 = vsub.s32 %v2500, %v2502
        %v2504 = vrot.slane %v2488, %v2503
        %v2506 = vunpack.c.l.s4 1966171168
        %v2507 = vunpack.c.0.s8 %v2506
        %v2508 = vlaneseq
        %v2509 = vshrl.u32 %v2508, 7
        %v2510 = vsub.s32 %v2507, %v2509
        %v2511 = vrot.slane %v2495, %v2510
        %v2513 = vunpack.c.l.s4 1966171168
        %v2514 = vunpack.c.0.s8 %v2513
        %v2515 = vlaneseq
        %v2516 = vshrl.u32 %v2515, 7
        %v2517 = vsub.s32 %v2514, %v2516
        %v2518 = vrot.slane %v2496, %v2517
        %v2520 = vunpack.c.l.s4 1966171168
        %v2521 = vunpack.c.0.s8 %v2520
        %v2522 = vlaneseq
        %v2523 = vshrl.u32 %v2522, 7
        %v2524 = vsub.s32 %v2521, %v2523
        %v2525 = vrot.slane %v2497, %v2524
        %v2526 = vcombine.high %v2504, %v2504
        %v2527 = vcombine.high %v2511, %v2511
        %v2528 = vcombine.high %v2518, %v2518
        %v2529 = vcombine.high %v2525, %v2525
        %v2538 = vmul.f32 %v2326, %v2504
        %v2539 = vmul.f32 %v2328, %v2518
        %v2540 = vmul.f32 %v2330, %v2526
        %v2541 = vmul.f32 %v2332, %v2528
        %v2542 = vmul.f32 %v2334, %v2511
        %v2543 = vmul.f32 %v2336, %v2525
        %v2544 = vmul.f32 %v2338, %v2527
        %v2545 = vmul.f32 %v2340, %v2529
        %v2546 = vrot.slane %v1965, 2
        %v2547 = vrot.slane %v1967, 2
        %v2548 = vrot.slane %v1969, 2
        %v2549 = vrot.slane %v1971, 2
        %v2550 = vrot.slane %v1973, 2
        %v2551 = vrot.slane %v1975, 2
        %v2552 = vrot.slane %v1977, 2
        %v2553 = vrot.slane %v1979, 2
        %v2562 = vadd.f32 %v2546, %v2538
        %v2563 = vadd.f32 %v2547, %v2539
        %v2564 = vadd.f32 %v2548, %v2540
        %v2565 = vadd.f32 %v2549, %v2541
        %v2566 = vadd.f32 %v2550, %v2542
        %v2567 = vadd.f32 %v2551, %v2543
        %v2568 = vadd.f32 %v2552, %v2544
        %v2569 = vadd.f32 %v2553, %v2545
        %v2570 = vtanh.pop %v2562
        %v2571 = vtanh.pop %v2563
        %v2572 = vtanh.pop %v2564
        %v2573 = vtanh.pop %v2565
        %v2574 = vtanh.pop %v2566
        %v2575 = vtanh.pop %v2567
        %v2576 = vtanh.pop %v2568
        %v2577 = vtanh.pop %v2569
        %v2578 = vsub.f32 1.0, %v2464
        %v2579 = vsub.f32 1.0, %v2466
        %v2580 = vsub.f32 1.0, %v2468
        %v2581 = vsub.f32 1.0, %v2470
        %v2582 = vsub.f32 1.0, %v2472
        %v2583 = vsub.f32 1.0, %v2474
        %v2584 = vsub.f32 1.0, %v2476
        %v2585 = vsub.f32 1.0, %v2478
        %v2586 = vmul.f32 %v2578, %v2570
        %v2587 = vmul.f32 %v2579, %v2571
        %v2588 = vmul.f32 %v2580, %v2572
        %v2589 = vmul.f32 %v2581, %v2573
        %v2590 = vmul.f32 %v2582, %v2574
        %v2591 = vmul.f32 %v2583, %v2575
        %v2592 = vmul.f32 %v2584, %v2576
        %v2593 = vmul.f32 %v2585, %v2577
        %v2594 = vmul.f32 %v2464, %v1948
        %v2595 = vmul.f32 %v2466, %v1949
        %v2596 = vmul.f32 %v2468, %v1950
        %v2597 = vmul.f32 %v2470, %v1951
        %v2598 = vmul.f32 %v2472, %v1952
        %v2599 = vmul.f32 %v2474, %v1953
        %v2600 = vmul.f32 %v2476, %v1954
        %v2601 = vmul.f32 %v2478, %v1955
        %v2602 = vadd.f32 %v2586, %v2594
        %v2603 = vadd.f32 %v2587, %v2595
        %v2604 = vadd.f32 %v2588, %v2596
        %v2605 = vadd.f32 %v2589, %v2597
        %v2606 = vadd.f32 %v2590, %v2598
        %v2607 = vadd.f32 %v2591, %v2599
        %v2608 = vadd.f32 %v2592, %v2600
        %v2609 = vadd.f32 %v2593, %v2601
        %2610 = vst [vmem:[#allocation4 + $0x2] sm:$0x1] %v2602
        %2611 = vst [vmem:[#allocation4 + $0xa] sm:$0x1] %v2603
        %2612 = vst [vmem:[#allocation4 + $0x12] sm:$0x1] %v2604
        %2613 = vst [vmem:[#allocation4 + $0x1a] sm:$0x1] %v2605
        %2614 = vst [vmem:[#allocation4 + $0x22] sm:$0x1] %v2606
        %2615 = vst [vmem:[#allocation4 + $0x2a] sm:$0x1] %v2607
        %2616 = vst [vmem:[#allocation4 + $0x32] sm:$0x1] %v2608
        %2617 = vst [vmem:[#allocation4 + $0x3a] sm:$0x1] %v2609
        %s2618 = scalar_lea.vmem [#allocation3], 3
        %v2619 = vld [vmem:[%s2618] ss:$8 sm:$0x7]
        %s2620 = scalar_lea.vmem [#allocation3], 27
        %v2621 = vld [vmem:[%s2620] ss:$8 sm:$0x7]
        %s2622 = scalar_lea.vmem [#allocation3], 51
        %v2623 = vld [vmem:[%s2622] ss:$8 sm:$0x7]
        %s2624 = scalar_lea.vmem [#allocation3], 75
        %v2625 = vld [vmem:[%s2624] ss:$8 sm:$0x7]
        %s2626 = scalar_lea.vmem [#allocation3], 99
        %v2627 = vld [vmem:[%s2626] ss:$8 sm:$0x7]
        %s2628 = scalar_lea.vmem [#allocation3], 123
        %v2629 = vld [vmem:[%s2628] ss:$8 sm:$0x7]
        %s2630 = scalar_lea.vmem [#allocation3], 147
        %v2631 = vld [vmem:[%s2630] ss:$8 sm:$0x7]
        %s2632 = scalar_lea.vmem [#allocation3], 171
        %v2633 = vld [vmem:[%s2632] ss:$8 sm:$0x7]
        %v2634 = vld [vmem:[%s2] sm:$0xff]
        %v2635 = vld [vmem:[%s2 + $0x8] sm:$0xff]
        %v2636 = vld [vmem:[%s2 + $0x10] sm:$0xff]
        %v2637 = vld [vmem:[%s2 + $0x18] sm:$0xff]
        %v2638 = vld [vmem:[%s2 + $0x20] sm:$0xff]
        %v2639 = vld [vmem:[%s2 + $0x28] sm:$0xff]
        %v2640 = vld [vmem:[%s2 + $0x30] sm:$0xff]
        %v2641 = vld [vmem:[%s2 + $0x38] sm:$0xff]
        %v2642 = vld [vmem:[%s2 + $0x40] sm:$0xff]
        %v2643 = vld [vmem:[%s2 + $0x48] sm:$0xff]
        %v2644 = vld [vmem:[%s2 + $0x50] sm:$0xff]
        %v2645 = vld [vmem:[%s2 + $0x58] sm:$0xff]
        %v2646 = vld [vmem:[%s2 + $0x60] sm:$0xff]
        %v2647 = vld [vmem:[%s2 + $0x68] sm:$0xff]
        %v2648 = vld [vmem:[%s2 + $0x70] sm:$0xff]
        %v2649 = vld [vmem:[%s2 + $0x78] sm:$0xff]
        %v2650 = vld [vmem:[%s2 + $0x80] sm:$0xff]
        %v2651 = vld [vmem:[%s2 + $0x88] sm:$0xff]
        %v2652 = vld [vmem:[%s2 + $0x90] sm:$0xff]
        %v2653 = vld [vmem:[%s2 + $0x98] sm:$0xff]
        %v2654 = vld [vmem:[%s2 + $0xa0] sm:$0xff]
        %v2655 = vld [vmem:[%s2 + $0xa8] sm:$0xff]
        %v2656 = vld [vmem:[%s2 + $0xb0] sm:$0xff]
        %v2657 = vld [vmem:[%s2 + $0xb8] sm:$0xff]
        %v2658 = vld [vmem:[%s2 + $0xc0] sm:$0xff]
        %v2659 = vld [vmem:[%s2 + $0xc8] sm:$0xff]
        %v2660 = vld [vmem:[%s2 + $0xd0] sm:$0xff]
        %v2661 = vld [vmem:[%s2 + $0xd8] sm:$0xff]
        %v2662 = vld [vmem:[%s2 + $0xe0] sm:$0xff]
        %v2663 = vld [vmem:[%s2 + $0xe8] sm:$0xff]
        %v2664 = vld [vmem:[%s2 + $0xf0] sm:$0xff]
        %v2665 = vld [vmem:[%s2 + $0xf8] sm:$0xff]
        %v2666 = vld [vmem:[%s2 + $0x100] sm:$0xff]
        %v2667 = vld [vmem:[%s2 + $0x108] sm:$0xff]
        %v2668 = vld [vmem:[%s2 + $0x110] sm:$0xff]
        %v2669 = vld [vmem:[%s2 + $0x118] sm:$0xff]
        %v2670 = vld [vmem:[%s2 + $0x120] sm:$0xff]
        %v2671 = vld [vmem:[%s2 + $0x128] sm:$0xff]
        %v2672 = vld [vmem:[%s2 + $0x130] sm:$0xff]
        %v2673 = vld [vmem:[%s2 + $0x138] sm:$0xff]
        %v2674 = vld [vmem:[%s2 + $0x140] sm:$0xff]
        %v2675 = vld [vmem:[%s2 + $0x148] sm:$0xff]
        %v2676 = vld [vmem:[%s2 + $0x150] sm:$0xff]
        %v2677 = vld [vmem:[%s2 + $0x158] sm:$0xff]
        %v2678 = vld [vmem:[%s2 + $0x160] sm:$0xff]
        %v2679 = vld [vmem:[%s2 + $0x168] sm:$0xff]
        %v2680 = vld [vmem:[%s2 + $0x170] sm:$0xff]
        %v2681 = vld [vmem:[%s2 + $0x178] sm:$0xff]
        %v2690 = vcombine.low %v2602, %v2603
        %v2691 = vcombine.low %v2604, %v2605
        %v2692 = vcombine.low %v2606, %v2607
        %v2693 = vcombine.low %v2608, %v2609
        %v2695 = vunpack.c.l.s4 1966171168
        %v2696 = vunpack.c.0.s8 %v2695
        %v2697 = vlaneseq
        %v2698 = vshrl.u32 %v2697, 7
        %v2699 = vsub.s32 %v2696, %v2698
        %v2700 = vrot.slane %v2690, %v2699
        %v2702 = vunpack.c.l.s4 1966171168
        %v2703 = vunpack.c.0.s8 %v2702
        %v2704 = vlaneseq
        %v2705 = vshrl.u32 %v2704, 7
        %v2706 = vsub.s32 %v2703, %v2705
        %v2707 = vrot.slane %v2691, %v2706
        %v2709 = vunpack.c.l.s4 1966171168
        %v2710 = vunpack.c.0.s8 %v2709
        %v2711 = vlaneseq
        %v2712 = vshrl.u32 %v2711, 7
        %v2713 = vsub.s32 %v2710, %v2712
        %v2714 = vrot.slane %v2692, %v2713
        %v2716 = vunpack.c.l.s4 1966171168
        %v2717 = vunpack.c.0.s8 %v2716
        %v2718 = vlaneseq
        %v2719 = vshrl.u32 %v2718, 7
        %v2720 = vsub.s32 %v2717, %v2719
        %v2721 = vrot.slane %v2693, %v2720
        %v2722 = vcombine.low %v2700, %v2707
        %v2723 = vcombine.low %v2714, %v2721
        %v2725 = vunpack.c.l.s4 1966171168
        %v2726 = vunpack.c.0.s8 %v2725
        %v2727 = vlaneseq
        %v2728 = vshrl.u32 %v2727, 7
        %v2729 = vsub.s32 %v2726, %v2728
        %v2730 = vrot.slane %v2722, %v2729
        %v2732 = vunpack.c.l.s4 1966171168
        %v2733 = vunpack.c.0.s8 %v2732
        %v2734 = vlaneseq
        %v2735 = vshrl.u32 %v2734, 7
        %v2736 = vsub.s32 %v2733, %v2735
        %v2737 = vrot.slane %v2723, %v2736
        %v2738 = vcombine.low %v2730, %v2737
        %2740 = vmatprep.subr.mxu0 %v2635
        %2741 = vmatpush1.msra.mxu0 %v2634
        %2742 = vmatprep.subr.mxu0 %v2638
        %2743 = vmatpush1.msra.mxu0 %v2637
        %2744 = vmatprep.subr.mxu0 %v2641
        %2745 = vmatpush1.msra.mxu0 %v2640
        %2746 = vmatprep.subr.mxu0 %v2644
        %2747 = vmatpush1.msra.mxu0 %v2643
        %2748 = vmatprep.subr.mxu0 %v2647
        %2749 = vmatpush1.msra.mxu0 %v2646
        %2750 = vmatprep.subr.mxu0 %v2650
        %2751 = vmatpush1.msra.mxu0 %v2649
        %2752 = vmatprep.subr.mxu0 %v2653
        %2753 = vmatpush1.msra.mxu0 %v2652
        %2754 = vmatprep.subr.mxu0 %v2656
        %2755 = vmatpush1.msra.mxu0 %v2655
        %2756 = vmatprep.subr.mxu0 %v2659
        %2757 = vmatpush1.msra.mxu0 %v2658
        %2758 = vmatprep.subr.mxu0 %v2662
        %2759 = vmatpush1.msra.mxu0 %v2661
        %2760 = vmatprep.subr.mxu0 %v2665
        %2761 = vmatpush1.msra.mxu0 %v2664
        %2762 = vmatprep.subr.mxu0 %v2668
        %2763 = vmatpush1.msra.mxu0 %v2667
        %2764 = vmatprep.subr.mxu0 %v2671
        %2765 = vmatpush1.msra.mxu0 %v2670
        %2766 = vmatprep.subr.mxu0 %v2674
        %2767 = vmatpush1.msra.mxu0 %v2673
        %2768 = vmatprep.subr.mxu0 %v2677
        %2769 = vmatpush1.msra.mxu0 %v2676
        %2770 = vmatprep.subr.mxu0 %v2680
        %2771 = vmatpush1.msra.mxu0 %v2679
        %2772 = vmatprep.subr.mxu0 0.0
        %2773 = vmatpush1.msra.mxu0 0.0
        %2774 = vmatprep.subr.mxu0 0.0
        %2775 = vmatpush1.msra.mxu0 0.0
        %2776 = vmatprep.subr.mxu0 0.0
        %2777 = vmatpush1.msra.mxu0 0.0
        %2778 = vmatprep.subr.mxu0 0.0
        %2779 = vmatpush1.msra.mxu0 0.0
        %2780 = vmatprep.subr.mxu0 0.0
        %2781 = vmatpush1.msra.mxu0 0.0
        %2782 = vmatprep.subr.mxu0 0.0
        %2783 = vmatpush1.msra.mxu0 0.0
        %2784 = vmatprep.subr.mxu0 0.0
        %2785 = vmatpush1.msra.mxu0 0.0
        %2786 = vmatprep.subr.mxu0 0.0
        %2787 = vmatpush1.msra.mxu0 0.0
        %2788 = vmatprep.subr.mxu0 0.0
        %2789 = vmatpush1.msra.mxu0 0.0
        %2790 = vmatprep.subr.mxu0 0.0
        %2791 = vmatpush1.msra.mxu0 0.0
        %2792 = vmatprep.subr.mxu0 0.0
        %2793 = vmatpush1.msra.mxu0 0.0
        %2794 = vmatprep.subr.mxu0 0.0
        %2795 = vmatpush1.msra.mxu0 0.0
        %2796 = vmatprep.subr.mxu0 0.0
        %2797 = vmatpush1.msra.mxu0 0.0
        %2798 = vmatprep.subr.mxu0 0.0
        %2799 = vmatpush1.msra.mxu0 0.0
        %2800 = vmatprep.subr.mxu0 0.0
        %2801 = vmatpush1.msra.mxu0 0.0
        %2802 = vmatprep.subr.mxu0 0.0
        %2803 = vmatpush1.msra.mxu0 0.0
        %2804 = vmatprep.mubr.f32.mxu0 0.0
        %2805 = vmatmul.mubr.f32.gmra.mrb[0].mxu0 %v2738
        %v2806 = vpop.f32.mrb[0].mxu0
        %v2807 = vadd.f32 0.0, %v2806
        %v2808 = vpop.f32.mrb[0].mxu0
        %v2809 = vadd.f32 0.0, %v2808
        %2810 = vdwg.mxu0
        %2811 = vmatprep.subr.mxu0 0.0
        %2812 = vmatpush1.msra.mxu0 %v2636
        %2813 = vmatprep.subr.mxu0 0.0
        %2814 = vmatpush1.msra.mxu0 %v2639
        %2815 = vmatprep.subr.mxu0 0.0
        %2816 = vmatpush1.msra.mxu0 %v2642
        %2817 = vmatprep.subr.mxu0 0.0
        %2818 = vmatpush1.msra.mxu0 %v2645
        %2819 = vmatprep.subr.mxu0 0.0
        %2820 = vmatpush1.msra.mxu0 %v2648
        %2821 = vmatprep.subr.mxu0 0.0
        %2822 = vmatpush1.msra.mxu0 %v2651
        %2823 = vmatprep.subr.mxu0 0.0
        %2824 = vmatpush1.msra.mxu0 %v2654
        %2825 = vmatprep.subr.mxu0 0.0
        %2826 = vmatpush1.msra.mxu0 %v2657
        %2827 = vmatprep.subr.mxu0 0.0
        %2828 = vmatpush1.msra.mxu0 %v2660
        %2829 = vmatprep.subr.mxu0 0.0
        %2830 = vmatpush1.msra.mxu0 %v2663
        %2831 = vmatprep.subr.mxu0 0.0
        %2832 = vmatpush1.msra.mxu0 %v2666
        %2833 = vmatprep.subr.mxu0 0.0
        %2834 = vmatpush1.msra.mxu0 %v2669
        %2835 = vmatprep.subr.mxu0 0.0
        %2836 = vmatpush1.msra.mxu0 %v2672
        %2837 = vmatprep.subr.mxu0 0.0
        %2838 = vmatpush1.msra.mxu0 %v2675
        %2839 = vmatprep.subr.mxu0 0.0
        %2840 = vmatpush1.msra.mxu0 %v2678
        %2841 = vmatprep.subr.mxu0 0.0
        %2842 = vmatpush1.msra.mxu0 %v2681
        %2843 = vmatprep.subr.mxu0 0.0
        %2844 = vmatpush1.msra.mxu0 0.0
        %2845 = vmatprep.subr.mxu0 0.0
        %2846 = vmatpush1.msra.mxu0 0.0
        %2847 = vmatprep.subr.mxu0 0.0
        %2848 = vmatpush1.msra.mxu0 0.0
        %2849 = vmatprep.subr.mxu0 0.0
        %2850 = vmatpush1.msra.mxu0 0.0
        %2851 = vmatprep.subr.mxu0 0.0
        %2852 = vmatpush1.msra.mxu0 0.0
        %2853 = vmatprep.subr.mxu0 0.0
        %2854 = vmatpush1.msra.mxu0 0.0
        %2855 = vmatprep.subr.mxu0 0.0
        %2856 = vmatpush1.msra.mxu0 0.0
        %2857 = vmatprep.subr.mxu0 0.0
        %2858 = vmatpush1.msra.mxu0 0.0
        %2859 = vmatprep.subr.mxu0 0.0
        %2860 = vmatpush1.msra.mxu0 0.0
        %2861 = vmatprep.subr.mxu0 0.0
        %2862 = vmatpush1.msra.mxu0 0.0
        %2863 = vmatprep.subr.mxu0 0.0
        %2864 = vmatpush1.msra.mxu0 0.0
        %2865 = vmatprep.subr.mxu0 0.0
        %2866 = vmatpush1.msra.mxu0 0.0
        %2867 = vmatprep.subr.mxu0 0.0
        %2868 = vmatpush1.msra.mxu0 0.0
        %2869 = vmatprep.subr.mxu0 0.0
        %2870 = vmatpush1.msra.mxu0 0.0
        %2871 = vmatprep.subr.mxu0 0.0
        %2872 = vmatpush1.msra.mxu0 0.0
        %2873 = vmatprep.subr.mxu0 0.0
        %2874 = vmatpush1.msra.mxu0 0.0
        %2875 = vmatprep.mubr.f32.mxu0 0.0
        %2876 = vmatmul.mubr.f32.gmra.mrb[0].mxu0 %v2738
        %v2877 = vpop.f32.mrb[0].mxu0
        %v2878 = vadd.f32 0.0, %v2877
        %v2879 = vpop.f32.mrb[0].mxu0
        %2880 = vdwg.mxu0
        %v2882 = vcombine.high %v2807, %v2807
        %v2884 = vunpack.c.l.s4 1966171168
        %v2885 = vunpack.c.0.s8 %v2884
        %v2886 = vlaneseq
        %v2887 = vshrl.u32 %v2886, 7
        %v2888 = vsub.s32 %v2885, %v2887
        %v2889 = vrot.slane %v2807, %v2888
        %v2891 = vunpack.c.l.s4 1966171168
        %v2892 = vunpack.c.0.s8 %v2891
        %v2893 = vlaneseq
        %v2894 = vshrl.u32 %v2893, 7
        %v2895 = vsub.s32 %v2892, %v2894
        %v2896 = vrot.slane %v2882, %v2895
        %v2897 = vcombine.high %v2889, %v2889
        %v2898 = vcombine.high %v2896, %v2896
        %v2900 = vunpack.c.l.s4 1966171168
        %v2901 = vunpack.c.0.s8 %v2900
        %v2902 = vlaneseq
        %v2903 = vshrl.u32 %v2902, 7
        %v2904 = vsub.s32 %v2901, %v2903
        %v2905 = vrot.slane %v2889, %v2904
        %v2907 = vunpack.c.l.s4 1966171168
        %v2908 = vunpack.c.0.s8 %v2907
        %v2909 = vlaneseq
        %v2910 = vshrl.u32 %v2909, 7
        %v2911 = vsub.s32 %v2908, %v2910
        %v2912 = vrot.slane %v2896, %v2911
        %v2914 = vunpack.c.l.s4 1966171168
        %v2915 = vunpack.c.0.s8 %v2914
        %v2916 = vlaneseq
        %v2917 = vshrl.u32 %v2916, 7
        %v2918 = vsub.s32 %v2915, %v2917
        %v2919 = vrot.slane %v2897, %v2918
        %v2921 = vunpack.c.l.s4 1966171168
        %v2922 = vunpack.c.0.s8 %v2921
        %v2923 = vlaneseq
        %v2924 = vshrl.u32 %v2923, 7
        %v2925 = vsub.s32 %v2922, %v2924
        %v2926 = vrot.slane %v2898, %v2925
        %v2927 = vcombine.high %v2905, %v2905
        %v2928 = vcombine.high %v2912, %v2912
        %v2929 = vcombine.high %v2919, %v2919
        %v2930 = vcombine.high %v2926, %v2926
        %v2939 = vadd.f32 %v2619, %v2905
        %v2940 = vadd.f32 %v2621, %v2919
        %v2941 = vadd.f32 %v2623, %v2927
        %v2942 = vadd.f32 %v2625, %v2929
        %v2943 = vadd.f32 %v2627, %v2912
        %v2944 = vadd.f32 %v2629, %v2926
        %v2945 = vadd.f32 %v2631, %v2928
        %v2946 = vadd.f32 %v2633, %v2930
        %v2947 = vxor.u32 %v2939, 2147483648
        %v2948 = vxor.u32 %v2940, 2147483648
        %v2949 = vxor.u32 %v2941, 2147483648
        %v2950 = vxor.u32 %v2942, 2147483648
        %v2951 = vxor.u32 %v2943, 2147483648
        %v2952 = vxor.u32 %v2944, 2147483648
        %v2953 = vxor.u32 %v2945, 2147483648
        %v2954 = vxor.u32 %v2946, 2147483648
        %v2955 = vmul.f32 %v2947, 1.442695
        %v2956 = vpow.pop %v2955
        %v2957 = vmul.f32 %v2948, 1.442695
        %v2958 = vpow.pop %v2957
        %v2959 = vmul.f32 %v2949, 1.442695
        %v2960 = vpow.pop %v2959
        %v2961 = vmul.f32 %v2950, 1.442695
        %v2962 = vpow.pop %v2961
        %v2963 = vmul.f32 %v2951, 1.442695
        %v2964 = vpow.pop %v2963
        %v2965 = vmul.f32 %v2952, 1.442695
        %v2966 = vpow.pop %v2965
        %v2967 = vmul.f32 %v2953, 1.442695
        %v2968 = vpow.pop %v2967
        %v2969 = vmul.f32 %v2954, 1.442695
        %v2970 = vpow.pop %v2969
        %v2971 = vadd.f32 %v2956, 1.0
        %v2972 = vadd.f32 %v2958, 1.0
        %v2973 = vadd.f32 %v2960, 1.0
        %v2974 = vadd.f32 %v2962, 1.0
        %v2975 = vadd.f32 %v2964, 1.0
        %v2976 = vadd.f32 %v2966, 1.0
        %v2977 = vadd.f32 %v2968, 1.0
        %v2978 = vadd.f32 %v2970, 1.0
        %v2979 = vrcp.pop %v2971
        %v2980 = vmul.f32 1.0, %v2979
        %v2981 = vrcp.pop %v2972
        %v2982 = vmul.f32 1.0, %v2981
        %v2983 = vrcp.pop %v2973
        %v2984 = vmul.f32 1.0, %v2983
        %v2985 = vrcp.pop %v2974
        %v2986 = vmul.f32 1.0, %v2985
        %v2987 = vrcp.pop %v2975
        %v2988 = vmul.f32 1.0, %v2987
        %v2989 = vrcp.pop %v2976
        %v2990 = vmul.f32 1.0, %v2989
        %v2991 = vrcp.pop %v2977
        %v2992 = vmul.f32 1.0, %v2991
        %v2993 = vrcp.pop %v2978
        %v2994 = vmul.f32 1.0, %v2993
        %v3003 = vrot.slane %v2619, 1
        %v3004 = vrot.slane %v2621, 1
        %v3005 = vrot.slane %v2623, 1
        %v3006 = vrot.slane %v2625, 1
        %v3007 = vrot.slane %v2627, 1
        %v3008 = vrot.slane %v2629, 1
        %v3009 = vrot.slane %v2631, 1
        %v3010 = vrot.slane %v2633, 1
        %v3020 = vcombine.high %v2809, %v2809
        %v3022 = vunpack.c.l.s4 1966171168
        %v3023 = vunpack.c.0.s8 %v3022
        %v3024 = vlaneseq
        %v3025 = vshrl.u32 %v3024, 7
        %v3026 = vsub.s32 %v3023, %v3025
        %v3027 = vrot.slane %v2809, %v3026
        %v3029 = vunpack.c.l.s4 1966171168
        %v3030 = vunpack.c.0.s8 %v3029
        %v3031 = vlaneseq
        %v3032 = vshrl.u32 %v3031, 7
        %v3033 = vsub.s32 %v3030, %v3032
        %v3034 = vrot.slane %v3020, %v3033
        %v3035 = vcombine.high %v3027, %v3027
        %v3036 = vcombine.high %v3034, %v3034
        %v3038 = vunpack.c.l.s4 1966171168
        %v3039 = vunpack.c.0.s8 %v3038
        %v3040 = vlaneseq
        %v3041 = vshrl.u32 %v3040, 7
        %v3042 = vsub.s32 %v3039, %v3041
        %v3043 = vrot.slane %v3027, %v3042
        %v3045 = vunpack.c.l.s4 1966171168
        %v3046 = vunpack.c.0.s8 %v3045
        %v3047 = vlaneseq
        %v3048 = vshrl.u32 %v3047, 7
        %v3049 = vsub.s32 %v3046, %v3048
        %v3050 = vrot.slane %v3034, %v3049
        %v3052 = vunpack.c.l.s4 1966171168
        %v3053 = vunpack.c.0.s8 %v3052
        %v3054 = vlaneseq
        %v3055 = vshrl.u32 %v3054, 7
        %v3056 = vsub.s32 %v3053, %v3055
        %v3057 = vrot.slane %v3035, %v3056
        %v3059 = vunpack.c.l.s4 1966171168
        %v3060 = vunpack.c.0.s8 %v3059
        %v3061 = vlaneseq
        %v3062 = vshrl.u32 %v3061, 7
        %v3063 = vsub.s32 %v3060, %v3062
        %v3064 = vrot.slane %v3036, %v3063
        %v3065 = vcombine.high %v3043, %v3043
        %v3066 = vcombine.high %v3050, %v3050
        %v3067 = vcombine.high %v3057, %v3057
        %v3068 = vcombine.high %v3064, %v3064
        %v3077 = vadd.f32 %v3003, %v3043
        %v3078 = vadd.f32 %v3004, %v3057
        %v3079 = vadd.f32 %v3005, %v3065
        %v3080 = vadd.f32 %v3006, %v3067
        %v3081 = vadd.f32 %v3007, %v3050
        %v3082 = vadd.f32 %v3008, %v3064
        %v3083 = vadd.f32 %v3009, %v3066
        %v3084 = vadd.f32 %v3010, %v3068
        %v3085 = vxor.u32 %v3077, 2147483648
        %v3086 = vxor.u32 %v3078, 2147483648
        %v3087 = vxor.u32 %v3079, 2147483648
        %v3088 = vxor.u32 %v3080, 2147483648
        %v3089 = vxor.u32 %v3081, 2147483648
        %v3090 = vxor.u32 %v3082, 2147483648
        %v3091 = vxor.u32 %v3083, 2147483648
        %v3092 = vxor.u32 %v3084, 2147483648
        %v3093 = vmul.f32 %v3085, 1.442695
        %v3094 = vpow.pop %v3093
        %v3095 = vmul.f32 %v3086, 1.442695
        %v3096 = vpow.pop %v3095
        %v3097 = vmul.f32 %v3087, 1.442695
        %v3098 = vpow.pop %v3097
        %v3099 = vmul.f32 %v3088, 1.442695
        %v3100 = vpow.pop %v3099
        %v3101 = vmul.f32 %v3089, 1.442695
        %v3102 = vpow.pop %v3101
        %v3103 = vmul.f32 %v3090, 1.442695
        %v3104 = vpow.pop %v3103
        %v3105 = vmul.f32 %v3091, 1.442695
        %v3106 = vpow.pop %v3105
        %v3107 = vmul.f32 %v3092, 1.442695
        %v3108 = vpow.pop %v3107
        %v3109 = vadd.f32 %v3094, 1.0
        %v3110 = vadd.f32 %v3096, 1.0
        %v3111 = vadd.f32 %v3098, 1.0
        %v3112 = vadd.f32 %v3100, 1.0
        %v3113 = vadd.f32 %v3102, 1.0
        %v3114 = vadd.f32 %v3104, 1.0
        %v3115 = vadd.f32 %v3106, 1.0
        %v3116 = vadd.f32 %v3108, 1.0
        %v3117 = vrcp.pop %v3109
        %v3118 = vmul.f32 1.0, %v3117
        %v3119 = vrcp.pop %v3110
        %v3120 = vmul.f32 1.0, %v3119
        %v3121 = vrcp.pop %v3111
        %v3122 = vmul.f32 1.0, %v3121
        %v3123 = vrcp.pop %v3112
        %v3124 = vmul.f32 1.0, %v3123
        %v3125 = vrcp.pop %v3113
        %v3126 = vmul.f32 1.0, %v3125
        %v3127 = vrcp.pop %v3114
        %v3128 = vmul.f32 1.0, %v3127
        %v3129 = vrcp.pop %v3115
        %v3130 = vmul.f32 1.0, %v3129
        %v3131 = vrcp.pop %v3116
        %v3132 = vmul.f32 1.0, %v3131
        %v3133 = vadd.f32 %v2878, %v654
        %v3135 = vcombine.high %v3133, %v3133
        %v3137 = vunpack.c.l.s4 1966171168
        %v3138 = vunpack.c.0.s8 %v3137
        %v3139 = vlaneseq
        %v3140 = vshrl.u32 %v3139, 7
        %v3141 = vsub.s32 %v3138, %v3140
        %v3142 = vrot.slane %v3133, %v3141
        %v3144 = vunpack.c.l.s4 1966171168
        %v3145 = vunpack.c.0.s8 %v3144
        %v3146 = vlaneseq
        %v3147 = vshrl.u32 %v3146, 7
        %v3148 = vsub.s32 %v3145, %v3147
        %v3149 = vrot.slane %v3135, %v3148
        %v3150 = vcombine.high %v3142, %v3142
        %v3151 = vcombine.high %v3149, %v3149
        %v3153 = vunpack.c.l.s4 1966171168
        %v3154 = vunpack.c.0.s8 %v3153
        %v3155 = vlaneseq
        %v3156 = vshrl.u32 %v3155, 7
        %v3157 = vsub.s32 %v3154, %v3156
        %v3158 = vrot.slane %v3142, %v3157
        %v3160 = vunpack.c.l.s4 1966171168
        %v3161 = vunpack.c.0.s8 %v3160
        %v3162 = vlaneseq
        %v3163 = vshrl.u32 %v3162, 7
        %v3164 = vsub.s32 %v3161, %v3163
        %v3165 = vrot.slane %v3149, %v3164
        %v3167 = vunpack.c.l.s4 1966171168
        %v3168 = vunpack.c.0.s8 %v3167
        %v3169 = vlaneseq
        %v3170 = vshrl.u32 %v3169, 7
        %v3171 = vsub.s32 %v3168, %v3170
        %v3172 = vrot.slane %v3150, %v3171
        %v3174 = vunpack.c.l.s4 1966171168
        %v3175 = vunpack.c.0.s8 %v3174
        %v3176 = vlaneseq
        %v3177 = vshrl.u32 %v3176, 7
        %v3178 = vsub.s32 %v3175, %v3177
        %v3179 = vrot.slane %v3151, %v3178
        %v3180 = vcombine.high %v3158, %v3158
        %v3181 = vcombine.high %v3165, %v3165
        %v3182 = vcombine.high %v3172, %v3172
        %v3183 = vcombine.high %v3179, %v3179
        %v3192 = vmul.f32 %v2980, %v3158
        %v3193 = vmul.f32 %v2982, %v3172
        %v3194 = vmul.f32 %v2984, %v3180
        %v3195 = vmul.f32 %v2986, %v3182
        %v3196 = vmul.f32 %v2988, %v3165
        %v3197 = vmul.f32 %v2990, %v3179
        %v3198 = vmul.f32 %v2992, %v3181
        %v3199 = vmul.f32 %v2994, %v3183
        %v3200 = vrot.slane %v2619, 2
        %v3201 = vrot.slane %v2621, 2
        %v3202 = vrot.slane %v2623, 2
        %v3203 = vrot.slane %v2625, 2
        %v3204 = vrot.slane %v2627, 2
        %v3205 = vrot.slane %v2629, 2
        %v3206 = vrot.slane %v2631, 2
        %v3207 = vrot.slane %v2633, 2
        %v3216 = vadd.f32 %v3200, %v3192
        %v3217 = vadd.f32 %v3201, %v3193
        %v3218 = vadd.f32 %v3202, %v3194
        %v3219 = vadd.f32 %v3203, %v3195
        %v3220 = vadd.f32 %v3204, %v3196
        %v3221 = vadd.f32 %v3205, %v3197
        %v3222 = vadd.f32 %v3206, %v3198
        %v3223 = vadd.f32 %v3207, %v3199
        %v3224 = vtanh.pop %v3216
        %v3225 = vtanh.pop %v3217
        %v3226 = vtanh.pop %v3218
        %v3227 = vtanh.pop %v3219
        %v3228 = vtanh.pop %v3220
        %v3229 = vtanh.pop %v3221
        %v3230 = vtanh.pop %v3222
        %v3231 = vtanh.pop %v3223
        %v3232 = vsub.f32 1.0, %v3118
        %v3233 = vsub.f32 1.0, %v3120
        %v3234 = vsub.f32 1.0, %v3122
        %v3235 = vsub.f32 1.0, %v3124
        %v3236 = vsub.f32 1.0, %v3126
        %v3237 = vsub.f32 1.0, %v3128
        %v3238 = vsub.f32 1.0, %v3130
        %v3239 = vsub.f32 1.0, %v3132
        %v3240 = vmul.f32 %v3232, %v3224
        %v3241 = vmul.f32 %v3233, %v3225
        %v3242 = vmul.f32 %v3234, %v3226
        %v3243 = vmul.f32 %v3235, %v3227
        %v3244 = vmul.f32 %v3236, %v3228
        %v3245 = vmul.f32 %v3237, %v3229
        %v3246 = vmul.f32 %v3238, %v3230
        %v3247 = vmul.f32 %v3239, %v3231
        %v3248 = vmul.f32 %v3118, %v2602
        %v3249 = vmul.f32 %v3120, %v2603
        %v3250 = vmul.f32 %v3122, %v2604
        %v3251 = vmul.f32 %v3124, %v2605
        %v3252 = vmul.f32 %v3126, %v2606
        %v3253 = vmul.f32 %v3128, %v2607
        %v3254 = vmul.f32 %v3130, %v2608
        %v3255 = vmul.f32 %v3132, %v2609
        %v3256 = vadd.f32 %v3240, %v3248
        %v3257 = vadd.f32 %v3241, %v3249
        %v3258 = vadd.f32 %v3242, %v3250
        %v3259 = vadd.f32 %v3243, %v3251
        %v3260 = vadd.f32 %v3244, %v3252
        %v3261 = vadd.f32 %v3245, %v3253
        %v3262 = vadd.f32 %v3246, %v3254
        %v3263 = vadd.f32 %v3247, %v3255
        %3264 = vst [vmem:[#allocation4 + $0x3] sm:$0x1] %v3256
        %3265 = vst [vmem:[#allocation4 + $0xb] sm:$0x1] %v3257
        %3266 = vst [vmem:[#allocation4 + $0x13] sm:$0x1] %v3258
        %3267 = vst [vmem:[#allocation4 + $0x1b] sm:$0x1] %v3259
        %3268 = vst [vmem:[#allocation4 + $0x23] sm:$0x1] %v3260
        %3269 = vst [vmem:[#allocation4 + $0x2b] sm:$0x1] %v3261
        %3270 = vst [vmem:[#allocation4 + $0x33] sm:$0x1] %v3262
        %3271 = vst [vmem:[#allocation4 + $0x3b] sm:$0x1] %v3263
        %s3272 = scalar_lea.vmem [#allocation3], 4
        %v3273 = vld [vmem:[%s3272] ss:$8 sm:$0x7]
        %s3274 = scalar_lea.vmem [#allocation3], 28
        %v3275 = vld [vmem:[%s3274] ss:$8 sm:$0x7]
        %s3276 = scalar_lea.vmem [#allocation3], 52
        %v3277 = vld [vmem:[%s3276] ss:$8 sm:$0x7]
        %s3278 = scalar_lea.vmem [#allocation3], 76
        %v3279 = vld [vmem:[%s3278] ss:$8 sm:$0x7]
        %s3280 = scalar_lea.vmem [#allocation3], 100
        %v3281 = vld [vmem:[%s3280] ss:$8 sm:$0x7]
        %s3282 = scalar_lea.vmem [#allocation3], 124
        %v3283 = vld [vmem:[%s3282] ss:$8 sm:$0x7]
        %s3284 = scalar_lea.vmem [#allocation3], 148
        %v3285 = vld [vmem:[%s3284] ss:$8 sm:$0x7]
        %s3286 = scalar_lea.vmem [#allocation3], 172
        %v3287 = vld [vmem:[%s3286] ss:$8 sm:$0x7]
        %v3288 = vld [vmem:[%s2] sm:$0xff]
        %v3289 = vld [vmem:[%s2 + $0x8] sm:$0xff]
        %v3290 = vld [vmem:[%s2 + $0x10] sm:$0xff]
        %v3291 = vld [vmem:[%s2 + $0x18] sm:$0xff]
        %v3292 = vld [vmem:[%s2 + $0x20] sm:$0xff]
        %v3293 = vld [vmem:[%s2 + $0x28] sm:$0xff]
        %v3294 = vld [vmem:[%s2 + $0x30] sm:$0xff]
        %v3295 = vld [vmem:[%s2 + $0x38] sm:$0xff]
        %v3296 = vld [vmem:[%s2 + $0x40] sm:$0xff]
        %v3297 = vld [vmem:[%s2 + $0x48] sm:$0xff]
        %v3298 = vld [vmem:[%s2 + $0x50] sm:$0xff]
        %v3299 = vld [vmem:[%s2 + $0x58] sm:$0xff]
        %v3300 = vld [vmem:[%s2 + $0x60] sm:$0xff]
        %v3301 = vld [vmem:[%s2 + $0x68] sm:$0xff]
        %v3302 = vld [vmem:[%s2 + $0x70] sm:$0xff]
        %v3303 = vld [vmem:[%s2 + $0x78] sm:$0xff]
        %v3304 = vld [vmem:[%s2 + $0x80] sm:$0xff]
        %v3305 = vld [vmem:[%s2 + $0x88] sm:$0xff]
        %v3306 = vld [vmem:[%s2 + $0x90] sm:$0xff]
        %v3307 = vld [vmem:[%s2 + $0x98] sm:$0xff]
        %v3308 = vld [vmem:[%s2 + $0xa0] sm:$0xff]
        %v3309 = vld [vmem:[%s2 + $0xa8] sm:$0xff]
        %v3310 = vld [vmem:[%s2 + $0xb0] sm:$0xff]
        %v3311 = vld [vmem:[%s2 + $0xb8] sm:$0xff]
        %v3312 = vld [vmem:[%s2 + $0xc0] sm:$0xff]
        %v3313 = vld [vmem:[%s2 + $0xc8] sm:$0xff]
        %v3314 = vld [vmem:[%s2 + $0xd0] sm:$0xff]
        %v3315 = vld [vmem:[%s2 + $0xd8] sm:$0xff]
        %v3316 = vld [vmem:[%s2 + $0xe0] sm:$0xff]
        %v3317 = vld [vmem:[%s2 + $0xe8] sm:$0xff]
        %v3318 = vld [vmem:[%s2 + $0xf0] sm:$0xff]
        %v3319 = vld [vmem:[%s2 + $0xf8] sm:$0xff]
        %v3320 = vld [vmem:[%s2 + $0x100] sm:$0xff]
        %v3321 = vld [vmem:[%s2 + $0x108] sm:$0xff]
        %v3322 = vld [vmem:[%s2 + $0x110] sm:$0xff]
        %v3323 = vld [vmem:[%s2 + $0x118] sm:$0xff]
        %v3324 = vld [vmem:[%s2 + $0x120] sm:$0xff]
        %v3325 = vld [vmem:[%s2 + $0x128] sm:$0xff]
        %v3326 = vld [vmem:[%s2 + $0x130] sm:$0xff]
        %v3327 = vld [vmem:[%s2 + $0x138] sm:$0xff]
        %v3328 = vld [vmem:[%s2 + $0x140] sm:$0xff]
        %v3329 = vld [vmem:[%s2 + $0x148] sm:$0xff]
        %v3330 = vld [vmem:[%s2 + $0x150] sm:$0xff]
        %v3331 = vld [vmem:[%s2 + $0x158] sm:$0xff]
        %v3332 = vld [vmem:[%s2 + $0x160] sm:$0xff]
        %v3333 = vld [vmem:[%s2 + $0x168] sm:$0xff]
        %v3334 = vld [vmem:[%s2 + $0x170] sm:$0xff]
        %v3335 = vld [vmem:[%s2 + $0x178] sm:$0xff]
        %v3344 = vcombine.low %v3256, %v3257
        %v3345 = vcombine.low %v3258, %v3259
        %v3346 = vcombine.low %v3260, %v3261
        %v3347 = vcombine.low %v3262, %v3263
        %v3349 = vunpack.c.l.s4 1966171168
        %v3350 = vunpack.c.0.s8 %v3349
        %v3351 = vlaneseq
        %v3352 = vshrl.u32 %v3351, 7
        %v3353 = vsub.s32 %v3350, %v3352
        %v3354 = vrot.slane %v3344, %v3353
        %v3356 = vunpack.c.l.s4 1966171168
        %v3357 = vunpack.c.0.s8 %v3356
        %v3358 = vlaneseq
        %v3359 = vshrl.u32 %v3358, 7
        %v3360 = vsub.s32 %v3357, %v3359
        %v3361 = vrot.slane %v3345, %v3360
        %v3363 = vunpack.c.l.s4 1966171168
        %v3364 = vunpack.c.0.s8 %v3363
        %v3365 = vlaneseq
        %v3366 = vshrl.u32 %v3365, 7
        %v3367 = vsub.s32 %v3364, %v3366
        %v3368 = vrot.slane %v3346, %v3367
        %v3370 = vunpack.c.l.s4 1966171168
        %v3371 = vunpack.c.0.s8 %v3370
        %v3372 = vlaneseq
        %v3373 = vshrl.u32 %v3372, 7
        %v3374 = vsub.s32 %v3371, %v3373
        %v3375 = vrot.slane %v3347, %v3374
        %v3376 = vcombine.low %v3354, %v3361
        %v3377 = vcombine.low %v3368, %v3375
        %v3379 = vunpack.c.l.s4 1966171168
        %v3380 = vunpack.c.0.s8 %v3379
        %v3381 = vlaneseq
        %v3382 = vshrl.u32 %v3381, 7
        %v3383 = vsub.s32 %v3380, %v3382
        %v3384 = vrot.slane %v3376, %v3383
        %v3386 = vunpack.c.l.s4 1966171168
        %v3387 = vunpack.c.0.s8 %v3386
        %v3388 = vlaneseq
        %v3389 = vshrl.u32 %v3388, 7
        %v3390 = vsub.s32 %v3387, %v3389
        %v3391 = vrot.slane %v3377, %v3390
        %v3392 = vcombine.low %v3384, %v3391
        %3394 = vmatprep.subr.mxu0 %v3289
        %3395 = vmatpush1.msra.mxu0 %v3288
        %3396 = vmatprep.subr.mxu0 %v3292
        %3397 = vmatpush1.msra.mxu0 %v3291
        %3398 = vmatprep.subr.mxu0 %v3295
        %3399 = vmatpush1.msra.mxu0 %v3294
        %3400 = vmatprep.subr.mxu0 %v3298
        %3401 = vmatpush1.msra.mxu0 %v3297
        %3402 = vmatprep.subr.mxu0 %v3301
        %3403 = vmatpush1.msra.mxu0 %v3300
        %3404 = vmatprep.subr.mxu0 %v3304
        %3405 = vmatpush1.msra.mxu0 %v3303
        %3406 = vmatprep.subr.mxu0 %v3307
        %3407 = vmatpush1.msra.mxu0 %v3306
        %3408 = vmatprep.subr.mxu0 %v3310
        %3409 = vmatpush1.msra.mxu0 %v3309
        %3410 = vmatprep.subr.mxu0 %v3313
        %3411 = vmatpush1.msra.mxu0 %v3312
        %3412 = vmatprep.subr.mxu0 %v3316
        %3413 = vmatpush1.msra.mxu0 %v3315
        %3414 = vmatprep.subr.mxu0 %v3319
        %3415 = vmatpush1.msra.mxu0 %v3318
        %3416 = vmatprep.subr.mxu0 %v3322
        %3417 = vmatpush1.msra.mxu0 %v3321
        %3418 = vmatprep.subr.mxu0 %v3325
        %3419 = vmatpush1.msra.mxu0 %v3324
        %3420 = vmatprep.subr.mxu0 %v3328
        %3421 = vmatpush1.msra.mxu0 %v3327
        %3422 = vmatprep.subr.mxu0 %v3331
        %3423 = vmatpush1.msra.mxu0 %v3330
        %3424 = vmatprep.subr.mxu0 %v3334
        %3425 = vmatpush1.msra.mxu0 %v3333
        %3426 = vmatprep.subr.mxu0 0.0
        %3427 = vmatpush1.msra.mxu0 0.0
        %3428 = vmatprep.subr.mxu0 0.0
        %3429 = vmatpush1.msra.mxu0 0.0
        %3430 = vmatprep.subr.mxu0 0.0
        %3431 = vmatpush1.msra.mxu0 0.0
        %3432 = vmatprep.subr.mxu0 0.0
        %3433 = vmatpush1.msra.mxu0 0.0
        %3434 = vmatprep.subr.mxu0 0.0
        %3435 = vmatpush1.msra.mxu0 0.0
        %3436 = vmatprep.subr.mxu0 0.0
        %3437 = vmatpush1.msra.mxu0 0.0
        %3438 = vmatprep.subr.mxu0 0.0
        %3439 = vmatpush1.msra.mxu0 0.0
        %3440 = vmatprep.subr.mxu0 0.0
        %3441 = vmatpush1.msra.mxu0 0.0
        %3442 = vmatprep.subr.mxu0 0.0
        %3443 = vmatpush1.msra.mxu0 0.0
        %3444 = vmatprep.subr.mxu0 0.0
        %3445 = vmatpush1.msra.mxu0 0.0
        %3446 = vmatprep.subr.mxu0 0.0
        %3447 = vmatpush1.msra.mxu0 0.0
        %3448 = vmatprep.subr.mxu0 0.0
        %3449 = vmatpush1.msra.mxu0 0.0
        %3450 = vmatprep.subr.mxu0 0.0
        %3451 = vmatpush1.msra.mxu0 0.0
        %3452 = vmatprep.subr.mxu0 0.0
        %3453 = vmatpush1.msra.mxu0 0.0
        %3454 = vmatprep.subr.mxu0 0.0
        %3455 = vmatpush1.msra.mxu0 0.0
        %3456 = vmatprep.subr.mxu0 0.0
        %3457 = vmatpush1.msra.mxu0 0.0
        %3458 = vmatprep.mubr.f32.mxu0 0.0
        %3459 = vmatmul.mubr.f32.gmra.mrb[0].mxu0 %v3392
        %v3460 = vpop.f32.mrb[0].mxu0
        %v3461 = vadd.f32 0.0, %v3460
        %v3462 = vpop.f32.mrb[0].mxu0
        %v3463 = vadd.f32 0.0, %v3462
        %3464 = vdwg.mxu0
        %3465 = vmatprep.subr.mxu0 0.0
        %3466 = vmatpush1.msra.mxu0 %v3290
        %3467 = vmatprep.subr.mxu0 0.0
        %3468 = vmatpush1.msra.mxu0 %v3293
        %3469 = vmatprep.subr.mxu0 0.0
        %3470 = vmatpush1.msra.mxu0 %v3296
        %3471 = vmatprep.subr.mxu0 0.0
        %3472 = vmatpush1.msra.mxu0 %v3299
        %3473 = vmatprep.subr.mxu0 0.0
        %3474 = vmatpush1.msra.mxu0 %v3302
        %3475 = vmatprep.subr.mxu0 0.0
        %3476 = vmatpush1.msra.mxu0 %v3305
        %3477 = vmatprep.subr.mxu0 0.0
        %3478 = vmatpush1.msra.mxu0 %v3308
        %3479 = vmatprep.subr.mxu0 0.0
        %3480 = vmatpush1.msra.mxu0 %v3311
        %3481 = vmatprep.subr.mxu0 0.0
        %3482 = vmatpush1.msra.mxu0 %v3314
        %3483 = vmatprep.subr.mxu0 0.0
        %3484 = vmatpush1.msra.mxu0 %v3317
        %3485 = vmatprep.subr.mxu0 0.0
        %3486 = vmatpush1.msra.mxu0 %v3320
        %3487 = vmatprep.subr.mxu0 0.0
        %3488 = vmatpush1.msra.mxu0 %v3323
        %3489 = vmatprep.subr.mxu0 0.0
        %3490 = vmatpush1.msra.mxu0 %v3326
        %3491 = vmatprep.subr.mxu0 0.0
        %3492 = vmatpush1.msra.mxu0 %v3329
        %3493 = vmatprep.subr.mxu0 0.0
        %3494 = vmatpush1.msra.mxu0 %v3332
        %3495 = vmatprep.subr.mxu0 0.0
        %3496 = vmatpush1.msra.mxu0 %v3335
        %3497 = vmatprep.subr.mxu0 0.0
        %3498 = vmatpush1.msra.mxu0 0.0
        %3499 = vmatprep.subr.mxu0 0.0
        %3500 = vmatpush1.msra.mxu0 0.0
        %3501 = vmatprep.subr.mxu0 0.0
        %3502 = vmatpush1.msra.mxu0 0.0
        %3503 = vmatprep.subr.mxu0 0.0
        %3504 = vmatpush1.msra.mxu0 0.0
        %3505 = vmatprep.subr.mxu0 0.0
        %3506 = vmatpush1.msra.mxu0 0.0
        %3507 = vmatprep.subr.mxu0 0.0
        %3508 = vmatpush1.msra.mxu0 0.0
        %3509 = vmatprep.subr.mxu0 0.0
        %3510 = vmatpush1.msra.mxu0 0.0
        %3511 = vmatprep.subr.mxu0 0.0
        %3512 = vmatpush1.msra.mxu0 0.0
        %3513 = vmatprep.subr.mxu0 0.0
        %3514 = vmatpush1.msra.mxu0 0.0
        %3515 = vmatprep.subr.mxu0 0.0
        %3516 = vmatpush1.msra.mxu0 0.0
        %3517 = vmatprep.subr.mxu0 0.0
        %3518 = vmatpush1.msra.mxu0 0.0
        %3519 = vmatprep.subr.mxu0 0.0
        %3520 = vmatpush1.msra.mxu0 0.0
        %3521 = vmatprep.subr.mxu0 0.0
        %3522 = vmatpush1.msra.mxu0 0.0
        %3523 = vmatprep.subr.mxu0 0.0
        %3524 = vmatpush1.msra.mxu0 0.0
        %3525 = vmatprep.subr.mxu0 0.0
        %3526 = vmatpush1.msra.mxu0 0.0
        %3527 = vmatprep.subr.mxu0 0.0
        %3528 = vmatpush1.msra.mxu0 0.0
        %3529 = vmatprep.mubr.f32.mxu0 0.0
        %3530 = vmatmul.mubr.f32.gmra.mrb[0].mxu0 %v3392
        %v3531 = vpop.f32.mrb[0].mxu0
        %v3532 = vadd.f32 0.0, %v3531
        %v3533 = vpop.f32.mrb[0].mxu0
        %3534 = vdwg.mxu0
        %v3536 = vcombine.high %v3461, %v3461
        %v3538 = vunpack.c.l.s4 1966171168
        %v3539 = vunpack.c.0.s8 %v3538
        %v3540 = vlaneseq
        %v3541 = vshrl.u32 %v3540, 7
        %v3542 = vsub.s32 %v3539, %v3541
        %v3543 = vrot.slane %v3461, %v3542
        %v3545 = vunpack.c.l.s4 1966171168
        %v3546 = vunpack.c.0.s8 %v3545
        %v3547 = vlaneseq
        %v3548 = vshrl.u32 %v3547, 7
        %v3549 = vsub.s32 %v3546, %v3548
        %v3550 = vrot.slane %v3536, %v3549
        %v3551 = vcombine.high %v3543, %v3543
        %v3552 = vcombine.high %v3550, %v3550
        %v3554 = vunpack.c.l.s4 1966171168
        %v3555 = vunpack.c.0.s8 %v3554
        %v3556 = vlaneseq
        %v3557 = vshrl.u32 %v3556, 7
        %v3558 = vsub.s32 %v3555, %v3557
        %v3559 = vrot.slane %v3543, %v3558
        %v3561 = vunpack.c.l.s4 1966171168
        %v3562 = vunpack.c.0.s8 %v3561
        %v3563 = vlaneseq
        %v3564 = vshrl.u32 %v3563, 7
        %v3565 = vsub.s32 %v3562, %v3564
        %v3566 = vrot.slane %v3550, %v3565
        %v3568 = vunpack.c.l.s4 1966171168
        %v3569 = vunpack.c.0.s8 %v3568
        %v3570 = vlaneseq
        %v3571 = vshrl.u32 %v3570, 7
        %v3572 = vsub.s32 %v3569, %v3571
        %v3573 = vrot.slane %v3551, %v3572
        %v3575 = vunpack.c.l.s4 1966171168
        %v3576 = vunpack.c.0.s8 %v3575
        %v3577 = vlaneseq
        %v3578 = vshrl.u32 %v3577, 7
        %v3579 = vsub.s32 %v3576, %v3578
        %v3580 = vrot.slane %v3552, %v3579
        %v3581 = vcombine.high %v3559, %v3559
        %v3582 = vcombine.high %v3566, %v3566
        %v3583 = vcombine.high %v3573, %v3573
        %v3584 = vcombine.high %v3580, %v3580
        %v3593 = vadd.f32 %v3273, %v3559
        %v3594 = vadd.f32 %v3275, %v3573
        %v3595 = vadd.f32 %v3277, %v3581
        %v3596 = vadd.f32 %v3279, %v3583
        %v3597 = vadd.f32 %v3281, %v3566
        %v3598 = vadd.f32 %v3283, %v3580
        %v3599 = vadd.f32 %v3285, %v3582
        %v3600 = vadd.f32 %v3287, %v3584
        %v3601 = vxor.u32 %v3593, 2147483648
        %v3602 = vxor.u32 %v3594, 2147483648
        %v3603 = vxor.u32 %v3595, 2147483648
        %v3604 = vxor.u32 %v3596, 2147483648
        %v3605 = vxor.u32 %v3597, 2147483648
        %v3606 = vxor.u32 %v3598, 2147483648
        %v3607 = vxor.u32 %v3599, 2147483648
        %v3608 = vxor.u32 %v3600, 2147483648
        %v3609 = vmul.f32 %v3601, 1.442695
        %v3610 = vpow.pop %v3609
        %v3611 = vmul.f32 %v3602, 1.442695
        %v3612 = vpow.pop %v3611
        %v3613 = vmul.f32 %v3603, 1.442695
        %v3614 = vpow.pop %v3613
        %v3615 = vmul.f32 %v3604, 1.442695
        %v3616 = vpow.pop %v3615
        %v3617 = vmul.f32 %v3605, 1.442695
        %v3618 = vpow.pop %v3617
        %v3619 = vmul.f32 %v3606, 1.442695
        %v3620 = vpow.pop %v3619
        %v3621 = vmul.f32 %v3607, 1.442695
        %v3622 = vpow.pop %v3621
        %v3623 = vmul.f32 %v3608, 1.442695
        %v3624 = vpow.pop %v3623
        %v3625 = vadd.f32 %v3610, 1.0
        %v3626 = vadd.f32 %v3612, 1.0
        %v3627 = vadd.f32 %v3614, 1.0
        %v3628 = vadd.f32 %v3616, 1.0
        %v3629 = vadd.f32 %v3618, 1.0
        %v3630 = vadd.f32 %v3620, 1.0
        %v3631 = vadd.f32 %v3622, 1.0
        %v3632 = vadd.f32 %v3624, 1.0
        %v3633 = vrcp.pop %v3625
        %v3634 = vmul.f32 1.0, %v3633
        %v3635 = vrcp.pop %v3626
        %v3636 = vmul.f32 1.0, %v3635
        %v3637 = vrcp.pop %v3627
        %v3638 = vmul.f32 1.0, %v3637
        %v3639 = vrcp.pop %v3628
        %v3640 = vmul.f32 1.0, %v3639
        %v3641 = vrcp.pop %v3629
        %v3642 = vmul.f32 1.0, %v3641
        %v3643 = vrcp.pop %v3630
        %v3644 = vmul.f32 1.0, %v3643
        %v3645 = vrcp.pop %v3631
        %v3646 = vmul.f32 1.0, %v3645
        %v3647 = vrcp.pop %v3632
        %v3648 = vmul.f32 1.0, %v3647
        %v3657 = vrot.slane %v3273, 1
        %v3658 = vrot.slane %v3275, 1
        %v3659 = vrot.slane %v3277, 1
        %v3660 = vrot.slane %v3279, 1
        %v3661 = vrot.slane %v3281, 1
        %v3662 = vrot.slane %v3283, 1
        %v3663 = vrot.slane %v3285, 1
        %v3664 = vrot.slane %v3287, 1
        %v3674 = vcombine.high %v3463, %v3463
        %v3676 = vunpack.c.l.s4 1966171168
        %v3677 = vunpack.c.0.s8 %v3676
        %v3678 = vlaneseq
        %v3679 = vshrl.u32 %v3678, 7
        %v3680 = vsub.s32 %v3677, %v3679
        %v3681 = vrot.slane %v3463, %v3680
        %v3683 = vunpack.c.l.s4 1966171168
        %v3684 = vunpack.c.0.s8 %v3683
        %v3685 = vlaneseq
        %v3686 = vshrl.u32 %v3685, 7
        %v3687 = vsub.s32 %v3684, %v3686
        %v3688 = vrot.slane %v3674, %v3687
        %v3689 = vcombine.high %v3681, %v3681
        %v3690 = vcombine.high %v3688, %v3688
        %v3692 = vunpack.c.l.s4 1966171168
        %v3693 = vunpack.c.0.s8 %v3692
        %v3694 = vlaneseq
        %v3695 = vshrl.u32 %v3694, 7
        %v3696 = vsub.s32 %v3693, %v3695
        %v3697 = vrot.slane %v3681, %v3696
        %v3699 = vunpack.c.l.s4 1966171168
        %v3700 = vunpack.c.0.s8 %v3699
        %v3701 = vlaneseq
        %v3702 = vshrl.u32 %v3701, 7
        %v3703 = vsub.s32 %v3700, %v3702
        %v3704 = vrot.slane %v3688, %v3703
        %v3706 = vunpack.c.l.s4 1966171168
        %v3707 = vunpack.c.0.s8 %v3706
        %v3708 = vlaneseq
        %v3709 = vshrl.u32 %v3708, 7
        %v3710 = vsub.s32 %v3707, %v3709
        %v3711 = vrot.slane %v3689, %v3710
        %v3713 = vunpack.c.l.s4 1966171168
        %v3714 = vunpack.c.0.s8 %v3713
        %v3715 = vlaneseq
        %v3716 = vshrl.u32 %v3715, 7
        %v3717 = vsub.s32 %v3714, %v3716
        %v3718 = vrot.slane %v3690, %v3717
        %v3719 = vcombine.high %v3697, %v3697
        %v3720 = vcombine.high %v3704, %v3704
        %v3721 = vcombine.high %v3711, %v3711
        %v3722 = vcombine.high %v3718, %v3718
        %v3731 = vadd.f32 %v3657, %v3697
        %v3732 = vadd.f32 %v3658, %v3711
        %v3733 = vadd.f32 %v3659, %v3719
        %v3734 = vadd.f32 %v3660, %v3721
        %v3735 = vadd.f32 %v3661, %v3704
        %v3736 = vadd.f32 %v3662, %v3718
        %v3737 = vadd.f32 %v3663, %v3720
        %v3738 = vadd.f32 %v3664, %v3722
        %v3739 = vxor.u32 %v3731, 2147483648
        %v3740 = vxor.u32 %v3732, 2147483648
        %v3741 = vxor.u32 %v3733, 2147483648
        %v3742 = vxor.u32 %v3734, 2147483648
        %v3743 = vxor.u32 %v3735, 2147483648
        %v3744 = vxor.u32 %v3736, 2147483648
        %v3745 = vxor.u32 %v3737, 2147483648
        %v3746 = vxor.u32 %v3738, 2147483648
        %v3747 = vmul.f32 %v3739, 1.442695
        %v3748 = vpow.pop %v3747
        %v3749 = vmul.f32 %v3740, 1.442695
        %v3750 = vpow.pop %v3749
        %v3751 = vmul.f32 %v3741, 1.442695
        %v3752 = vpow.pop %v3751
        %v3753 = vmul.f32 %v3742, 1.442695
        %v3754 = vpow.pop %v3753
        %v3755 = vmul.f32 %v3743, 1.442695
        %v3756 = vpow.pop %v3755
        %v3757 = vmul.f32 %v3744, 1.442695
        %v3758 = vpow.pop %v3757
        %v3759 = vmul.f32 %v3745, 1.442695
        %v3760 = vpow.pop %v3759
        %v3761 = vmul.f32 %v3746, 1.442695
        %v3762 = vpow.pop %v3761
        %v3763 = vadd.f32 %v3748, 1.0
        %v3764 = vadd.f32 %v3750, 1.0
        %v3765 = vadd.f32 %v3752, 1.0
        %v3766 = vadd.f32 %v3754, 1.0
        %v3767 = vadd.f32 %v3756, 1.0
        %v3768 = vadd.f32 %v3758, 1.0
        %v3769 = vadd.f32 %v3760, 1.0
        %v3770 = vadd.f32 %v3762, 1.0
        %v3771 = vrcp.pop %v3763
        %v3772 = vmul.f32 1.0, %v3771
        %v3773 = vrcp.pop %v3764
        %v3774 = vmul.f32 1.0, %v3773
        %v3775 = vrcp.pop %v3765
        %v3776 = vmul.f32 1.0, %v3775
        %v3777 = vrcp.pop %v3766
        %v3778 = vmul.f32 1.0, %v3777
        %v3779 = vrcp.pop %v3767
        %v3780 = vmul.f32 1.0, %v3779
        %v3781 = vrcp.pop %v3768
        %v3782 = vmul.f32 1.0, %v3781
        %v3783 = vrcp.pop %v3769
        %v3784 = vmul.f32 1.0, %v3783
        %v3785 = vrcp.pop %v3770
        %v3786 = vmul.f32 1.0, %v3785
        %v3787 = vadd.f32 %v3532, %v654
        %v3789 = vcombine.high %v3787, %v3787
        %v3791 = vunpack.c.l.s4 1966171168
        %v3792 = vunpack.c.0.s8 %v3791
        %v3793 = vlaneseq
        %v3794 = vshrl.u32 %v3793, 7
        %v3795 = vsub.s32 %v3792, %v3794
        %v3796 = vrot.slane %v3787, %v3795
        %v3798 = vunpack.c.l.s4 1966171168
        %v3799 = vunpack.c.0.s8 %v3798
        %v3800 = vlaneseq
        %v3801 = vshrl.u32 %v3800, 7
        %v3802 = vsub.s32 %v3799, %v3801
        %v3803 = vrot.slane %v3789, %v3802
        %v3804 = vcombine.high %v3796, %v3796
        %v3805 = vcombine.high %v3803, %v3803
        %v3807 = vunpack.c.l.s4 1966171168
        %v3808 = vunpack.c.0.s8 %v3807
        %v3809 = vlaneseq
        %v3810 = vshrl.u32 %v3809, 7
        %v3811 = vsub.s32 %v3808, %v3810
        %v3812 = vrot.slane %v3796, %v3811
        %v3814 = vunpack.c.l.s4 1966171168
        %v3815 = vunpack.c.0.s8 %v3814
        %v3816 = vlaneseq
        %v3817 = vshrl.u32 %v3816, 7
        %v3818 = vsub.s32 %v3815, %v3817
        %v3819 = vrot.slane %v3803, %v3818
        %v3821 = vunpack.c.l.s4 1966171168
        %v3822 = vunpack.c.0.s8 %v3821
        %v3823 = vlaneseq
        %v3824 = vshrl.u32 %v3823, 7
        %v3825 = vsub.s32 %v3822, %v3824
        %v3826 = vrot.slane %v3804, %v3825
        %v3828 = vunpack.c.l.s4 1966171168
        %v3829 = vunpack.c.0.s8 %v3828
        %v3830 = vlaneseq
        %v3831 = vshrl.u32 %v3830, 7
        %v3832 = vsub.s32 %v3829, %v3831
        %v3833 = vrot.slane %v3805, %v3832
        %v3834 = vcombine.high %v3812, %v3812
        %v3835 = vcombine.high %v3819, %v3819
        %v3836 = vcombine.high %v3826, %v3826
        %v3837 = vcombine.high %v3833, %v3833
        %v3846 = vmul.f32 %v3634, %v3812
        %v3847 = vmul.f32 %v3636, %v3826
        %v3848 = vmul.f32 %v3638, %v3834
        %v3849 = vmul.f32 %v3640, %v3836
        %v3850 = vmul.f32 %v3642, %v3819
        %v3851 = vmul.f32 %v3644, %v3833
        %v3852 = vmul.f32 %v3646, %v3835
        %v3853 = vmul.f32 %v3648, %v3837
        %v3854 = vrot.slane %v3273, 2
        %v3855 = vrot.slane %v3275, 2
        %v3856 = vrot.slane %v3277, 2
        %v3857 = vrot.slane %v3279, 2
        %v3858 = vrot.slane %v3281, 2
        %v3859 = vrot.slane %v3283, 2
        %v3860 = vrot.slane %v3285, 2
        %v3861 = vrot.slane %v3287, 2
        %v3870 = vadd.f32 %v3854, %v3846
        %v3871 = vadd.f32 %v3855, %v3847
        %v3872 = vadd.f32 %v3856, %v3848
        %v3873 = vadd.f32 %v3857, %v3849
        %v3874 = vadd.f32 %v3858, %v3850
        %v3875 = vadd.f32 %v3859, %v3851
        %v3876 = vadd.f32 %v3860, %v3852
        %v3877 = vadd.f32 %v3861, %v3853
        %v3878 = vtanh.pop %v3870
        %v3879 = vtanh.pop %v3871
        %v3880 = vtanh.pop %v3872
        %v3881 = vtanh.pop %v3873
        %v3882 = vtanh.pop %v3874
        %v3883 = vtanh.pop %v3875
        %v3884 = vtanh.pop %v3876
        %v3885 = vtanh.pop %v3877
        %v3886 = vsub.f32 1.0, %v3772
        %v3887 = vsub.f32 1.0, %v3774
        %v3888 = vsub.f32 1.0, %v3776
        %v3889 = vsub.f32 1.0, %v3778
        %v3890 = vsub.f32 1.0, %v3780
        %v3891 = vsub.f32 1.0, %v3782
        %v3892 = vsub.f32 1.0, %v3784
        %v3893 = vsub.f32 1.0, %v3786
        %v3894 = vmul.f32 %v3886, %v3878
        %v3895 = vmul.f32 %v3887, %v3879
        %v3896 = vmul.f32 %v3888, %v3880
        %v3897 = vmul.f32 %v3889, %v3881
        %v3898 = vmul.f32 %v3890, %v3882
        %v3899 = vmul.f32 %v3891, %v3883
        %v3900 = vmul.f32 %v3892, %v3884
        %v3901 = vmul.f32 %v3893, %v3885
        %v3902 = vmul.f32 %v3772, %v3256
        %v3903 = vmul.f32 %v3774, %v3257
        %v3904 = vmul.f32 %v3776, %v3258
        %v3905 = vmul.f32 %v3778, %v3259
        %v3906 = vmul.f32 %v3780, %v3260
        %v3907 = vmul.f32 %v3782, %v3261
        %v3908 = vmul.f32 %v3784, %v3262
        %v3909 = vmul.f32 %v3786, %v3263
        %v3910 = vadd.f32 %v3894, %v3902
        %v3911 = vadd.f32 %v3895, %v3903
        %v3912 = vadd.f32 %v3896, %v3904
        %v3913 = vadd.f32 %v3897, %v3905
        %v3914 = vadd.f32 %v3898, %v3906
        %v3915 = vadd.f32 %v3899, %v3907
        %v3916 = vadd.f32 %v3900, %v3908
        %v3917 = vadd.f32 %v3901, %v3909
        %3918 = vst [vmem:[#allocation4 + $0x4] sm:$0x1] %v3910
        %3919 = vst [vmem:[#allocation4 + $0xc] sm:$0x1] %v3911
        %3920 = vst [vmem:[#allocation4 + $0x14] sm:$0x1] %v3912
        %3921 = vst [vmem:[#allocation4 + $0x1c] sm:$0x1] %v3913
        %3922 = vst [vmem:[#allocation4 + $0x24] sm:$0x1] %v3914
        %3923 = vst [vmem:[#allocation4 + $0x2c] sm:$0x1] %v3915
        %3924 = vst [vmem:[#allocation4 + $0x34] sm:$0x1] %v3916
        %3925 = vst [vmem:[#allocation4 + $0x3c] sm:$0x1] %v3917
        %s3926 = scalar_lea.vmem [#allocation3], 5
        %v3927 = vld [vmem:[%s3926] ss:$8 sm:$0x7]
        %s3928 = scalar_lea.vmem [#allocation3], 29
        %v3929 = vld [vmem:[%s3928] ss:$8 sm:$0x7]
        %s3930 = scalar_lea.vmem [#allocation3], 53
        %v3931 = vld [vmem:[%s3930] ss:$8 sm:$0x7]
        %s3932 = scalar_lea.vmem [#allocation3], 77
        %v3933 = vld [vmem:[%s3932] ss:$8 sm:$0x7]
        %s3934 = scalar_lea.vmem [#allocation3], 101
        %v3935 = vld [vmem:[%s3934] ss:$8 sm:$0x7]
        %s3936 = scalar_lea.vmem [#allocation3], 125
        %v3937 = vld [vmem:[%s3936] ss:$8 sm:$0x7]
        %s3938 = scalar_lea.vmem [#allocation3], 149
        %v3939 = vld [vmem:[%s3938] ss:$8 sm:$0x7]
        %s3940 = scalar_lea.vmem [#allocation3], 173
        %v3941 = vld [vmem:[%s3940] ss:$8 sm:$0x7]
        %v3942 = vld [vmem:[%s2] sm:$0xff]
        %v3943 = vld [vmem:[%s2 + $0x8] sm:$0xff]
        %v3944 = vld [vmem:[%s2 + $0x10] sm:$0xff]
        %v3945 = vld [vmem:[%s2 + $0x18] sm:$0xff]
        %v3946 = vld [vmem:[%s2 + $0x20] sm:$0xff]
        %v3947 = vld [vmem:[%s2 + $0x28] sm:$0xff]
        %v3948 = vld [vmem:[%s2 + $0x30] sm:$0xff]
        %v3949 = vld [vmem:[%s2 + $0x38] sm:$0xff]
        %v3950 = vld [vmem:[%s2 + $0x40] sm:$0xff]
        %v3951 = vld [vmem:[%s2 + $0x48] sm:$0xff]
        %v3952 = vld [vmem:[%s2 + $0x50] sm:$0xff]
        %v3953 = vld [vmem:[%s2 + $0x58] sm:$0xff]
        %v3954 = vld [vmem:[%s2 + $0x60] sm:$0xff]
        %v3955 = vld [vmem:[%s2 + $0x68] sm:$0xff]
        %v3956 = vld [vmem:[%s2 + $0x70] sm:$0xff]
        %v3957 = vld [vmem:[%s2 + $0x78] sm:$0xff]
        %v3958 = vld [vmem:[%s2 + $0x80] sm:$0xff]
        %v3959 = vld [vmem:[%s2 + $0x88] sm:$0xff]
        %v3960 = vld [vmem:[%s2 + $0x90] sm:$0xff]
        %v3961 = vld [vmem:[%s2 + $0x98] sm:$0xff]
        %v3962 = vld [vmem:[%s2 + $0xa0] sm:$0xff]
        %v3963 = vld [vmem:[%s2 + $0xa8] sm:$0xff]
        %v3964 = vld [vmem:[%s2 + $0xb0] sm:$0xff]
        %v3965 = vld [vmem:[%s2 + $0xb8] sm:$0xff]
        %v3966 = vld [vmem:[%s2 + $0xc0] sm:$0xff]
        %v3967 = vld [vmem:[%s2 + $0xc8] sm:$0xff]
        %v3968 = vld [vmem:[%s2 + $0xd0] sm:$0xff]
        %v3969 = vld [vmem:[%s2 + $0xd8] sm:$0xff]
        %v3970 = vld [vmem:[%s2 + $0xe0] sm:$0xff]
        %v3971 = vld [vmem:[%s2 + $0xe8] sm:$0xff]
        %v3972 = vld [vmem:[%s2 + $0xf0] sm:$0xff]
        %v3973 = vld [vmem:[%s2 + $0xf8] sm:$0xff]
        %v3974 = vld [vmem:[%s2 + $0x100] sm:$0xff]
        %v3975 = vld [vmem:[%s2 + $0x108] sm:$0xff]
        %v3976 = vld [vmem:[%s2 + $0x110] sm:$0xff]
        %v3977 = vld [vmem:[%s2 + $0x118] sm:$0xff]
        %v3978 = vld [vmem:[%s2 + $0x120] sm:$0xff]
        %v3979 = vld [vmem:[%s2 + $0x128] sm:$0xff]
        %v3980 = vld [vmem:[%s2 + $0x130] sm:$0xff]
        %v3981 = vld [vmem:[%s2 + $0x138] sm:$0xff]
        %v3982 = vld [vmem:[%s2 + $0x140] sm:$0xff]
        %v3983 = vld [vmem:[%s2 + $0x148] sm:$0xff]
        %v3984 = vld [vmem:[%s2 + $0x150] sm:$0xff]
        %v3985 = vld [vmem:[%s2 + $0x158] sm:$0xff]
        %v3986 = vld [vmem:[%s2 + $0x160] sm:$0xff]
        %v3987 = vld [vmem:[%s2 + $0x168] sm:$0xff]
        %v3988 = vld [vmem:[%s2 + $0x170] sm:$0xff]
        %v3989 = vld [vmem:[%s2 + $0x178] sm:$0xff]
        %v3998 = vcombine.low %v3910, %v3911
        %v3999 = vcombine.low %v3912, %v3913
        %v4000 = vcombine.low %v3914, %v3915
        %v4001 = vcombine.low %v3916, %v3917
        %v4003 = vunpack.c.l.s4 1966171168
        %v4004 = vunpack.c.0.s8 %v4003
        %v4005 = vlaneseq
        %v4006 = vshrl.u32 %v4005, 7
        %v4007 = vsub.s32 %v4004, %v4006
        %v4008 = vrot.slane %v3998, %v4007
        %v4010 = vunpack.c.l.s4 1966171168
        %v4011 = vunpack.c.0.s8 %v4010
        %v4012 = vlaneseq
        %v4013 = vshrl.u32 %v4012, 7
        %v4014 = vsub.s32 %v4011, %v4013
        %v4015 = vrot.slane %v3999, %v4014
        %v4017 = vunpack.c.l.s4 1966171168
        %v4018 = vunpack.c.0.s8 %v4017
        %v4019 = vlaneseq
        %v4020 = vshrl.u32 %v4019, 7
        %v4021 = vsub.s32 %v4018, %v4020
        %v4022 = vrot.slane %v4000, %v4021
        %v4024 = vunpack.c.l.s4 1966171168
        %v4025 = vunpack.c.0.s8 %v4024
        %v4026 = vlaneseq
        %v4027 = vshrl.u32 %v4026, 7
        %v4028 = vsub.s32 %v4025, %v4027
        %v4029 = vrot.slane %v4001, %v4028
        %v4030 = vcombine.low %v4008, %v4015
        %v4031 = vcombine.low %v4022, %v4029
        %v4033 = vunpack.c.l.s4 1966171168
        %v4034 = vunpack.c.0.s8 %v4033
        %v4035 = vlaneseq
        %v4036 = vshrl.u32 %v4035, 7
        %v4037 = vsub.s32 %v4034, %v4036
        %v4038 = vrot.slane %v4030, %v4037
        %v4040 = vunpack.c.l.s4 1966171168
        %v4041 = vunpack.c.0.s8 %v4040
        %v4042 = vlaneseq
        %v4043 = vshrl.u32 %v4042, 7
        %v4044 = vsub.s32 %v4041, %v4043
        %v4045 = vrot.slane %v4031, %v4044
        %v4046 = vcombine.low %v4038, %v4045
        %4048 = vmatprep.subr.mxu0 %v3943
        %4049 = vmatpush1.msra.mxu0 %v3942
        %4050 = vmatprep.subr.mxu0 %v3946
        %4051 = vmatpush1.msra.mxu0 %v3945
        %4052 = vmatprep.subr.mxu0 %v3949
        %4053 = vmatpush1.msra.mxu0 %v3948
        %4054 = vmatprep.subr.mxu0 %v3952
        %4055 = vmatpush1.msra.mxu0 %v3951
        %4056 = vmatprep.subr.mxu0 %v3955
        %4057 = vmatpush1.msra.mxu0 %v3954
        %4058 = vmatprep.subr.mxu0 %v3958
        %4059 = vmatpush1.msra.mxu0 %v3957
        %4060 = vmatprep.subr.mxu0 %v3961
        %4061 = vmatpush1.msra.mxu0 %v3960
        %4062 = vmatprep.subr.mxu0 %v3964
        %4063 = vmatpush1.msra.mxu0 %v3963
        %4064 = vmatprep.subr.mxu0 %v3967
        %4065 = vmatpush1.msra.mxu0 %v3966
        %4066 = vmatprep.subr.mxu0 %v3970
        %4067 = vmatpush1.msra.mxu0 %v3969
        %4068 = vmatprep.subr.mxu0 %v3973
        %4069 = vmatpush1.msra.mxu0 %v3972
        %4070 = vmatprep.subr.mxu0 %v3976
        %4071 = vmatpush1.msra.mxu0 %v3975
        %4072 = vmatprep.subr.mxu0 %v3979
        %4073 = vmatpush1.msra.mxu0 %v3978
        %4074 = vmatprep.subr.mxu0 %v3982
        %4075 = vmatpush1.msra.mxu0 %v3981
        %4076 = vmatprep.subr.mxu0 %v3985
        %4077 = vmatpush1.msra.mxu0 %v3984
        %4078 = vmatprep.subr.mxu0 %v3988
        %4079 = vmatpush1.msra.mxu0 %v3987
        %4080 = vmatprep.subr.mxu0 0.0
        %4081 = vmatpush1.msra.mxu0 0.0
        %4082 = vmatprep.subr.mxu0 0.0
        %4083 = vmatpush1.msra.mxu0 0.0
        %4084 = vmatprep.subr.mxu0 0.0
        %4085 = vmatpush1.msra.mxu0 0.0
        %4086 = vmatprep.subr.mxu0 0.0
        %4087 = vmatpush1.msra.mxu0 0.0
        %4088 = vmatprep.subr.mxu0 0.0
        %4089 = vmatpush1.msra.mxu0 0.0
        %4090 = vmatprep.subr.mxu0 0.0
        %4091 = vmatpush1.msra.mxu0 0.0
        %4092 = vmatprep.subr.mxu0 0.0
        %4093 = vmatpush1.msra.mxu0 0.0
        %4094 = vmatprep.subr.mxu0 0.0
        %4095 = vmatpush1.msra.mxu0 0.0
        %4096 = vmatprep.subr.mxu0 0.0
        %4097 = vmatpush1.msra.mxu0 0.0
        %4098 = vmatprep.subr.mxu0 0.0
        %4099 = vmatpush1.msra.mxu0 0.0
        %4100 = vmatprep.subr.mxu0 0.0
        %4101 = vmatpush1.msra.mxu0 0.0
        %4102 = vmatprep.subr.mxu0 0.0
        %4103 = vmatpush1.msra.mxu0 0.0
        %4104 = vmatprep.subr.mxu0 0.0
        %4105 = vmatpush1.msra.mxu0 0.0
        %4106 = vmatprep.subr.mxu0 0.0
        %4107 = vmatpush1.msra.mxu0 0.0
        %4108 = vmatprep.subr.mxu0 0.0
        %4109 = vmatpush1.msra.mxu0 0.0
        %4110 = vmatprep.subr.mxu0 0.0
        %4111 = vmatpush1.msra.mxu0 0.0
        %4112 = vmatprep.mubr.f32.mxu0 0.0
        %4113 = vmatmul.mubr.f32.gmra.mrb[0].mxu0 %v4046
        %v4114 = vpop.f32.mrb[0].mxu0
        %v4115 = vadd.f32 0.0, %v4114
        %v4116 = vpop.f32.mrb[0].mxu0
        %v4117 = vadd.f32 0.0, %v4116
        %4118 = vdwg.mxu0
        %4119 = vmatprep.subr.mxu0 0.0
        %4120 = vmatpush1.msra.mxu0 %v3944
        %4121 = vmatprep.subr.mxu0 0.0
        %4122 = vmatpush1.msra.mxu0 %v3947
        %4123 = vmatprep.subr.mxu0 0.0
        %4124 = vmatpush1.msra.mxu0 %v3950
        %4125 = vmatprep.subr.mxu0 0.0
        %4126 = vmatpush1.msra.mxu0 %v3953
        %4127 = vmatprep.subr.mxu0 0.0
        %4128 = vmatpush1.msra.mxu0 %v3956
        %4129 = vmatprep.subr.mxu0 0.0
        %4130 = vmatpush1.msra.mxu0 %v3959
        %4131 = vmatprep.subr.mxu0 0.0
        %4132 = vmatpush1.msra.mxu0 %v3962
        %4133 = vmatprep.subr.mxu0 0.0
        %4134 = vmatpush1.msra.mxu0 %v3965
        %4135 = vmatprep.subr.mxu0 0.0
        %4136 = vmatpush1.msra.mxu0 %v3968
        %4137 = vmatprep.subr.mxu0 0.0
        %4138 = vmatpush1.msra.mxu0 %v3971
        %4139 = vmatprep.subr.mxu0 0.0
        %4140 = vmatpush1.msra.mxu0 %v3974
        %4141 = vmatprep.subr.mxu0 0.0
        %4142 = vmatpush1.msra.mxu0 %v3977
        %4143 = vmatprep.subr.mxu0 0.0
        %4144 = vmatpush1.msra.mxu0 %v3980
        %4145 = vmatprep.subr.mxu0 0.0
        %4146 = vmatpush1.msra.mxu0 %v3983
        %4147 = vmatprep.subr.mxu0 0.0
        %4148 = vmatpush1.msra.mxu0 %v3986
        %4149 = vmatprep.subr.mxu0 0.0
        %4150 = vmatpush1.msra.mxu0 %v3989
        %4151 = vmatprep.subr.mxu0 0.0
        %4152 = vmatpush1.msra.mxu0 0.0
        %4153 = vmatprep.subr.mxu0 0.0
        %4154 = vmatpush1.msra.mxu0 0.0
        %4155 = vmatprep.subr.mxu0 0.0
        %4156 = vmatpush1.msra.mxu0 0.0
        %4157 = vmatprep.subr.mxu0 0.0
        %4158 = vmatpush1.msra.mxu0 0.0
        %4159 = vmatprep.subr.mxu0 0.0
        %4160 = vmatpush1.msra.mxu0 0.0
        %4161 = vmatprep.subr.mxu0 0.0
        %4162 = vmatpush1.msra.mxu0 0.0
        %4163 = vmatprep.subr.mxu0 0.0
        %4164 = vmatpush1.msra.mxu0 0.0
        %4165 = vmatprep.subr.mxu0 0.0
        %4166 = vmatpush1.msra.mxu0 0.0
        %4167 = vmatprep.subr.mxu0 0.0
        %4168 = vmatpush1.msra.mxu0 0.0
        %4169 = vmatprep.subr.mxu0 0.0
        %4170 = vmatpush1.msra.mxu0 0.0
        %4171 = vmatprep.subr.mxu0 0.0
        %4172 = vmatpush1.msra.mxu0 0.0
        %4173 = vmatprep.subr.mxu0 0.0
        %4174 = vmatpush1.msra.mxu0 0.0
        %4175 = vmatprep.subr.mxu0 0.0
        %4176 = vmatpush1.msra.mxu0 0.0
        %4177 = vmatprep.subr.mxu0 0.0
        %4178 = vmatpush1.msra.mxu0 0.0
        %4179 = vmatprep.subr.mxu0 0.0
        %4180 = vmatpush1.msra.mxu0 0.0
        %4181 = vmatprep.subr.mxu0 0.0
        %4182 = vmatpush1.msra.mxu0 0.0
        %4183 = vmatprep.mubr.f32.mxu0 0.0
        %4184 = vmatmul.mubr.f32.gmra.mrb[0].mxu0 %v4046
        %v4185 = vpop.f32.mrb[0].mxu0
        %v4186 = vadd.f32 0.0, %v4185
        %v4187 = vpop.f32.mrb[0].mxu0
        %4188 = vdwg.mxu0
        %v4190 = vcombine.high %v4115, %v4115
        %v4192 = vunpack.c.l.s4 1966171168
        %v4193 = vunpack.c.0.s8 %v4192
        %v4194 = vlaneseq
        %v4195 = vshrl.u32 %v4194, 7
        %v4196 = vsub.s32 %v4193, %v4195
        %v4197 = vrot.slane %v4115, %v4196
        %v4199 = vunpack.c.l.s4 1966171168
        %v4200 = vunpack.c.0.s8 %v4199
        %v4201 = vlaneseq
        %v4202 = vshrl.u32 %v4201, 7
        %v4203 = vsub.s32 %v4200, %v4202
        %v4204 = vrot.slane %v4190, %v4203
        %v4205 = vcombine.high %v4197, %v4197
        %v4206 = vcombine.high %v4204, %v4204
        %v4208 = vunpack.c.l.s4 1966171168
        %v4209 = vunpack.c.0.s8 %v4208
        %v4210 = vlaneseq
        %v4211 = vshrl.u32 %v4210, 7
        %v4212 = vsub.s32 %v4209, %v4211
        %v4213 = vrot.slane %v4197, %v4212
        %v4215 = vunpack.c.l.s4 1966171168
        %v4216 = vunpack.c.0.s8 %v4215
        %v4217 = vlaneseq
        %v4218 = vshrl.u32 %v4217, 7
        %v4219 = vsub.s32 %v4216, %v4218
        %v4220 = vrot.slane %v4204, %v4219
        %v4222 = vunpack.c.l.s4 1966171168
        %v4223 = vunpack.c.0.s8 %v4222
        %v4224 = vlaneseq
        %v4225 = vshrl.u32 %v4224, 7
        %v4226 = vsub.s32 %v4223, %v4225
        %v4227 = vrot.slane %v4205, %v4226
        %v4229 = vunpack.c.l.s4 1966171168
        %v4230 = vunpack.c.0.s8 %v4229
        %v4231 = vlaneseq
        %v4232 = vshrl.u32 %v4231, 7
        %v4233 = vsub.s32 %v4230, %v4232
        %v4234 = vrot.slane %v4206, %v4233
        %v4235 = vcombine.high %v4213, %v4213
        %v4236 = vcombine.high %v4220, %v4220
        %v4237 = vcombine.high %v4227, %v4227
        %v4238 = vcombine.high %v4234, %v4234
        %v4247 = vadd.f32 %v3927, %v4213
        %v4248 = vadd.f32 %v3929, %v4227
        %v4249 = vadd.f32 %v3931, %v4235
        %v4250 = vadd.f32 %v3933, %v4237
        %v4251 = vadd.f32 %v3935, %v4220
        %v4252 = vadd.f32 %v3937, %v4234
        %v4253 = vadd.f32 %v3939, %v4236
        %v4254 = vadd.f32 %v3941, %v4238
        %v4255 = vxor.u32 %v4247, 2147483648
        %v4256 = vxor.u32 %v4248, 2147483648
        %v4257 = vxor.u32 %v4249, 2147483648
        %v4258 = vxor.u32 %v4250, 2147483648
        %v4259 = vxor.u32 %v4251, 2147483648
        %v4260 = vxor.u32 %v4252, 2147483648
        %v4261 = vxor.u32 %v4253, 2147483648
        %v4262 = vxor.u32 %v4254, 2147483648
        %v4263 = vmul.f32 %v4255, 1.442695
        %v4264 = vpow.pop %v4263
        %v4265 = vmul.f32 %v4256, 1.442695
        %v4266 = vpow.pop %v4265
        %v4267 = vmul.f32 %v4257, 1.442695
        %v4268 = vpow.pop %v4267
        %v4269 = vmul.f32 %v4258, 1.442695
        %v4270 = vpow.pop %v4269
        %v4271 = vmul.f32 %v4259, 1.442695
        %v4272 = vpow.pop %v4271
        %v4273 = vmul.f32 %v4260, 1.442695
        %v4274 = vpow.pop %v4273
        %v4275 = vmul.f32 %v4261, 1.442695
        %v4276 = vpow.pop %v4275
        %v4277 = vmul.f32 %v4262, 1.442695
        %v4278 = vpow.pop %v4277
        %v4279 = vadd.f32 %v4264, 1.0
        %v4280 = vadd.f32 %v4266, 1.0
        %v4281 = vadd.f32 %v4268, 1.0
        %v4282 = vadd.f32 %v4270, 1.0
        %v4283 = vadd.f32 %v4272, 1.0
        %v4284 = vadd.f32 %v4274, 1.0
        %v4285 = vadd.f32 %v4276, 1.0
        %v4286 = vadd.f32 %v4278, 1.0
        %v4287 = vrcp.pop %v4279
        %v4288 = vmul.f32 1.0, %v4287
        %v4289 = vrcp.pop %v4280
        %v4290 = vmul.f32 1.0, %v4289
        %v4291 = vrcp.pop %v4281
        %v4292 = vmul.f32 1.0, %v4291
        %v4293 = vrcp.pop %v4282
        %v4294 = vmul.f32 1.0, %v4293
        %v4295 = vrcp.pop %v4283
        %v4296 = vmul.f32 1.0, %v4295
        %v4297 = vrcp.pop %v4284
        %v4298 = vmul.f32 1.0, %v4297
        %v4299 = vrcp.pop %v4285
        %v4300 = vmul.f32 1.0, %v4299
        %v4301 = vrcp.pop %v4286
        %v4302 = vmul.f32 1.0, %v4301
        %v4311 = vrot.slane %v3927, 1
        %v4312 = vrot.slane %v3929, 1
        %v4313 = vrot.slane %v3931, 1
        %v4314 = vrot.slane %v3933, 1
        %v4315 = vrot.slane %v3935, 1
        %v4316 = vrot.slane %v3937, 1
        %v4317 = vrot.slane %v3939, 1
        %v4318 = vrot.slane %v3941, 1
        %v4328 = vcombine.high %v4117, %v4117
        %v4330 = vunpack.c.l.s4 1966171168
        %v4331 = vunpack.c.0.s8 %v4330
        %v4332 = vlaneseq
        %v4333 = vshrl.u32 %v4332, 7
        %v4334 = vsub.s32 %v4331, %v4333
        %v4335 = vrot.slane %v4117, %v4334
        %v4337 = vunpack.c.l.s4 1966171168
        %v4338 = vunpack.c.0.s8 %v4337
        %v4339 = vlaneseq
        %v4340 = vshrl.u32 %v4339, 7
        %v4341 = vsub.s32 %v4338, %v4340
        %v4342 = vrot.slane %v4328, %v4341
        %v4343 = vcombine.high %v4335, %v4335
        %v4344 = vcombine.high %v4342, %v4342
        %v4346 = vunpack.c.l.s4 1966171168
        %v4347 = vunpack.c.0.s8 %v4346
        %v4348 = vlaneseq
        %v4349 = vshrl.u32 %v4348, 7
        %v4350 = vsub.s32 %v4347, %v4349
        %v4351 = vrot.slane %v4335, %v4350
        %v4353 = vunpack.c.l.s4 1966171168
        %v4354 = vunpack.c.0.s8 %v4353
        %v4355 = vlaneseq
        %v4356 = vshrl.u32 %v4355, 7
        %v4357 = vsub.s32 %v4354, %v4356
        %v4358 = vrot.slane %v4342, %v4357
        %v4360 = vunpack.c.l.s4 1966171168
        %v4361 = vunpack.c.0.s8 %v4360
        %v4362 = vlaneseq
        %v4363 = vshrl.u32 %v4362, 7
        %v4364 = vsub.s32 %v4361, %v4363
        %v4365 = vrot.slane %v4343, %v4364
        %v4367 = vunpack.c.l.s4 1966171168
        %v4368 = vunpack.c.0.s8 %v4367
        %v4369 = vlaneseq
        %v4370 = vshrl.u32 %v4369, 7
        %v4371 = vsub.s32 %v4368, %v4370
        %v4372 = vrot.slane %v4344, %v4371
        %v4373 = vcombine.high %v4351, %v4351
        %v4374 = vcombine.high %v4358, %v4358
        %v4375 = vcombine.high %v4365, %v4365
        %v4376 = vcombine.high %v4372, %v4372
        %v4385 = vadd.f32 %v4311, %v4351
        %v4386 = vadd.f32 %v4312, %v4365
        %v4387 = vadd.f32 %v4313, %v4373
        %v4388 = vadd.f32 %v4314, %v4375
        %v4389 = vadd.f32 %v4315, %v4358
        %v4390 = vadd.f32 %v4316, %v4372
        %v4391 = vadd.f32 %v4317, %v4374
        %v4392 = vadd.f32 %v4318, %v4376
        %v4393 = vxor.u32 %v4385, 2147483648
        %v4394 = vxor.u32 %v4386, 2147483648
        %v4395 = vxor.u32 %v4387, 2147483648
        %v4396 = vxor.u32 %v4388, 2147483648
        %v4397 = vxor.u32 %v4389, 2147483648
        %v4398 = vxor.u32 %v4390, 2147483648
        %v4399 = vxor.u32 %v4391, 2147483648
        %v4400 = vxor.u32 %v4392, 2147483648
        %v4401 = vmul.f32 %v4393, 1.442695
        %v4402 = vpow.pop %v4401
        %v4403 = vmul.f32 %v4394, 1.442695
        %v4404 = vpow.pop %v4403
        %v4405 = vmul.f32 %v4395, 1.442695
        %v4406 = vpow.pop %v4405
        %v4407 = vmul.f32 %v4396, 1.442695
        %v4408 = vpow.pop %v4407
        %v4409 = vmul.f32 %v4397, 1.442695
        %v4410 = vpow.pop %v4409
        %v4411 = vmul.f32 %v4398, 1.442695
        %v4412 = vpow.pop %v4411
        %v4413 = vmul.f32 %v4399, 1.442695
        %v4414 = vpow.pop %v4413
        %v4415 = vmul.f32 %v4400, 1.442695
        %v4416 = vpow.pop %v4415
        %v4417 = vadd.f32 %v4402, 1.0
        %v4418 = vadd.f32 %v4404, 1.0
        %v4419 = vadd.f32 %v4406, 1.0
        %v4420 = vadd.f32 %v4408, 1.0
        %v4421 = vadd.f32 %v4410, 1.0
        %v4422 = vadd.f32 %v4412, 1.0
        %v4423 = vadd.f32 %v4414, 1.0
        %v4424 = vadd.f32 %v4416, 1.0
        %v4425 = vrcp.pop %v4417
        %v4426 = vmul.f32 1.0, %v4425
        %v4427 = vrcp.pop %v4418
        %v4428 = vmul.f32 1.0, %v4427
        %v4429 = vrcp.pop %v4419
        %v4430 = vmul.f32 1.0, %v4429
        %v4431 = vrcp.pop %v4420
        %v4432 = vmul.f32 1.0, %v4431
        %v4433 = vrcp.pop %v4421
        %v4434 = vmul.f32 1.0, %v4433
        %v4435 = vrcp.pop %v4422
        %v4436 = vmul.f32 1.0, %v4435
        %v4437 = vrcp.pop %v4423
        %v4438 = vmul.f32 1.0, %v4437
        %v4439 = vrcp.pop %v4424
        %v4440 = vmul.f32 1.0, %v4439
        %v4441 = vadd.f32 %v4186, %v654
        %v4443 = vcombine.high %v4441, %v4441
        %v4445 = vunpack.c.l.s4 1966171168
        %v4446 = vunpack.c.0.s8 %v4445
        %v4447 = vlaneseq
        %v4448 = vshrl.u32 %v4447, 7
        %v4449 = vsub.s32 %v4446, %v4448
        %v4450 = vrot.slane %v4441, %v4449
        %v4452 = vunpack.c.l.s4 1966171168
        %v4453 = vunpack.c.0.s8 %v4452
        %v4454 = vlaneseq
        %v4455 = vshrl.u32 %v4454, 7
        %v4456 = vsub.s32 %v4453, %v4455
        %v4457 = vrot.slane %v4443, %v4456
        %v4458 = vcombine.high %v4450, %v4450
        %v4459 = vcombine.high %v4457, %v4457
        %v4461 = vunpack.c.l.s4 1966171168
        %v4462 = vunpack.c.0.s8 %v4461
        %v4463 = vlaneseq
        %v4464 = vshrl.u32 %v4463, 7
        %v4465 = vsub.s32 %v4462, %v4464
        %v4466 = vrot.slane %v4450, %v4465
        %v4468 = vunpack.c.l.s4 1966171168
        %v4469 = vunpack.c.0.s8 %v4468
        %v4470 = vlaneseq
        %v4471 = vshrl.u32 %v4470, 7
        %v4472 = vsub.s32 %v4469, %v4471
        %v4473 = vrot.slane %v4457, %v4472
        %v4475 = vunpack.c.l.s4 1966171168
        %v4476 = vunpack.c.0.s8 %v4475
        %v4477 = vlaneseq
        %v4478 = vshrl.u32 %v4477, 7
        %v4479 = vsub.s32 %v4476, %v4478
        %v4480 = vrot.slane %v4458, %v4479
        %v4482 = vunpack.c.l.s4 1966171168
        %v4483 = vunpack.c.0.s8 %v4482
        %v4484 = vlaneseq
        %v4485 = vshrl.u32 %v4484, 7
        %v4486 = vsub.s32 %v4483, %v4485
        %v4487 = vrot.slane %v4459, %v4486
        %v4488 = vcombine.high %v4466, %v4466
        %v4489 = vcombine.high %v4473, %v4473
        %v4490 = vcombine.high %v4480, %v4480
        %v4491 = vcombine.high %v4487, %v4487
        %v4500 = vmul.f32 %v4288, %v4466
        %v4501 = vmul.f32 %v4290, %v4480
        %v4502 = vmul.f32 %v4292, %v4488
        %v4503 = vmul.f32 %v4294, %v4490
        %v4504 = vmul.f32 %v4296, %v4473
        %v4505 = vmul.f32 %v4298, %v4487
        %v4506 = vmul.f32 %v4300, %v4489
        %v4507 = vmul.f32 %v4302, %v4491
        %v4508 = vrot.slane %v3927, 2
        %v4509 = vrot.slane %v3929, 2
        %v4510 = vrot.slane %v3931, 2
        %v4511 = vrot.slane %v3933, 2
        %v4512 = vrot.slane %v3935, 2
        %v4513 = vrot.slane %v3937, 2
        %v4514 = vrot.slane %v3939, 2
        %v4515 = vrot.slane %v3941, 2
        %v4524 = vadd.f32 %v4508, %v4500
        %v4525 = vadd.f32 %v4509, %v4501
        %v4526 = vadd.f32 %v4510, %v4502
        %v4527 = vadd.f32 %v4511, %v4503
        %v4528 = vadd.f32 %v4512, %v4504
        %v4529 = vadd.f32 %v4513, %v4505
        %v4530 = vadd.f32 %v4514, %v4506
        %v4531 = vadd.f32 %v4515, %v4507
        %v4532 = vtanh.pop %v4524
        %v4533 = vtanh.pop %v4525
        %v4534 = vtanh.pop %v4526
        %v4535 = vtanh.pop %v4527
        %v4536 = vtanh.pop %v4528
        %v4537 = vtanh.pop %v4529
        %v4538 = vtanh.pop %v4530
        %v4539 = vtanh.pop %v4531
        %v4540 = vsub.f32 1.0, %v4426
        %v4541 = vsub.f32 1.0, %v4428
        %v4542 = vsub.f32 1.0, %v4430
        %v4543 = vsub.f32 1.0, %v4432
        %v4544 = vsub.f32 1.0, %v4434
        %v4545 = vsub.f32 1.0, %v4436
        %v4546 = vsub.f32 1.0, %v4438
        %v4547 = vsub.f32 1.0, %v4440
        %v4548 = vmul.f32 %v4540, %v4532
        %v4549 = vmul.f32 %v4541, %v4533
        %v4550 = vmul.f32 %v4542, %v4534
        %v4551 = vmul.f32 %v4543, %v4535
        %v4552 = vmul.f32 %v4544, %v4536
        %v4553 = vmul.f32 %v4545, %v4537
        %v4554 = vmul.f32 %v4546, %v4538
        %v4555 = vmul.f32 %v4547, %v4539
        %v4556 = vmul.f32 %v4426, %v3910
        %v4557 = vmul.f32 %v4428, %v3911
        %v4558 = vmul.f32 %v4430, %v3912
        %v4559 = vmul.f32 %v4432, %v3913
        %v4560 = vmul.f32 %v4434, %v3914
        %v4561 = vmul.f32 %v4436, %v3915
        %v4562 = vmul.f32 %v4438, %v3916
        %v4563 = vmul.f32 %v4440, %v3917
        %v4564 = vadd.f32 %v4548, %v4556
        %v4565 = vadd.f32 %v4549, %v4557
        %v4566 = vadd.f32 %v4550, %v4558
        %v4567 = vadd.f32 %v4551, %v4559
        %v4568 = vadd.f32 %v4552, %v4560
        %v4569 = vadd.f32 %v4553, %v4561
        %v4570 = vadd.f32 %v4554, %v4562
        %v4571 = vadd.f32 %v4555, %v4563
        %4572 = vst [vmem:[#allocation4 + $0x5] sm:$0x1] %v4564
        %4573 = vst [vmem:[#allocation4 + $0xd] sm:$0x1] %v4565
        %4574 = vst [vmem:[#allocation4 + $0x15] sm:$0x1] %v4566
        %4575 = vst [vmem:[#allocation4 + $0x1d] sm:$0x1] %v4567
        %4576 = vst [vmem:[#allocation4 + $0x25] sm:$0x1] %v4568
        %4577 = vst [vmem:[#allocation4 + $0x2d] sm:$0x1] %v4569
        %4578 = vst [vmem:[#allocation4 + $0x35] sm:$0x1] %v4570
        %4579 = vst [vmem:[#allocation4 + $0x3d] sm:$0x1] %v4571
        %s4580 = scalar_lea.vmem [#allocation3], 6
        %v4581 = vld [vmem:[%s4580] ss:$8 sm:$0x7]
        %s4582 = scalar_lea.vmem [#allocation3], 30
        %v4583 = vld [vmem:[%s4582] ss:$8 sm:$0x7]
        %s4584 = scalar_lea.vmem [#allocation3], 54
        %v4585 = vld [vmem:[%s4584] ss:$8 sm:$0x7]
        %s4586 = scalar_lea.vmem [#allocation3], 78
        %v4587 = vld [vmem:[%s4586] ss:$8 sm:$0x7]
        %s4588 = scalar_lea.vmem [#allocation3], 102
        %v4589 = vld [vmem:[%s4588] ss:$8 sm:$0x7]
        %s4590 = scalar_lea.vmem [#allocation3], 126
        %v4591 = vld [vmem:[%s4590] ss:$8 sm:$0x7]
        %s4592 = scalar_lea.vmem [#allocation3], 150
        %v4593 = vld [vmem:[%s4592] ss:$8 sm:$0x7]
        %s4594 = scalar_lea.vmem [#allocation3], 174
        %v4595 = vld [vmem:[%s4594] ss:$8 sm:$0x7]
        %v4596 = vld [vmem:[%s2] sm:$0xff]
        %v4597 = vld [vmem:[%s2 + $0x8] sm:$0xff]
        %v4598 = vld [vmem:[%s2 + $0x10] sm:$0xff]
        %v4599 = vld [vmem:[%s2 + $0x18] sm:$0xff]
        %v4600 = vld [vmem:[%s2 + $0x20] sm:$0xff]
        %v4601 = vld [vmem:[%s2 + $0x28] sm:$0xff]
        %v4602 = vld [vmem:[%s2 + $0x30] sm:$0xff]
        %v4603 = vld [vmem:[%s2 + $0x38] sm:$0xff]
        %v4604 = vld [vmem:[%s2 + $0x40] sm:$0xff]
        %v4605 = vld [vmem:[%s2 + $0x48] sm:$0xff]
        %v4606 = vld [vmem:[%s2 + $0x50] sm:$0xff]
        %v4607 = vld [vmem:[%s2 + $0x58] sm:$0xff]
        %v4608 = vld [vmem:[%s2 + $0x60] sm:$0xff]
        %v4609 = vld [vmem:[%s2 + $0x68] sm:$0xff]
        %v4610 = vld [vmem:[%s2 + $0x70] sm:$0xff]
        %v4611 = vld [vmem:[%s2 + $0x78] sm:$0xff]
        %v4612 = vld [vmem:[%s2 + $0x80] sm:$0xff]
        %v4613 = vld [vmem:[%s2 + $0x88] sm:$0xff]
        %v4614 = vld [vmem:[%s2 + $0x90] sm:$0xff]
        %v4615 = vld [vmem:[%s2 + $0x98] sm:$0xff]
        %v4616 = vld [vmem:[%s2 + $0xa0] sm:$0xff]
        %v4617 = vld [vmem:[%s2 + $0xa8] sm:$0xff]
        %v4618 = vld [vmem:[%s2 + $0xb0] sm:$0xff]
        %v4619 = vld [vmem:[%s2 + $0xb8] sm:$0xff]
        %v4620 = vld [vmem:[%s2 + $0xc0] sm:$0xff]
        %v4621 = vld [vmem:[%s2 + $0xc8] sm:$0xff]
        %v4622 = vld [vmem:[%s2 + $0xd0] sm:$0xff]
        %v4623 = vld [vmem:[%s2 + $0xd8] sm:$0xff]
        %v4624 = vld [vmem:[%s2 + $0xe0] sm:$0xff]
        %v4625 = vld [vmem:[%s2 + $0xe8] sm:$0xff]
        %v4626 = vld [vmem:[%s2 + $0xf0] sm:$0xff]
        %v4627 = vld [vmem:[%s2 + $0xf8] sm:$0xff]
        %v4628 = vld [vmem:[%s2 + $0x100] sm:$0xff]
        %v4629 = vld [vmem:[%s2 + $0x108] sm:$0xff]
        %v4630 = vld [vmem:[%s2 + $0x110] sm:$0xff]
        %v4631 = vld [vmem:[%s2 + $0x118] sm:$0xff]
        %v4632 = vld [vmem:[%s2 + $0x120] sm:$0xff]
        %v4633 = vld [vmem:[%s2 + $0x128] sm:$0xff]
        %v4634 = vld [vmem:[%s2 + $0x130] sm:$0xff]
        %v4635 = vld [vmem:[%s2 + $0x138] sm:$0xff]
        %v4636 = vld [vmem:[%s2 + $0x140] sm:$0xff]
        %v4637 = vld [vmem:[%s2 + $0x148] sm:$0xff]
        %v4638 = vld [vmem:[%s2 + $0x150] sm:$0xff]
        %v4639 = vld [vmem:[%s2 + $0x158] sm:$0xff]
        %v4640 = vld [vmem:[%s2 + $0x160] sm:$0xff]
        %v4641 = vld [vmem:[%s2 + $0x168] sm:$0xff]
        %v4642 = vld [vmem:[%s2 + $0x170] sm:$0xff]
        %v4643 = vld [vmem:[%s2 + $0x178] sm:$0xff]
        %v4652 = vcombine.low %v4564, %v4565
        %v4653 = vcombine.low %v4566, %v4567
        %v4654 = vcombine.low %v4568, %v4569
        %v4655 = vcombine.low %v4570, %v4571
        %v4657 = vunpack.c.l.s4 1966171168
        %v4658 = vunpack.c.0.s8 %v4657
        %v4659 = vlaneseq
        %v4660 = vshrl.u32 %v4659, 7
        %v4661 = vsub.s32 %v4658, %v4660
        %v4662 = vrot.slane %v4652, %v4661
        %v4664 = vunpack.c.l.s4 1966171168
        %v4665 = vunpack.c.0.s8 %v4664
        %v4666 = vlaneseq
        %v4667 = vshrl.u32 %v4666, 7
        %v4668 = vsub.s32 %v4665, %v4667
        %v4669 = vrot.slane %v4653, %v4668
        %v4671 = vunpack.c.l.s4 1966171168
        %v4672 = vunpack.c.0.s8 %v4671
        %v4673 = vlaneseq
        %v4674 = vshrl.u32 %v4673, 7
        %v4675 = vsub.s32 %v4672, %v4674
        %v4676 = vrot.slane %v4654, %v4675
        %v4678 = vunpack.c.l.s4 1966171168
        %v4679 = vunpack.c.0.s8 %v4678
        %v4680 = vlaneseq
        %v4681 = vshrl.u32 %v4680, 7
        %v4682 = vsub.s32 %v4679, %v4681
        %v4683 = vrot.slane %v4655, %v4682
        %v4684 = vcombine.low %v4662, %v4669
        %v4685 = vcombine.low %v4676, %v4683
        %v4687 = vunpack.c.l.s4 1966171168
        %v4688 = vunpack.c.0.s8 %v4687
        %v4689 = vlaneseq
        %v4690 = vshrl.u32 %v4689, 7
        %v4691 = vsub.s32 %v4688, %v4690
        %v4692 = vrot.slane %v4684, %v4691
        %v4694 = vunpack.c.l.s4 1966171168
        %v4695 = vunpack.c.0.s8 %v4694
        %v4696 = vlaneseq
        %v4697 = vshrl.u32 %v4696, 7
        %v4698 = vsub.s32 %v4695, %v4697
        %v4699 = vrot.slane %v4685, %v4698
        %v4700 = vcombine.low %v4692, %v4699
        %4702 = vmatprep.subr.mxu0 %v4597
        %4703 = vmatpush1.msra.mxu0 %v4596
        %4704 = vmatprep.subr.mxu0 %v4600
        %4705 = vmatpush1.msra.mxu0 %v4599
        %4706 = vmatprep.subr.mxu0 %v4603
        %4707 = vmatpush1.msra.mxu0 %v4602
        %4708 = vmatprep.subr.mxu0 %v4606
        %4709 = vmatpush1.msra.mxu0 %v4605
        %4710 = vmatprep.subr.mxu0 %v4609
        %4711 = vmatpush1.msra.mxu0 %v4608
        %4712 = vmatprep.subr.mxu0 %v4612
        %4713 = vmatpush1.msra.mxu0 %v4611
        %4714 = vmatprep.subr.mxu0 %v4615
        %4715 = vmatpush1.msra.mxu0 %v4614
        %4716 = vmatprep.subr.mxu0 %v4618
        %4717 = vmatpush1.msra.mxu0 %v4617
        %4718 = vmatprep.subr.mxu0 %v4621
        %4719 = vmatpush1.msra.mxu0 %v4620
        %4720 = vmatprep.subr.mxu0 %v4624
        %4721 = vmatpush1.msra.mxu0 %v4623
        %4722 = vmatprep.subr.mxu0 %v4627
        %4723 = vmatpush1.msra.mxu0 %v4626
        %4724 = vmatprep.subr.mxu0 %v4630
        %4725 = vmatpush1.msra.mxu0 %v4629
        %4726 = vmatprep.subr.mxu0 %v4633
        %4727 = vmatpush1.msra.mxu0 %v4632
        %4728 = vmatprep.subr.mxu0 %v4636
        %4729 = vmatpush1.msra.mxu0 %v4635
        %4730 = vmatprep.subr.mxu0 %v4639
        %4731 = vmatpush1.msra.mxu0 %v4638
        %4732 = vmatprep.subr.mxu0 %v4642
        %4733 = vmatpush1.msra.mxu0 %v4641
        %4734 = vmatprep.subr.mxu0 0.0
        %4735 = vmatpush1.msra.mxu0 0.0
        %4736 = vmatprep.subr.mxu0 0.0
        %4737 = vmatpush1.msra.mxu0 0.0
        %4738 = vmatprep.subr.mxu0 0.0
        %4739 = vmatpush1.msra.mxu0 0.0
        %4740 = vmatprep.subr.mxu0 0.0
        %4741 = vmatpush1.msra.mxu0 0.0
        %4742 = vmatprep.subr.mxu0 0.0
        %4743 = vmatpush1.msra.mxu0 0.0
        %4744 = vmatprep.subr.mxu0 0.0
        %4745 = vmatpush1.msra.mxu0 0.0
        %4746 = vmatprep.subr.mxu0 0.0
        %4747 = vmatpush1.msra.mxu0 0.0
        %4748 = vmatprep.subr.mxu0 0.0
        %4749 = vmatpush1.msra.mxu0 0.0
        %4750 = vmatprep.subr.mxu0 0.0
        %4751 = vmatpush1.msra.mxu0 0.0
        %4752 = vmatprep.subr.mxu0 0.0
        %4753 = vmatpush1.msra.mxu0 0.0
        %4754 = vmatprep.subr.mxu0 0.0
        %4755 = vmatpush1.msra.mxu0 0.0
        %4756 = vmatprep.subr.mxu0 0.0
        %4757 = vmatpush1.msra.mxu0 0.0
        %4758 = vmatprep.subr.mxu0 0.0
        %4759 = vmatpush1.msra.mxu0 0.0
        %4760 = vmatprep.subr.mxu0 0.0
        %4761 = vmatpush1.msra.mxu0 0.0
        %4762 = vmatprep.subr.mxu0 0.0
        %4763 = vmatpush1.msra.mxu0 0.0
        %4764 = vmatprep.subr.mxu0 0.0
        %4765 = vmatpush1.msra.mxu0 0.0
        %4766 = vmatprep.mubr.f32.mxu0 0.0
        %4767 = vmatmul.mubr.f32.gmra.mrb[0].mxu0 %v4700
        %v4768 = vpop.f32.mrb[0].mxu0
        %v4769 = vadd.f32 0.0, %v4768
        %v4770 = vpop.f32.mrb[0].mxu0
        %v4771 = vadd.f32 0.0, %v4770
        %4772 = vdwg.mxu0
        %4773 = vmatprep.subr.mxu0 0.0
        %4774 = vmatpush1.msra.mxu0 %v4598
        %4775 = vmatprep.subr.mxu0 0.0
        %4776 = vmatpush1.msra.mxu0 %v4601
        %4777 = vmatprep.subr.mxu0 0.0
        %4778 = vmatpush1.msra.mxu0 %v4604
        %4779 = vmatprep.subr.mxu0 0.0
        %4780 = vmatpush1.msra.mxu0 %v4607
        %4781 = vmatprep.subr.mxu0 0.0
        %4782 = vmatpush1.msra.mxu0 %v4610
        %4783 = vmatprep.subr.mxu0 0.0
        %4784 = vmatpush1.msra.mxu0 %v4613
        %4785 = vmatprep.subr.mxu0 0.0
        %4786 = vmatpush1.msra.mxu0 %v4616
        %4787 = vmatprep.subr.mxu0 0.0
        %4788 = vmatpush1.msra.mxu0 %v4619
        %4789 = vmatprep.subr.mxu0 0.0
        %4790 = vmatpush1.msra.mxu0 %v4622
        %4791 = vmatprep.subr.mxu0 0.0
        %4792 = vmatpush1.msra.mxu0 %v4625
        %4793 = vmatprep.subr.mxu0 0.0
        %4794 = vmatpush1.msra.mxu0 %v4628
        %4795 = vmatprep.subr.mxu0 0.0
        %4796 = vmatpush1.msra.mxu0 %v4631
        %4797 = vmatprep.subr.mxu0 0.0
        %4798 = vmatpush1.msra.mxu0 %v4634
        %4799 = vmatprep.subr.mxu0 0.0
        %4800 = vmatpush1.msra.mxu0 %v4637
        %4801 = vmatprep.subr.mxu0 0.0
        %4802 = vmatpush1.msra.mxu0 %v4640
        %4803 = vmatprep.subr.mxu0 0.0
        %4804 = vmatpush1.msra.mxu0 %v4643
        %4805 = vmatprep.subr.mxu0 0.0
        %4806 = vmatpush1.msra.mxu0 0.0
        %4807 = vmatprep.subr.mxu0 0.0
        %4808 = vmatpush1.msra.mxu0 0.0
        %4809 = vmatprep.subr.mxu0 0.0
        %4810 = vmatpush1.msra.mxu0 0.0
        %4811 = vmatprep.subr.mxu0 0.0
        %4812 = vmatpush1.msra.mxu0 0.0
        %4813 = vmatprep.subr.mxu0 0.0
        %4814 = vmatpush1.msra.mxu0 0.0
        %4815 = vmatprep.subr.mxu0 0.0
        %4816 = vmatpush1.msra.mxu0 0.0
        %4817 = vmatprep.subr.mxu0 0.0
        %4818 = vmatpush1.msra.mxu0 0.0
        %4819 = vmatprep.subr.mxu0 0.0
        %4820 = vmatpush1.msra.mxu0 0.0
        %4821 = vmatprep.subr.mxu0 0.0
        %4822 = vmatpush1.msra.mxu0 0.0
        %4823 = vmatprep.subr.mxu0 0.0
        %4824 = vmatpush1.msra.mxu0 0.0
        %4825 = vmatprep.subr.mxu0 0.0
        %4826 = vmatpush1.msra.mxu0 0.0
        %4827 = vmatprep.subr.mxu0 0.0
        %4828 = vmatpush1.msra.mxu0 0.0
        %4829 = vmatprep.subr.mxu0 0.0
        %4830 = vmatpush1.msra.mxu0 0.0
        %4831 = vmatprep.subr.mxu0 0.0
        %4832 = vmatpush1.msra.mxu0 0.0
        %4833 = vmatprep.subr.mxu0 0.0
        %4834 = vmatpush1.msra.mxu0 0.0
        %4835 = vmatprep.subr.mxu0 0.0
        %4836 = vmatpush1.msra.mxu0 0.0
        %4837 = vmatprep.mubr.f32.mxu0 0.0
        %4838 = vmatmul.mubr.f32.gmra.mrb[0].mxu0 %v4700
        %v4839 = vpop.f32.mrb[0].mxu0
        %v4840 = vadd.f32 0.0, %v4839
        %v4841 = vpop.f32.mrb[0].mxu0
        %4842 = vdwg.mxu0
        %v4844 = vcombine.high %v4769, %v4769
        %v4846 = vunpack.c.l.s4 1966171168
        %v4847 = vunpack.c.0.s8 %v4846
        %v4848 = vlaneseq
        %v4849 = vshrl.u32 %v4848, 7
        %v4850 = vsub.s32 %v4847, %v4849
        %v4851 = vrot.slane %v4769, %v4850
        %v4853 = vunpack.c.l.s4 1966171168
        %v4854 = vunpack.c.0.s8 %v4853
        %v4855 = vlaneseq
        %v4856 = vshrl.u32 %v4855, 7
        %v4857 = vsub.s32 %v4854, %v4856
        %v4858 = vrot.slane %v4844, %v4857
        %v4859 = vcombine.high %v4851, %v4851
        %v4860 = vcombine.high %v4858, %v4858
        %v4862 = vunpack.c.l.s4 1966171168
        %v4863 = vunpack.c.0.s8 %v4862
        %v4864 = vlaneseq
        %v4865 = vshrl.u32 %v4864, 7
        %v4866 = vsub.s32 %v4863, %v4865
        %v4867 = vrot.slane %v4851, %v4866
        %v4869 = vunpack.c.l.s4 1966171168
        %v4870 = vunpack.c.0.s8 %v4869
        %v4871 = vlaneseq
        %v4872 = vshrl.u32 %v4871, 7
        %v4873 = vsub.s32 %v4870, %v4872
        %v4874 = vrot.slane %v4858, %v4873
        %v4876 = vunpack.c.l.s4 1966171168
        %v4877 = vunpack.c.0.s8 %v4876
        %v4878 = vlaneseq
        %v4879 = vshrl.u32 %v4878, 7
        %v4880 = vsub.s32 %v4877, %v4879
        %v4881 = vrot.slane %v4859, %v4880
        %v4883 = vunpack.c.l.s4 1966171168
        %v4884 = vunpack.c.0.s8 %v4883
        %v4885 = vlaneseq
        %v4886 = vshrl.u32 %v4885, 7
        %v4887 = vsub.s32 %v4884, %v4886
        %v4888 = vrot.slane %v4860, %v4887
        %v4889 = vcombine.high %v4867, %v4867
        %v4890 = vcombine.high %v4874, %v4874
        %v4891 = vcombine.high %v4881, %v4881
        %v4892 = vcombine.high %v4888, %v4888
        %v4901 = vadd.f32 %v4581, %v4867
        %v4902 = vadd.f32 %v4583, %v4881
        %v4903 = vadd.f32 %v4585, %v4889
        %v4904 = vadd.f32 %v4587, %v4891
        %v4905 = vadd.f32 %v4589, %v4874
        %v4906 = vadd.f32 %v4591, %v4888
        %v4907 = vadd.f32 %v4593, %v4890
        %v4908 = vadd.f32 %v4595, %v4892
        %v4909 = vxor.u32 %v4901, 2147483648
        %v4910 = vxor.u32 %v4902, 2147483648
        %v4911 = vxor.u32 %v4903, 2147483648
        %v4912 = vxor.u32 %v4904, 2147483648
        %v4913 = vxor.u32 %v4905, 2147483648
        %v4914 = vxor.u32 %v4906, 2147483648
        %v4915 = vxor.u32 %v4907, 2147483648
        %v4916 = vxor.u32 %v4908, 2147483648
        %v4917 = vmul.f32 %v4909, 1.442695
        %v4918 = vpow.pop %v4917
        %v4919 = vmul.f32 %v4910, 1.442695
        %v4920 = vpow.pop %v4919
        %v4921 = vmul.f32 %v4911, 1.442695
        %v4922 = vpow.pop %v4921
        %v4923 = vmul.f32 %v4912, 1.442695
        %v4924 = vpow.pop %v4923
        %v4925 = vmul.f32 %v4913, 1.442695
        %v4926 = vpow.pop %v4925
        %v4927 = vmul.f32 %v4914, 1.442695
        %v4928 = vpow.pop %v4927
        %v4929 = vmul.f32 %v4915, 1.442695
        %v4930 = vpow.pop %v4929
        %v4931 = vmul.f32 %v4916, 1.442695
        %v4932 = vpow.pop %v4931
        %v4933 = vadd.f32 %v4918, 1.0
        %v4934 = vadd.f32 %v4920, 1.0
        %v4935 = vadd.f32 %v4922, 1.0
        %v4936 = vadd.f32 %v4924, 1.0
        %v4937 = vadd.f32 %v4926, 1.0
        %v4938 = vadd.f32 %v4928, 1.0
        %v4939 = vadd.f32 %v4930, 1.0
        %v4940 = vadd.f32 %v4932, 1.0
        %v4941 = vrcp.pop %v4933
        %v4942 = vmul.f32 1.0, %v4941
        %v4943 = vrcp.pop %v4934
        %v4944 = vmul.f32 1.0, %v4943
        %v4945 = vrcp.pop %v4935
        %v4946 = vmul.f32 1.0, %v4945
        %v4947 = vrcp.pop %v4936
        %v4948 = vmul.f32 1.0, %v4947
        %v4949 = vrcp.pop %v4937
        %v4950 = vmul.f32 1.0, %v4949
        %v4951 = vrcp.pop %v4938
        %v4952 = vmul.f32 1.0, %v4951
        %v4953 = vrcp.pop %v4939
        %v4954 = vmul.f32 1.0, %v4953
        %v4955 = vrcp.pop %v4940
        %v4956 = vmul.f32 1.0, %v4955
        %v4965 = vrot.slane %v4581, 1
        %v4966 = vrot.slane %v4583, 1
        %v4967 = vrot.slane %v4585, 1
        %v4968 = vrot.slane %v4587, 1
        %v4969 = vrot.slane %v4589, 1
        %v4970 = vrot.slane %v4591, 1
        %v4971 = vrot.slane %v4593, 1
        %v4972 = vrot.slane %v4595, 1
        %v4982 = vcombine.high %v4771, %v4771
        %v4984 = vunpack.c.l.s4 1966171168
        %v4985 = vunpack.c.0.s8 %v4984
        %v4986 = vlaneseq
        %v4987 = vshrl.u32 %v4986, 7
        %v4988 = vsub.s32 %v4985, %v4987
        %v4989 = vrot.slane %v4771, %v4988
        %v4991 = vunpack.c.l.s4 1966171168
        %v4992 = vunpack.c.0.s8 %v4991
        %v4993 = vlaneseq
        %v4994 = vshrl.u32 %v4993, 7
        %v4995 = vsub.s32 %v4992, %v4994
        %v4996 = vrot.slane %v4982, %v4995
        %v4997 = vcombine.high %v4989, %v4989
        %v4998 = vcombine.high %v4996, %v4996
        %v5000 = vunpack.c.l.s4 1966171168
        %v5001 = vunpack.c.0.s8 %v5000
        %v5002 = vlaneseq
        %v5003 = vshrl.u32 %v5002, 7
        %v5004 = vsub.s32 %v5001, %v5003
        %v5005 = vrot.slane %v4989, %v5004
        %v5007 = vunpack.c.l.s4 1966171168
        %v5008 = vunpack.c.0.s8 %v5007
        %v5009 = vlaneseq
        %v5010 = vshrl.u32 %v5009, 7
        %v5011 = vsub.s32 %v5008, %v5010
        %v5012 = vrot.slane %v4996, %v5011
        %v5014 = vunpack.c.l.s4 1966171168
        %v5015 = vunpack.c.0.s8 %v5014
        %v5016 = vlaneseq
        %v5017 = vshrl.u32 %v5016, 7
        %v5018 = vsub.s32 %v5015, %v5017
        %v5019 = vrot.slane %v4997, %v5018
        %v5021 = vunpack.c.l.s4 1966171168
        %v5022 = vunpack.c.0.s8 %v5021
        %v5023 = vlaneseq
        %v5024 = vshrl.u32 %v5023, 7
        %v5025 = vsub.s32 %v5022, %v5024
        %v5026 = vrot.slane %v4998, %v5025
        %v5027 = vcombine.high %v5005, %v5005
        %v5028 = vcombine.high %v5012, %v5012
        %v5029 = vcombine.high %v5019, %v5019
        %v5030 = vcombine.high %v5026, %v5026
        %v5039 = vadd.f32 %v4965, %v5005
        %v5040 = vadd.f32 %v4966, %v5019
        %v5041 = vadd.f32 %v4967, %v5027
        %v5042 = vadd.f32 %v4968, %v5029
        %v5043 = vadd.f32 %v4969, %v5012
        %v5044 = vadd.f32 %v4970, %v5026
        %v5045 = vadd.f32 %v4971, %v5028
        %v5046 = vadd.f32 %v4972, %v5030
        %v5047 = vxor.u32 %v5039, 2147483648
        %v5048 = vxor.u32 %v5040, 2147483648
        %v5049 = vxor.u32 %v5041, 2147483648
        %v5050 = vxor.u32 %v5042, 2147483648
        %v5051 = vxor.u32 %v5043, 2147483648
        %v5052 = vxor.u32 %v5044, 2147483648
        %v5053 = vxor.u32 %v5045, 2147483648
        %v5054 = vxor.u32 %v5046, 2147483648
        %v5055 = vmul.f32 %v5047, 1.442695
        %v5056 = vpow.pop %v5055
        %v5057 = vmul.f32 %v5048, 1.442695
        %v5058 = vpow.pop %v5057
        %v5059 = vmul.f32 %v5049, 1.442695
        %v5060 = vpow.pop %v5059
        %v5061 = vmul.f32 %v5050, 1.442695
        %v5062 = vpow.pop %v5061
        %v5063 = vmul.f32 %v5051, 1.442695
        %v5064 = vpow.pop %v5063
        %v5065 = vmul.f32 %v5052, 1.442695
        %v5066 = vpow.pop %v5065
        %v5067 = vmul.f32 %v5053, 1.442695
        %v5068 = vpow.pop %v5067
        %v5069 = vmul.f32 %v5054, 1.442695
        %v5070 = vpow.pop %v5069
        %v5071 = vadd.f32 %v5056, 1.0
        %v5072 = vadd.f32 %v5058, 1.0
        %v5073 = vadd.f32 %v5060, 1.0
        %v5074 = vadd.f32 %v5062, 1.0
        %v5075 = vadd.f32 %v5064, 1.0
        %v5076 = vadd.f32 %v5066, 1.0
        %v5077 = vadd.f32 %v5068, 1.0
        %v5078 = vadd.f32 %v5070, 1.0
        %v5079 = vrcp.pop %v5071
        %v5080 = vmul.f32 1.0, %v5079
        %v5081 = vrcp.pop %v5072
        %v5082 = vmul.f32 1.0, %v5081
        %v5083 = vrcp.pop %v5073
        %v5084 = vmul.f32 1.0, %v5083
        %v5085 = vrcp.pop %v5074
        %v5086 = vmul.f32 1.0, %v5085
        %v5087 = vrcp.pop %v5075
        %v5088 = vmul.f32 1.0, %v5087
        %v5089 = vrcp.pop %v5076
        %v5090 = vmul.f32 1.0, %v5089
        %v5091 = vrcp.pop %v5077
        %v5092 = vmul.f32 1.0, %v5091
        %v5093 = vrcp.pop %v5078
        %v5094 = vmul.f32 1.0, %v5093
        %v5095 = vadd.f32 %v4840, %v654
        %v5097 = vcombine.high %v5095, %v5095
        %v5099 = vunpack.c.l.s4 1966171168
        %v5100 = vunpack.c.0.s8 %v5099
        %v5101 = vlaneseq
        %v5102 = vshrl.u32 %v5101, 7
        %v5103 = vsub.s32 %v5100, %v5102
        %v5104 = vrot.slane %v5095, %v5103
        %v5106 = vunpack.c.l.s4 1966171168
        %v5107 = vunpack.c.0.s8 %v5106
        %v5108 = vlaneseq
        %v5109 = vshrl.u32 %v5108, 7
        %v5110 = vsub.s32 %v5107, %v5109
        %v5111 = vrot.slane %v5097, %v5110
        %v5112 = vcombine.high %v5104, %v5104
        %v5113 = vcombine.high %v5111, %v5111
        %v5115 = vunpack.c.l.s4 1966171168
        %v5116 = vunpack.c.0.s8 %v5115
        %v5117 = vlaneseq
        %v5118 = vshrl.u32 %v5117, 7
        %v5119 = vsub.s32 %v5116, %v5118
        %v5120 = vrot.slane %v5104, %v5119
        %v5122 = vunpack.c.l.s4 1966171168
        %v5123 = vunpack.c.0.s8 %v5122
        %v5124 = vlaneseq
        %v5125 = vshrl.u32 %v5124, 7
        %v5126 = vsub.s32 %v5123, %v5125
        %v5127 = vrot.slane %v5111, %v5126
        %v5129 = vunpack.c.l.s4 1966171168
        %v5130 = vunpack.c.0.s8 %v5129
        %v5131 = vlaneseq
        %v5132 = vshrl.u32 %v5131, 7
        %v5133 = vsub.s32 %v5130, %v5132
        %v5134 = vrot.slane %v5112, %v5133
        %v5136 = vunpack.c.l.s4 1966171168
        %v5137 = vunpack.c.0.s8 %v5136
        %v5138 = vlaneseq
        %v5139 = vshrl.u32 %v5138, 7
        %v5140 = vsub.s32 %v5137, %v5139
        %v5141 = vrot.slane %v5113, %v5140
        %v5142 = vcombine.high %v5120, %v5120
        %v5143 = vcombine.high %v5127, %v5127
        %v5144 = vcombine.high %v5134, %v5134
        %v5145 = vcombine.high %v5141, %v5141
        %v5154 = vmul.f32 %v4942, %v5120
        %v5155 = vmul.f32 %v4944, %v5134
        %v5156 = vmul.f32 %v4946, %v5142
        %v5157 = vmul.f32 %v4948, %v5144
        %v5158 = vmul.f32 %v4950, %v5127
        %v5159 = vmul.f32 %v4952, %v5141
        %v5160 = vmul.f32 %v4954, %v5143
        %v5161 = vmul.f32 %v4956, %v5145
        %v5162 = vrot.slane %v4581, 2
        %v5163 = vrot.slane %v4583, 2
        %v5164 = vrot.slane %v4585, 2
        %v5165 = vrot.slane %v4587, 2
        %v5166 = vrot.slane %v4589, 2
        %v5167 = vrot.slane %v4591, 2
        %v5168 = vrot.slane %v4593, 2
        %v5169 = vrot.slane %v4595, 2
        %v5178 = vadd.f32 %v5162, %v5154
        %v5179 = vadd.f32 %v5163, %v5155
        %v5180 = vadd.f32 %v5164, %v5156
        %v5181 = vadd.f32 %v5165, %v5157
        %v5182 = vadd.f32 %v5166, %v5158
        %v5183 = vadd.f32 %v5167, %v5159
        %v5184 = vadd.f32 %v5168, %v5160
        %v5185 = vadd.f32 %v5169, %v5161
        %v5186 = vtanh.pop %v5178
        %v5187 = vtanh.pop %v5179
        %v5188 = vtanh.pop %v5180
        %v5189 = vtanh.pop %v5181
        %v5190 = vtanh.pop %v5182
        %v5191 = vtanh.pop %v5183
        %v5192 = vtanh.pop %v5184
        %v5193 = vtanh.pop %v5185
        %v5194 = vsub.f32 1.0, %v5080
        %v5195 = vsub.f32 1.0, %v5082
        %v5196 = vsub.f32 1.0, %v5084
        %v5197 = vsub.f32 1.0, %v5086
        %v5198 = vsub.f32 1.0, %v5088
        %v5199 = vsub.f32 1.0, %v5090
        %v5200 = vsub.f32 1.0, %v5092
        %v5201 = vsub.f32 1.0, %v5094
        %v5202 = vmul.f32 %v5194, %v5186
        %v5203 = vmul.f32 %v5195, %v5187
        %v5204 = vmul.f32 %v5196, %v5188
        %v5205 = vmul.f32 %v5197, %v5189
        %v5206 = vmul.f32 %v5198, %v5190
        %v5207 = vmul.f32 %v5199, %v5191
        %v5208 = vmul.f32 %v5200, %v5192
        %v5209 = vmul.f32 %v5201, %v5193
        %v5210 = vmul.f32 %v5080, %v4564
        %v5211 = vmul.f32 %v5082, %v4565
        %v5212 = vmul.f32 %v5084, %v4566
        %v5213 = vmul.f32 %v5086, %v4567
        %v5214 = vmul.f32 %v5088, %v4568
        %v5215 = vmul.f32 %v5090, %v4569
        %v5216 = vmul.f32 %v5092, %v4570
        %v5217 = vmul.f32 %v5094, %v4571
        %v5218 = vadd.f32 %v5202, %v5210
        %v5219 = vadd.f32 %v5203, %v5211
        %v5220 = vadd.f32 %v5204, %v5212
        %v5221 = vadd.f32 %v5205, %v5213
        %v5222 = vadd.f32 %v5206, %v5214
        %v5223 = vadd.f32 %v5207, %v5215
        %v5224 = vadd.f32 %v5208, %v5216
        %v5225 = vadd.f32 %v5209, %v5217
        %5226 = vst [vmem:[#allocation4 + $0x6] sm:$0x1] %v5218
        %5227 = vst [vmem:[#allocation4 + $0xe] sm:$0x1] %v5219
        %5228 = vst [vmem:[#allocation4 + $0x16] sm:$0x1] %v5220
        %5229 = vst [vmem:[#allocation4 + $0x1e] sm:$0x1] %v5221
        %5230 = vst [vmem:[#allocation4 + $0x26] sm:$0x1] %v5222
        %5231 = vst [vmem:[#allocation4 + $0x2e] sm:$0x1] %v5223
        %5232 = vst [vmem:[#allocation4 + $0x36] sm:$0x1] %v5224
        %5233 = vst [vmem:[#allocation4 + $0x3e] sm:$0x1] %v5225
        %s5234 = scalar_lea.vmem [#allocation3], 7
        %v5235 = vld [vmem:[%s5234] ss:$8 sm:$0x7]
        %s5236 = scalar_lea.vmem [#allocation3], 31
        %v5237 = vld [vmem:[%s5236] ss:$8 sm:$0x7]
        %s5238 = scalar_lea.vmem [#allocation3], 55
        %v5239 = vld [vmem:[%s5238] ss:$8 sm:$0x7]
        %s5240 = scalar_lea.vmem [#allocation3], 79
        %v5241 = vld [vmem:[%s5240] ss:$8 sm:$0x7]
        %s5242 = scalar_lea.vmem [#allocation3], 103
        %v5243 = vld [vmem:[%s5242] ss:$8 sm:$0x7]
        %s5244 = scalar_lea.vmem [#allocation3], 127
        %v5245 = vld [vmem:[%s5244] ss:$8 sm:$0x7]
        %s5246 = scalar_lea.vmem [#allocation3], 151
        %v5247 = vld [vmem:[%s5246] ss:$8 sm:$0x7]
        %s5248 = scalar_lea.vmem [#allocation3], 175
        %v5249 = vld [vmem:[%s5248] ss:$8 sm:$0x7]
        %v5250 = vld [vmem:[%s2] sm:$0xff]
        %v5251 = vld [vmem:[%s2 + $0x8] sm:$0xff]
        %v5252 = vld [vmem:[%s2 + $0x10] sm:$0xff]
        %v5253 = vld [vmem:[%s2 + $0x18] sm:$0xff]
        %v5254 = vld [vmem:[%s2 + $0x20] sm:$0xff]
        %v5255 = vld [vmem:[%s2 + $0x28] sm:$0xff]
        %v5256 = vld [vmem:[%s2 + $0x30] sm:$0xff]
        %v5257 = vld [vmem:[%s2 + $0x38] sm:$0xff]
        %v5258 = vld [vmem:[%s2 + $0x40] sm:$0xff]
        %v5259 = vld [vmem:[%s2 + $0x48] sm:$0xff]
        %v5260 = vld [vmem:[%s2 + $0x50] sm:$0xff]
        %v5261 = vld [vmem:[%s2 + $0x58] sm:$0xff]
        %v5262 = vld [vmem:[%s2 + $0x60] sm:$0xff]
        %v5263 = vld [vmem:[%s2 + $0x68] sm:$0xff]
        %v5264 = vld [vmem:[%s2 + $0x70] sm:$0xff]
        %v5265 = vld [vmem:[%s2 + $0x78] sm:$0xff]
        %v5266 = vld [vmem:[%s2 + $0x80] sm:$0xff]
        %v5267 = vld [vmem:[%s2 + $0x88] sm:$0xff]
        %v5268 = vld [vmem:[%s2 + $0x90] sm:$0xff]
        %v5269 = vld [vmem:[%s2 + $0x98] sm:$0xff]
        %v5270 = vld [vmem:[%s2 + $0xa0] sm:$0xff]
        %v5271 = vld [vmem:[%s2 + $0xa8] sm:$0xff]
        %v5272 = vld [vmem:[%s2 + $0xb0] sm:$0xff]
        %v5273 = vld [vmem:[%s2 + $0xb8] sm:$0xff]
        %v5274 = vld [vmem:[%s2 + $0xc0] sm:$0xff]
        %v5275 = vld [vmem:[%s2 + $0xc8] sm:$0xff]
        %v5276 = vld [vmem:[%s2 + $0xd0] sm:$0xff]
        %v5277 = vld [vmem:[%s2 + $0xd8] sm:$0xff]
        %v5278 = vld [vmem:[%s2 + $0xe0] sm:$0xff]
        %v5279 = vld [vmem:[%s2 + $0xe8] sm:$0xff]
        %v5280 = vld [vmem:[%s2 + $0xf0] sm:$0xff]
        %v5281 = vld [vmem:[%s2 + $0xf8] sm:$0xff]
        %v5282 = vld [vmem:[%s2 + $0x100] sm:$0xff]
        %v5283 = vld [vmem:[%s2 + $0x108] sm:$0xff]
        %v5284 = vld [vmem:[%s2 + $0x110] sm:$0xff]
        %v5285 = vld [vmem:[%s2 + $0x118] sm:$0xff]
        %v5286 = vld [vmem:[%s2 + $0x120] sm:$0xff]
        %v5287 = vld [vmem:[%s2 + $0x128] sm:$0xff]
        %v5288 = vld [vmem:[%s2 + $0x130] sm:$0xff]
        %v5289 = vld [vmem:[%s2 + $0x138] sm:$0xff]
        %v5290 = vld [vmem:[%s2 + $0x140] sm:$0xff]
        %v5291 = vld [vmem:[%s2 + $0x148] sm:$0xff]
        %v5292 = vld [vmem:[%s2 + $0x150] sm:$0xff]
        %v5293 = vld [vmem:[%s2 + $0x158] sm:$0xff]
        %v5294 = vld [vmem:[%s2 + $0x160] sm:$0xff]
        %v5295 = vld [vmem:[%s2 + $0x168] sm:$0xff]
        %v5296 = vld [vmem:[%s2 + $0x170] sm:$0xff]
        %v5297 = vld [vmem:[%s2 + $0x178] sm:$0xff]
        %v5306 = vcombine.low %v5218, %v5219
        %v5307 = vcombine.low %v5220, %v5221
        %v5308 = vcombine.low %v5222, %v5223
        %v5309 = vcombine.low %v5224, %v5225
        %v5311 = vunpack.c.l.s4 1966171168
        %v5312 = vunpack.c.0.s8 %v5311
        %v5313 = vlaneseq
        %v5314 = vshrl.u32 %v5313, 7
        %v5315 = vsub.s32 %v5312, %v5314
        %v5316 = vrot.slane %v5306, %v5315
        %v5318 = vunpack.c.l.s4 1966171168
        %v5319 = vunpack.c.0.s8 %v5318
        %v5320 = vlaneseq
        %v5321 = vshrl.u32 %v5320, 7
        %v5322 = vsub.s32 %v5319, %v5321
        %v5323 = vrot.slane %v5307, %v5322
        %v5325 = vunpack.c.l.s4 1966171168
        %v5326 = vunpack.c.0.s8 %v5325
        %v5327 = vlaneseq
        %v5328 = vshrl.u32 %v5327, 7
        %v5329 = vsub.s32 %v5326, %v5328
        %v5330 = vrot.slane %v5308, %v5329
        %v5332 = vunpack.c.l.s4 1966171168
        %v5333 = vunpack.c.0.s8 %v5332
        %v5334 = vlaneseq
        %v5335 = vshrl.u32 %v5334, 7
        %v5336 = vsub.s32 %v5333, %v5335
        %v5337 = vrot.slane %v5309, %v5336
        %v5338 = vcombine.low %v5316, %v5323
        %v5339 = vcombine.low %v5330, %v5337
        %v5341 = vunpack.c.l.s4 1966171168
        %v5342 = vunpack.c.0.s8 %v5341
        %v5343 = vlaneseq
        %v5344 = vshrl.u32 %v5343, 7
        %v5345 = vsub.s32 %v5342, %v5344
        %v5346 = vrot.slane %v5338, %v5345
        %v5348 = vunpack.c.l.s4 1966171168
        %v5349 = vunpack.c.0.s8 %v5348
        %v5350 = vlaneseq
        %v5351 = vshrl.u32 %v5350, 7
        %v5352 = vsub.s32 %v5349, %v5351
        %v5353 = vrot.slane %v5339, %v5352
        %v5354 = vcombine.low %v5346, %v5353
        %5356 = vmatprep.subr.mxu0 %v5251
        %5357 = vmatpush1.msra.mxu0 %v5250
        %5358 = vmatprep.subr.mxu0 %v5254
        %5359 = vmatpush1.msra.mxu0 %v5253
        %5360 = vmatprep.subr.mxu0 %v5257
        %5361 = vmatpush1.msra.mxu0 %v5256
        %5362 = vmatprep.subr.mxu0 %v5260
        %5363 = vmatpush1.msra.mxu0 %v5259
        %5364 = vmatprep.subr.mxu0 %v5263
        %5365 = vmatpush1.msra.mxu0 %v5262
        %5366 = vmatprep.subr.mxu0 %v5266
        %5367 = vmatpush1.msra.mxu0 %v5265
        %5368 = vmatprep.subr.mxu0 %v5269
        %5369 = vmatpush1.msra.mxu0 %v5268
        %5370 = vmatprep.subr.mxu0 %v5272
        %5371 = vmatpush1.msra.mxu0 %v5271
        %5372 = vmatprep.subr.mxu0 %v5275
        %5373 = vmatpush1.msra.mxu0 %v5274
        %5374 = vmatprep.subr.mxu0 %v5278
        %5375 = vmatpush1.msra.mxu0 %v5277
        %5376 = vmatprep.subr.mxu0 %v5281
        %5377 = vmatpush1.msra.mxu0 %v5280
        %5378 = vmatprep.subr.mxu0 %v5284
        %5379 = vmatpush1.msra.mxu0 %v5283
        %5380 = vmatprep.subr.mxu0 %v5287
        %5381 = vmatpush1.msra.mxu0 %v5286
        %5382 = vmatprep.subr.mxu0 %v5290
        %5383 = vmatpush1.msra.mxu0 %v5289
        %5384 = vmatprep.subr.mxu0 %v5293
        %5385 = vmatpush1.msra.mxu0 %v5292
        %5386 = vmatprep.subr.mxu0 %v5296
        %5387 = vmatpush1.msra.mxu0 %v5295
        %5388 = vmatprep.subr.mxu0 0.0
        %5389 = vmatpush1.msra.mxu0 0.0
        %5390 = vmatprep.subr.mxu0 0.0
        %5391 = vmatpush1.msra.mxu0 0.0
        %5392 = vmatprep.subr.mxu0 0.0
        %5393 = vmatpush1.msra.mxu0 0.0
        %5394 = vmatprep.subr.mxu0 0.0
        %5395 = vmatpush1.msra.mxu0 0.0
        %5396 = vmatprep.subr.mxu0 0.0
        %5397 = vmatpush1.msra.mxu0 0.0
        %5398 = vmatprep.subr.mxu0 0.0
        %5399 = vmatpush1.msra.mxu0 0.0
        %5400 = vmatprep.subr.mxu0 0.0
        %5401 = vmatpush1.msra.mxu0 0.0
        %5402 = vmatprep.subr.mxu0 0.0
        %5403 = vmatpush1.msra.mxu0 0.0
        %5404 = vmatprep.subr.mxu0 0.0
        %5405 = vmatpush1.msra.mxu0 0.0
        %5406 = vmatprep.subr.mxu0 0.0
        %5407 = vmatpush1.msra.mxu0 0.0
        %5408 = vmatprep.subr.mxu0 0.0
        %5409 = vmatpush1.msra.mxu0 0.0
        %5410 = vmatprep.subr.mxu0 0.0
        %5411 = vmatpush1.msra.mxu0 0.0
        %5412 = vmatprep.subr.mxu0 0.0
        %5413 = vmatpush1.msra.mxu0 0.0
        %5414 = vmatprep.subr.mxu0 0.0
        %5415 = vmatpush1.msra.mxu0 0.0
        %5416 = vmatprep.subr.mxu0 0.0
        %5417 = vmatpush1.msra.mxu0 0.0
        %5418 = vmatprep.subr.mxu0 0.0
        %5419 = vmatpush1.msra.mxu0 0.0
        %5420 = vmatprep.mubr.f32.mxu0 0.0
        %5421 = vmatmul.mubr.f32.gmra.mrb[0].mxu0 %v5354
        %v5422 = vpop.f32.mrb[0].mxu0
        %v5423 = vadd.f32 0.0, %v5422
        %v5424 = vpop.f32.mrb[0].mxu0
        %v5425 = vadd.f32 0.0, %v5424
        %5426 = vdwg.mxu0
        %5427 = vmatprep.subr.mxu0 0.0
        %5428 = vmatpush1.msra.mxu0 %v5252
        %5429 = vmatprep.subr.mxu0 0.0
        %5430 = vmatpush1.msra.mxu0 %v5255
        %5431 = vmatprep.subr.mxu0 0.0
        %5432 = vmatpush1.msra.mxu0 %v5258
        %5433 = vmatprep.subr.mxu0 0.0
        %5434 = vmatpush1.msra.mxu0 %v5261
        %5435 = vmatprep.subr.mxu0 0.0
        %5436 = vmatpush1.msra.mxu0 %v5264
        %5437 = vmatprep.subr.mxu0 0.0
        %5438 = vmatpush1.msra.mxu0 %v5267
        %5439 = vmatprep.subr.mxu0 0.0
        %5440 = vmatpush1.msra.mxu0 %v5270
        %5441 = vmatprep.subr.mxu0 0.0
        %5442 = vmatpush1.msra.mxu0 %v5273
        %5443 = vmatprep.subr.mxu0 0.0
        %5444 = vmatpush1.msra.mxu0 %v5276
        %5445 = vmatprep.subr.mxu0 0.0
        %5446 = vmatpush1.msra.mxu0 %v5279
        %5447 = vmatprep.subr.mxu0 0.0
        %5448 = vmatpush1.msra.mxu0 %v5282
        %5449 = vmatprep.subr.mxu0 0.0
        %5450 = vmatpush1.msra.mxu0 %v5285
        %5451 = vmatprep.subr.mxu0 0.0
        %5452 = vmatpush1.msra.mxu0 %v5288
        %5453 = vmatprep.subr.mxu0 0.0
        %5454 = vmatpush1.msra.mxu0 %v5291
        %5455 = vmatprep.subr.mxu0 0.0
        %5456 = vmatpush1.msra.mxu0 %v5294
        %5457 = vmatprep.subr.mxu0 0.0
        %5458 = vmatpush1.msra.mxu0 %v5297
        %5459 = vmatprep.subr.mxu0 0.0
        %5460 = vmatpush1.msra.mxu0 0.0
        %5461 = vmatprep.subr.mxu0 0.0
        %5462 = vmatpush1.msra.mxu0 0.0
        %5463 = vmatprep.subr.mxu0 0.0
        %5464 = vmatpush1.msra.mxu0 0.0
        %5465 = vmatprep.subr.mxu0 0.0
        %5466 = vmatpush1.msra.mxu0 0.0
        %5467 = vmatprep.subr.mxu0 0.0
        %5468 = vmatpush1.msra.mxu0 0.0
        %5469 = vmatprep.subr.mxu0 0.0
        %5470 = vmatpush1.msra.mxu0 0.0
        %5471 = vmatprep.subr.mxu0 0.0
        %5472 = vmatpush1.msra.mxu0 0.0
        %5473 = vmatprep.subr.mxu0 0.0
        %5474 = vmatpush1.msra.mxu0 0.0
        %5475 = vmatprep.subr.mxu0 0.0
        %5476 = vmatpush1.msra.mxu0 0.0
        %5477 = vmatprep.subr.mxu0 0.0
        %5478 = vmatpush1.msra.mxu0 0.0
        %5479 = vmatprep.subr.mxu0 0.0
        %5480 = vmatpush1.msra.mxu0 0.0
        %5481 = vmatprep.subr.mxu0 0.0
        %5482 = vmatpush1.msra.mxu0 0.0
        %5483 = vmatprep.subr.mxu0 0.0
        %5484 = vmatpush1.msra.mxu0 0.0
        %5485 = vmatprep.subr.mxu0 0.0
        %5486 = vmatpush1.msra.mxu0 0.0
        %5487 = vmatprep.subr.mxu0 0.0
        %5488 = vmatpush1.msra.mxu0 0.0
        %5489 = vmatprep.subr.mxu0 0.0
        %5490 = vmatpush1.msra.mxu0 0.0
        %5491 = vmatprep.mubr.f32.mxu0 0.0
        %5492 = vmatmul.mubr.f32.gmra.mrb[0].mxu0 %v5354
        %v5493 = vpop.f32.mrb[0].mxu0
        %v5494 = vadd.f32 0.0, %v5493
        %v5495 = vpop.f32.mrb[0].mxu0
        %5496 = vdwg.mxu0
        %v5498 = vcombine.high %v5423, %v5423
        %v5500 = vunpack.c.l.s4 1966171168
        %v5501 = vunpack.c.0.s8 %v5500
        %v5502 = vlaneseq
        %v5503 = vshrl.u32 %v5502, 7
        %v5504 = vsub.s32 %v5501, %v5503
        %v5505 = vrot.slane %v5423, %v5504
        %v5507 = vunpack.c.l.s4 1966171168
        %v5508 = vunpack.c.0.s8 %v5507
        %v5509 = vlaneseq
        %v5510 = vshrl.u32 %v5509, 7
        %v5511 = vsub.s32 %v5508, %v5510
        %v5512 = vrot.slane %v5498, %v5511
        %v5513 = vcombine.high %v5505, %v5505
        %v5514 = vcombine.high %v5512, %v5512
        %v5516 = vunpack.c.l.s4 1966171168
        %v5517 = vunpack.c.0.s8 %v5516
        %v5518 = vlaneseq
        %v5519 = vshrl.u32 %v5518, 7
        %v5520 = vsub.s32 %v5517, %v5519
        %v5521 = vrot.slane %v5505, %v5520
        %v5523 = vunpack.c.l.s4 1966171168
        %v5524 = vunpack.c.0.s8 %v5523
        %v5525 = vlaneseq
        %v5526 = vshrl.u32 %v5525, 7
        %v5527 = vsub.s32 %v5524, %v5526
        %v5528 = vrot.slane %v5512, %v5527
        %v5530 = vunpack.c.l.s4 1966171168
        %v5531 = vunpack.c.0.s8 %v5530
        %v5532 = vlaneseq
        %v5533 = vshrl.u32 %v5532, 7
        %v5534 = vsub.s32 %v5531, %v5533
        %v5535 = vrot.slane %v5513, %v5534
        %v5537 = vunpack.c.l.s4 1966171168
        %v5538 = vunpack.c.0.s8 %v5537
        %v5539 = vlaneseq
        %v5540 = vshrl.u32 %v5539, 7
        %v5541 = vsub.s32 %v5538, %v5540
        %v5542 = vrot.slane %v5514, %v5541
        %v5543 = vcombine.high %v5521, %v5521
        %v5544 = vcombine.high %v5528, %v5528
        %v5545 = vcombine.high %v5535, %v5535
        %v5546 = vcombine.high %v5542, %v5542
        %v5555 = vadd.f32 %v5235, %v5521
        %v5556 = vadd.f32 %v5237, %v5535
        %v5557 = vadd.f32 %v5239, %v5543
        %v5558 = vadd.f32 %v5241, %v5545
        %v5559 = vadd.f32 %v5243, %v5528
        %v5560 = vadd.f32 %v5245, %v5542
        %v5561 = vadd.f32 %v5247, %v5544
        %v5562 = vadd.f32 %v5249, %v5546
        %v5563 = vxor.u32 %v5555, 2147483648
        %v5564 = vxor.u32 %v5556, 2147483648
        %v5565 = vxor.u32 %v5557, 2147483648
        %v5566 = vxor.u32 %v5558, 2147483648
        %v5567 = vxor.u32 %v5559, 2147483648
        %v5568 = vxor.u32 %v5560, 2147483648
        %v5569 = vxor.u32 %v5561, 2147483648
        %v5570 = vxor.u32 %v5562, 2147483648
        %v5571 = vmul.f32 %v5563, 1.442695
        %v5572 = vpow.pop %v5571
        %v5573 = vmul.f32 %v5564, 1.442695
        %v5574 = vpow.pop %v5573
        %v5575 = vmul.f32 %v5565, 1.442695
        %v5576 = vpow.pop %v5575
        %v5577 = vmul.f32 %v5566, 1.442695
        %v5578 = vpow.pop %v5577
        %v5579 = vmul.f32 %v5567, 1.442695
        %v5580 = vpow.pop %v5579
        %v5581 = vmul.f32 %v5568, 1.442695
        %v5582 = vpow.pop %v5581
        %v5583 = vmul.f32 %v5569, 1.442695
        %v5584 = vpow.pop %v5583
        %v5585 = vmul.f32 %v5570, 1.442695
        %v5586 = vpow.pop %v5585
        %v5587 = vadd.f32 %v5572, 1.0
        %v5588 = vadd.f32 %v5574, 1.0
        %v5589 = vadd.f32 %v5576, 1.0
        %v5590 = vadd.f32 %v5578, 1.0
        %v5591 = vadd.f32 %v5580, 1.0
        %v5592 = vadd.f32 %v5582, 1.0
        %v5593 = vadd.f32 %v5584, 1.0
        %v5594 = vadd.f32 %v5586, 1.0
        %v5595 = vrcp.pop %v5587
        %v5596 = vmul.f32 1.0, %v5595
        %v5597 = vrcp.pop %v5588
        %v5598 = vmul.f32 1.0, %v5597
        %v5599 = vrcp.pop %v5589
        %v5600 = vmul.f32 1.0, %v5599
        %v5601 = vrcp.pop %v5590
        %v5602 = vmul.f32 1.0, %v5601
        %v5603 = vrcp.pop %v5591
        %v5604 = vmul.f32 1.0, %v5603
        %v5605 = vrcp.pop %v5592
        %v5606 = vmul.f32 1.0, %v5605
        %v5607 = vrcp.pop %v5593
        %v5608 = vmul.f32 1.0, %v5607
        %v5609 = vrcp.pop %v5594
        %v5610 = vmul.f32 1.0, %v5609
        %v5619 = vrot.slane %v5235, 1
        %v5620 = vrot.slane %v5237, 1
        %v5621 = vrot.slane %v5239, 1
        %v5622 = vrot.slane %v5241, 1
        %v5623 = vrot.slane %v5243, 1
        %v5624 = vrot.slane %v5245, 1
        %v5625 = vrot.slane %v5247, 1
        %v5626 = vrot.slane %v5249, 1
        %v5636 = vcombine.high %v5425, %v5425
        %v5638 = vunpack.c.l.s4 1966171168
        %v5639 = vunpack.c.0.s8 %v5638
        %v5640 = vlaneseq
        %v5641 = vshrl.u32 %v5640, 7
        %v5642 = vsub.s32 %v5639, %v5641
        %v5643 = vrot.slane %v5425, %v5642
        %v5645 = vunpack.c.l.s4 1966171168
        %v5646 = vunpack.c.0.s8 %v5645
        %v5647 = vlaneseq
        %v5648 = vshrl.u32 %v5647, 7
        %v5649 = vsub.s32 %v5646, %v5648
        %v5650 = vrot.slane %v5636, %v5649
        %v5651 = vcombine.high %v5643, %v5643
        %v5652 = vcombine.high %v5650, %v5650
        %v5654 = vunpack.c.l.s4 1966171168
        %v5655 = vunpack.c.0.s8 %v5654
        %v5656 = vlaneseq
        %v5657 = vshrl.u32 %v5656, 7
        %v5658 = vsub.s32 %v5655, %v5657
        %v5659 = vrot.slane %v5643, %v5658
        %v5661 = vunpack.c.l.s4 1966171168
        %v5662 = vunpack.c.0.s8 %v5661
        %v5663 = vlaneseq
        %v5664 = vshrl.u32 %v5663, 7
        %v5665 = vsub.s32 %v5662, %v5664
        %v5666 = vrot.slane %v5650, %v5665
        %v5668 = vunpack.c.l.s4 1966171168
        %v5669 = vunpack.c.0.s8 %v5668
        %v5670 = vlaneseq
        %v5671 = vshrl.u32 %v5670, 7
        %v5672 = vsub.s32 %v5669, %v5671
        %v5673 = vrot.slane %v5651, %v5672
        %v5675 = vunpack.c.l.s4 1966171168
        %v5676 = vunpack.c.0.s8 %v5675
        %v5677 = vlaneseq
        %v5678 = vshrl.u32 %v5677, 7
        %v5679 = vsub.s32 %v5676, %v5678
        %v5680 = vrot.slane %v5652, %v5679
        %v5681 = vcombine.high %v5659, %v5659
        %v5682 = vcombine.high %v5666, %v5666
        %v5683 = vcombine.high %v5673, %v5673
        %v5684 = vcombine.high %v5680, %v5680
        %v5693 = vadd.f32 %v5619, %v5659
        %v5694 = vadd.f32 %v5620, %v5673
        %v5695 = vadd.f32 %v5621, %v5681
        %v5696 = vadd.f32 %v5622, %v5683
        %v5697 = vadd.f32 %v5623, %v5666
        %v5698 = vadd.f32 %v5624, %v5680
        %v5699 = vadd.f32 %v5625, %v5682
        %v5700 = vadd.f32 %v5626, %v5684
        %v5701 = vxor.u32 %v5693, 2147483648
        %v5702 = vxor.u32 %v5694, 2147483648
        %v5703 = vxor.u32 %v5695, 2147483648
        %v5704 = vxor.u32 %v5696, 2147483648
        %v5705 = vxor.u32 %v5697, 2147483648
        %v5706 = vxor.u32 %v5698, 2147483648
        %v5707 = vxor.u32 %v5699, 2147483648
        %v5708 = vxor.u32 %v5700, 2147483648
        %v5709 = vmul.f32 %v5701, 1.442695
        %v5710 = vpow.pop %v5709
        %v5711 = vmul.f32 %v5702, 1.442695
        %v5712 = vpow.pop %v5711
        %v5713 = vmul.f32 %v5703, 1.442695
        %v5714 = vpow.pop %v5713
        %v5715 = vmul.f32 %v5704, 1.442695
        %v5716 = vpow.pop %v5715
        %v5717 = vmul.f32 %v5705, 1.442695
        %v5718 = vpow.pop %v5717
        %v5719 = vmul.f32 %v5706, 1.442695
        %v5720 = vpow.pop %v5719
        %v5721 = vmul.f32 %v5707, 1.442695
        %v5722 = vpow.pop %v5721
        %v5723 = vmul.f32 %v5708, 1.442695
        %v5724 = vpow.pop %v5723
        %v5725 = vadd.f32 %v5710, 1.0
        %v5726 = vadd.f32 %v5712, 1.0
        %v5727 = vadd.f32 %v5714, 1.0
        %v5728 = vadd.f32 %v5716, 1.0
        %v5729 = vadd.f32 %v5718, 1.0
        %v5730 = vadd.f32 %v5720, 1.0
        %v5731 = vadd.f32 %v5722, 1.0
        %v5732 = vadd.f32 %v5724, 1.0
        %v5733 = vrcp.pop %v5725
        %v5734 = vmul.f32 1.0, %v5733
        %v5735 = vrcp.pop %v5726
        %v5736 = vmul.f32 1.0, %v5735
        %v5737 = vrcp.pop %v5727
        %v5738 = vmul.f32 1.0, %v5737
        %v5739 = vrcp.pop %v5728
        %v5740 = vmul.f32 1.0, %v5739
        %v5741 = vrcp.pop %v5729
        %v5742 = vmul.f32 1.0, %v5741
        %v5743 = vrcp.pop %v5730
        %v5744 = vmul.f32 1.0, %v5743
        %v5745 = vrcp.pop %v5731
        %v5746 = vmul.f32 1.0, %v5745
        %v5747 = vrcp.pop %v5732
        %v5748 = vmul.f32 1.0, %v5747
        %v5749 = vadd.f32 %v5494, %v654
        %v5751 = vcombine.high %v5749, %v5749
        %v5753 = vunpack.c.l.s4 1966171168
        %v5754 = vunpack.c.0.s8 %v5753
        %v5755 = vlaneseq
        %v5756 = vshrl.u32 %v5755, 7
        %v5757 = vsub.s32 %v5754, %v5756
        %v5758 = vrot.slane %v5749, %v5757
        %v5760 = vunpack.c.l.s4 1966171168
        %v5761 = vunpack.c.0.s8 %v5760
        %v5762 = vlaneseq
        %v5763 = vshrl.u32 %v5762, 7
        %v5764 = vsub.s32 %v5761, %v5763
        %v5765 = vrot.slane %v5751, %v5764
        %v5766 = vcombine.high %v5758, %v5758
        %v5767 = vcombine.high %v5765, %v5765
        %v5769 = vunpack.c.l.s4 1966171168
        %v5770 = vunpack.c.0.s8 %v5769
        %v5771 = vlaneseq
        %v5772 = vshrl.u32 %v5771, 7
        %v5773 = vsub.s32 %v5770, %v5772
        %v5774 = vrot.slane %v5758, %v5773
        %v5776 = vunpack.c.l.s4 1966171168
        %v5777 = vunpack.c.0.s8 %v5776
        %v5778 = vlaneseq
        %v5779 = vshrl.u32 %v5778, 7
        %v5780 = vsub.s32 %v5777, %v5779
        %v5781 = vrot.slane %v5765, %v5780
        %v5783 = vunpack.c.l.s4 1966171168
        %v5784 = vunpack.c.0.s8 %v5783
        %v5785 = vlaneseq
        %v5786 = vshrl.u32 %v5785, 7
        %v5787 = vsub.s32 %v5784, %v5786
        %v5788 = vrot.slane %v5766, %v5787
        %v5790 = vunpack.c.l.s4 1966171168
        %v5791 = vunpack.c.0.s8 %v5790
        %v5792 = vlaneseq
        %v5793 = vshrl.u32 %v5792, 7
        %v5794 = vsub.s32 %v5791, %v5793
        %v5795 = vrot.slane %v5767, %v5794
        %v5796 = vcombine.high %v5774, %v5774
        %v5797 = vcombine.high %v5781, %v5781
        %v5798 = vcombine.high %v5788, %v5788
        %v5799 = vcombine.high %v5795, %v5795
        %v5808 = vmul.f32 %v5596, %v5774
        %v5809 = vmul.f32 %v5598, %v5788
        %v5810 = vmul.f32 %v5600, %v5796
        %v5811 = vmul.f32 %v5602, %v5798
        %v5812 = vmul.f32 %v5604, %v5781
        %v5813 = vmul.f32 %v5606, %v5795
        %v5814 = vmul.f32 %v5608, %v5797
        %v5815 = vmul.f32 %v5610, %v5799
        %v5816 = vrot.slane %v5235, 2
        %v5817 = vrot.slane %v5237, 2
        %v5818 = vrot.slane %v5239, 2
        %v5819 = vrot.slane %v5241, 2
        %v5820 = vrot.slane %v5243, 2
        %v5821 = vrot.slane %v5245, 2
        %v5822 = vrot.slane %v5247, 2
        %v5823 = vrot.slane %v5249, 2
        %v5832 = vadd.f32 %v5816, %v5808
        %v5833 = vadd.f32 %v5817, %v5809
        %v5834 = vadd.f32 %v5818, %v5810
        %v5835 = vadd.f32 %v5819, %v5811
        %v5836 = vadd.f32 %v5820, %v5812
        %v5837 = vadd.f32 %v5821, %v5813
        %v5838 = vadd.f32 %v5822, %v5814
        %v5839 = vadd.f32 %v5823, %v5815
        %v5840 = vtanh.pop %v5832
        %v5841 = vtanh.pop %v5833
        %v5842 = vtanh.pop %v5834
        %v5843 = vtanh.pop %v5835
        %v5844 = vtanh.pop %v5836
        %v5845 = vtanh.pop %v5837
        %v5846 = vtanh.pop %v5838
        %v5847 = vtanh.pop %v5839
        %v5848 = vsub.f32 1.0, %v5734
        %v5849 = vsub.f32 1.0, %v5736
        %v5850 = vsub.f32 1.0, %v5738
        %v5851 = vsub.f32 1.0, %v5740
        %v5852 = vsub.f32 1.0, %v5742
        %v5853 = vsub.f32 1.0, %v5744
        %v5854 = vsub.f32 1.0, %v5746
        %v5855 = vsub.f32 1.0, %v5748
        %v5856 = vmul.f32 %v5848, %v5840
        %v5857 = vmul.f32 %v5849, %v5841
        %v5858 = vmul.f32 %v5850, %v5842
        %v5859 = vmul.f32 %v5851, %v5843
        %v5860 = vmul.f32 %v5852, %v5844
        %v5861 = vmul.f32 %v5853, %v5845
        %v5862 = vmul.f32 %v5854, %v5846
        %v5863 = vmul.f32 %v5855, %v5847
        %v5864 = vmul.f32 %v5734, %v5218
        %v5865 = vmul.f32 %v5736, %v5219
        %v5866 = vmul.f32 %v5738, %v5220
        %v5867 = vmul.f32 %v5740, %v5221
        %v5868 = vmul.f32 %v5742, %v5222
        %v5869 = vmul.f32 %v5744, %v5223
        %v5870 = vmul.f32 %v5746, %v5224
        %v5871 = vmul.f32 %v5748, %v5225
        %v5872 = vadd.f32 %v5856, %v5864
        %v5873 = vadd.f32 %v5857, %v5865
        %v5874 = vadd.f32 %v5858, %v5866
        %v5875 = vadd.f32 %v5859, %v5867
        %v5876 = vadd.f32 %v5860, %v5868
        %v5877 = vadd.f32 %v5861, %v5869
        %v5878 = vadd.f32 %v5862, %v5870
        %v5879 = vadd.f32 %v5863, %v5871
        %5880 = vst [vmem:[#allocation4 + $0x7] sm:$0x1] %v5872
        %5881 = vst [vmem:[#allocation4 + $0xf] sm:$0x1] %v5873
        %5882 = vst [vmem:[#allocation4 + $0x17] sm:$0x1] %v5874
        %5883 = vst [vmem:[#allocation4 + $0x1f] sm:$0x1] %v5875
        %5884 = vst [vmem:[#allocation4 + $0x27] sm:$0x1] %v5876
        %5885 = vst [vmem:[#allocation4 + $0x2f] sm:$0x1] %v5877
        %5886 = vst [vmem:[#allocation4 + $0x37] sm:$0x1] %v5878
        %5887 = vst [vmem:[#allocation4 + $0x3f] sm:$0x1] %v5879
        %v5896 = vcombine.low %v5872, %v5873
        %v5897 = vcombine.low %v5874, %v5875
        %v5898 = vcombine.low %v5876, %v5877
        %v5899 = vcombine.low %v5878, %v5879
        %v5901 = vunpack.c.l.s4 1966171168
        %v5902 = vunpack.c.0.s8 %v5901
        %v5903 = vlaneseq
        %v5904 = vshrl.u32 %v5903, 7
        %v5905 = vsub.s32 %v5902, %v5904
        %v5906 = vrot.slane %v5896, %v5905
        %v5908 = vunpack.c.l.s4 1966171168
        %v5909 = vunpack.c.0.s8 %v5908
        %v5910 = vlaneseq
        %v5911 = vshrl.u32 %v5910, 7
        %v5912 = vsub.s32 %v5909, %v5911
        %v5913 = vrot.slane %v5897, %v5912
        %v5915 = vunpack.c.l.s4 1966171168
        %v5916 = vunpack.c.0.s8 %v5915
        %v5917 = vlaneseq
        %v5918 = vshrl.u32 %v5917, 7
        %v5919 = vsub.s32 %v5916, %v5918
        %v5920 = vrot.slane %v5898, %v5919
        %v5922 = vunpack.c.l.s4 1966171168
        %v5923 = vunpack.c.0.s8 %v5922
        %v5924 = vlaneseq
        %v5925 = vshrl.u32 %v5924, 7
        %v5926 = vsub.s32 %v5923, %v5925
        %v5927 = vrot.slane %v5899, %v5926
        %v5928 = vcombine.low %v5906, %v5913
        %v5929 = vcombine.low %v5920, %v5927
        %v5931 = vunpack.c.l.s4 1966171168
        %v5932 = vunpack.c.0.s8 %v5931
        %v5933 = vlaneseq
        %v5934 = vshrl.u32 %v5933, 7
        %v5935 = vsub.s32 %v5932, %v5934
        %v5936 = vrot.slane %v5928, %v5935
        %v5938 = vunpack.c.l.s4 1966171168
        %v5939 = vunpack.c.0.s8 %v5938
        %v5940 = vlaneseq
        %v5941 = vshrl.u32 %v5940, 7
        %v5942 = vsub.s32 %v5939, %v5941
        %v5943 = vrot.slane %v5929, %v5942
        %v5944 = vcombine.low %v5936, %v5943
        %5946 = vst [vmem:[#allocation2] sm:$0xff] %v5944
        %v5947 = vld [vmem:[#allocation4] sm:$0xff]
        %v5948 = vld [vmem:[#allocation4 + $0x8] sm:$0xff]
        %v5949 = vld [vmem:[#allocation4 + $0x10] sm:$0xff]
        %v5950 = vld [vmem:[#allocation4 + $0x18] sm:$0xff]
        %v5951 = vld [vmem:[#allocation4 + $0x20] sm:$0xff]
        %v5952 = vld [vmem:[#allocation4 + $0x28] sm:$0xff]
        %v5953 = vld [vmem:[#allocation4 + $0x30] sm:$0xff]
        %v5954 = vld [vmem:[#allocation4 + $0x38] sm:$0xff]
        %v5955 = vld [vmem:[%s5] sm:$0xff]
        %v5956 = vld [vmem:[%s5 + $0x8] sm:$0xff]
        %v5957 = vld [vmem:[%s5 + $0x10] sm:$0xff]
        %v5958 = vld [vmem:[%s5 + $0x18] sm:$0xff]
        %v5959 = vld [vmem:[%s5 + $0x20] sm:$0xff]
        %v5960 = vld [vmem:[%s5 + $0x28] sm:$0xff]
        %v5961 = vld [vmem:[%s5 + $0x30] sm:$0xff]
        %v5962 = vld [vmem:[%s5 + $0x38] sm:$0xff]
        %v5963 = vld [vmem:[%s5 + $0x40] sm:$0xff]
        %v5964 = vld [vmem:[%s5 + $0x48] sm:$0xff]
        %v5965 = vld [vmem:[%s5 + $0x50] sm:$0xff]
        %v5966 = vld [vmem:[%s5 + $0x58] sm:$0xff]
        %v5967 = vld [vmem:[%s5 + $0x60] sm:$0xff]
        %v5968 = vld [vmem:[%s5 + $0x68] sm:$0xff]
        %v5969 = vld [vmem:[%s5 + $0x70] sm:$0xff]
        %v5970 = vld [vmem:[%s5 + $0x78] sm:$0xff]
        %5971 = vmatprep.subr.mxu0 0.0
        %5972 = vmatpush1.msra.mxu0 %v5955
        %5973 = vmatprep.subr.mxu0 0.0
        %5974 = vmatpush1.msra.mxu0 %v5956
        %5975 = vmatprep.subr.mxu0 0.0
        %5976 = vmatpush1.msra.mxu0 %v5957
        %5977 = vmatprep.subr.mxu0 0.0
        %5978 = vmatpush1.msra.mxu0 %v5958
        %5979 = vmatprep.subr.mxu0 0.0
        %5980 = vmatpush1.msra.mxu0 %v5959
        %5981 = vmatprep.subr.mxu0 0.0
        %5982 = vmatpush1.msra.mxu0 %v5960
        %5983 = vmatprep.subr.mxu0 0.0
        %5984 = vmatpush1.msra.mxu0 %v5961
        %5985 = vmatprep.subr.mxu0 0.0
        %5986 = vmatpush1.msra.mxu0 %v5962
        %5987 = vmatprep.subr.mxu0 0.0
        %5988 = vmatpush1.msra.mxu0 %v5963
        %5989 = vmatprep.subr.mxu0 0.0
        %5990 = vmatpush1.msra.mxu0 %v5964
        %5991 = vmatprep.subr.mxu0 0.0
        %5992 = vmatpush1.msra.mxu0 %v5965
        %5993 = vmatprep.subr.mxu0 0.0
        %5994 = vmatpush1.msra.mxu0 %v5966
        %5995 = vmatprep.subr.mxu0 0.0
        %5996 = vmatpush1.msra.mxu0 %v5967
        %5997 = vmatprep.subr.mxu0 0.0
        %5998 = vmatpush1.msra.mxu0 %v5968
        %5999 = vmatprep.subr.mxu0 0.0
        %6000 = vmatpush1.msra.mxu0 %v5969
        %6001 = vmatprep.subr.mxu0 0.0
        %6002 = vmatpush1.msra.mxu0 %v5970
        %6003 = vmatprep.subr.mxu0 0.0
        %6004 = vmatpush1.msra.mxu0 0.0
        %6005 = vmatprep.subr.mxu0 0.0
        %6006 = vmatpush1.msra.mxu0 0.0
        %6007 = vmatprep.subr.mxu0 0.0
        %6008 = vmatpush1.msra.mxu0 0.0
        %6009 = vmatprep.subr.mxu0 0.0
        %6010 = vmatpush1.msra.mxu0 0.0
        %6011 = vmatprep.subr.mxu0 0.0
        %6012 = vmatpush1.msra.mxu0 0.0
        %6013 = vmatprep.subr.mxu0 0.0
        %6014 = vmatpush1.msra.mxu0 0.0
        %6015 = vmatprep.subr.mxu0 0.0
        %6016 = vmatpush1.msra.mxu0 0.0
        %6017 = vmatprep.subr.mxu0 0.0
        %6018 = vmatpush1.msra.mxu0 0.0
        %6019 = vmatprep.subr.mxu0 0.0
        %6020 = vmatpush1.msra.mxu0 0.0
        %6021 = vmatprep.subr.mxu0 0.0
        %6022 = vmatpush1.msra.mxu0 0.0
        %6023 = vmatprep.subr.mxu0 0.0
        %6024 = vmatpush1.msra.mxu0 0.0
        %6025 = vmatprep.subr.mxu0 0.0
        %6026 = vmatpush1.msra.mxu0 0.0
        %6027 = vmatprep.subr.mxu0 0.0
        %6028 = vmatpush1.msra.mxu0 0.0
        %6029 = vmatprep.subr.mxu0 0.0
        %6030 = vmatpush1.msra.mxu0 0.0
        %6031 = vmatprep.subr.mxu0 0.0
        %6032 = vmatpush1.msra.mxu0 0.0
        %6033 = vmatprep.subr.mxu0 0.0
        %6034 = vmatpush1.msra.mxu0 0.0
        %6035 = vmatprep.mubr.f32.mxu0 0.0
        %6036 = vmatmul.mubr.f32.gmra.mrb[0].mxu0 %v5947
        %v6037 = vpop.f32.mrb[0].mxu0
        %v6038 = vadd.f32 0.0, %v6037
        %v6039 = vpop.f32.mrb[0].mxu0
        %6040 = vmatprep.mubr.f32.mxu0 0.0
        %6041 = vmatmul.mubr.f32.gmra.mrb[0].mxu0 %v5948
        %v6042 = vpop.f32.mrb[0].mxu0
        %v6043 = vadd.f32 0.0, %v6042
        %v6044 = vpop.f32.mrb[0].mxu0
        %6045 = vmatprep.mubr.f32.mxu0 0.0
        %6046 = vmatmul.mubr.f32.gmra.mrb[0].mxu0 %v5949
        %v6047 = vpop.f32.mrb[0].mxu0
        %v6048 = vadd.f32 0.0, %v6047
        %v6049 = vpop.f32.mrb[0].mxu0
        %6050 = vmatprep.mubr.f32.mxu0 0.0
        %6051 = vmatmul.mubr.f32.gmra.mrb[0].mxu0 %v5950
        %v6052 = vpop.f32.mrb[0].mxu0
        %v6053 = vadd.f32 0.0, %v6052
        %v6054 = vpop.f32.mrb[0].mxu0
        %6055 = vmatprep.mubr.f32.mxu0 0.0
        %6056 = vmatmul.mubr.f32.gmra.mrb[0].mxu0 %v5951
        %v6057 = vpop.f32.mrb[0].mxu0
        %v6058 = vadd.f32 0.0, %v6057
        %v6059 = vpop.f32.mrb[0].mxu0
        %6060 = vmatprep.mubr.f32.mxu0 0.0
        %6061 = vmatmul.mubr.f32.gmra.mrb[0].mxu0 %v5952
        %v6062 = vpop.f32.mrb[0].mxu0
        %v6063 = vadd.f32 0.0, %v6062
        %v6064 = vpop.f32.mrb[0].mxu0
        %6065 = vmatprep.mubr.f32.mxu0 0.0
        %6066 = vmatmul.mubr.f32.gmra.mrb[0].mxu0 %v5953
        %v6067 = vpop.f32.mrb[0].mxu0
        %v6068 = vadd.f32 0.0, %v6067
        %v6069 = vpop.f32.mrb[0].mxu0
        %6070 = vmatprep.mubr.f32.mxu0 0.0
        %6071 = vmatmul.mubr.f32.gmra.mrb[0].mxu0 %v5954
        %v6072 = vpop.f32.mrb[0].mxu0
        %v6073 = vadd.f32 0.0, %v6072
        %v6074 = vpop.f32.mrb[0].mxu0
        %6075 = vdwg.mxu0
        %6076 = vst [vmem:[%s326] sm:$0xff] %v6038
        %6077 = vst [vmem:[%s326 + $0x8] sm:$0xff] %v6043
        %6078 = vst [vmem:[%s326 + $0x10] sm:$0xff] %v6048
        %6079 = vst [vmem:[%s326 + $0x18] sm:$0xff] %v6053
        %6080 = vst [vmem:[%s326 + $0x20] sm:$0xff] %v6058
        %6081 = vst [vmem:[%s326 + $0x28] sm:$0xff] %v6063
        %6082 = vst [vmem:[%s326 + $0x30] sm:$0xff] %v6068
        %6083 = vst [vmem:[%s326 + $0x38] sm:$0xff] %v6073
        %s6084 = sand.u32 %s172, 1
        %s6085 = sand.u32 %s172, 1
        %s6086 = smul.addr %s6085, 64
        %s6087 = scalar_lea.vmem [#allocation6], %s6086
        // Predicated region
        $region87: #{tiny_rnn_lm_forward.1} parent=77 // pred_check
          %p6088 = pneg %p182
        $region88: #{tiny_rnn_lm_forward.1} parent=77 // pred_check_branch
          %6090 = sbr.rel (%p6088) target = $region90
        $region89: #{tiny_rnn_lm_forward.1} parent=77 // pred_region
          %s6091 = smul.u32 8, %s21
          %s6092 = smul.addr %s6091, 2
          %s6093 = sadd.s32 %s22, %s6092
          %s6094 = smul.addr %s6093, 8
          %s6095 = scalar_lea.vmem %s6, %s6094
          // Predicated region
          $region91: #{tiny_rnn_lm_forward.1} parent=89 // pred_check
            _
          $region92: #{tiny_rnn_lm_forward.1} parent=89 // pred_check_branch
            %6097 = sbr.rel (0) target = $region94
          $region93: #{tiny_rnn_lm_forward.1} parent=89 // pred_region
            // Predicated region
            $region95: #{tiny_rnn_lm_forward.1} parent=93 // pred_check
              _
            $region96: #{tiny_rnn_lm_forward.1} parent=93 // pred_check_branch
              %6099 = sbr.rel (0) target = $region98
            $region97: #{tiny_rnn_lm_forward.1} parent=93 // pred_region
              // Predicated region
              $region110: #{tiny_rnn_lm_forward.1} parent=97 // pred_check
                _
              $region111: #{tiny_rnn_lm_forward.1} parent=97 // pred_check_branch
                %6128 = sbr.rel (0) target = $region113
              $region112: #{tiny_rnn_lm_forward.1} parent=97 // pred_region
                loop: start=0, step=1, limit=1
                $region114: #{tiny_rnn_lm_forward.1} parent=112 // loop_pre_header
                  _
                $region115: #{tiny_rnn_lm_forward.1} parent=112 // loop_header
                  %s6130 = sphi 0, %s6134
                  %p6131 = scmp.ge.s32.totalorder %s6130, 1
                  %s6135 = sphi %s6087, %s6087
                  %s6136 = sphi %s6095, %s6095
                $region116: #{tiny_rnn_lm_forward.1} parent=112 // loop_header_branch
                  %6133 = sbr.rel (%p6131) target = $region120
                $region117: #{tiny_rnn_lm_forward.1} parent=112 // loop_body
                  %v6137 = vld [vmem:[%s6135] sm:$0xff]
                  %6138 = vst [vmem:[%s6136] sm:$0xff] %v6137
                  %v6139 = vld [vmem:[%s6135 + $0x8] sm:$0xff]
                  %6140 = vst [vmem:[%s6136 + $0x10] sm:$0xff] %v6139
                  %v6141 = vld [vmem:[%s6135 + $0x10] sm:$0xff]
                  %6142 = vst [vmem:[%s6136 + $0x20] sm:$0xff] %v6141
                  %v6143 = vld [vmem:[%s6135 + $0x18] sm:$0xff]
                  %6144 = vst [vmem:[%s6136 + $0x30] sm:$0xff] %v6143
                  %v6145 = vld [vmem:[%s6135 + $0x20] sm:$0xff]
                  %6146 = vst [vmem:[%s6136 + $0x40] sm:$0xff] %v6145
                  %v6147 = vld [vmem:[%s6135 + $0x28] sm:$0xff]
                  %6148 = vst [vmem:[%s6136 + $0x50] sm:$0xff] %v6147
                  %v6149 = vld [vmem:[%s6135 + $0x30] sm:$0xff]
                  %6150 = vst [vmem:[%s6136 + $0x60] sm:$0xff] %v6149
                  %v6151 = vld [vmem:[%s6135 + $0x38] sm:$0xff]
                  %6152 = vst [vmem:[%s6136 + $0x70] sm:$0xff] %v6151
                $region118: #{tiny_rnn_lm_forward.1} parent=112 // loop_footer
                  %s6134 = sadd.s32 1, %s6130
                $region119: #{tiny_rnn_lm_forward.1} parent=112 // loop_footer_branch
                  %6129 = sbr.rel target = $region115
                $region120: #{tiny_rnn_lm_forward.1} parent=112 // loop_exit
                  _
              $region113: #{tiny_rnn_lm_forward.1} parent=97 // pred_fallthru
                _
              // Predicated region
              $region121: #{tiny_rnn_lm_forward.1} parent=97 // pred_check
                _
              $region122: #{tiny_rnn_lm_forward.1} parent=97 // pred_check_branch
                %6154 = sbr.rel target = $region124
              $region123: #{tiny_rnn_lm_forward.1} parent=97 // pred_region
                _
              $region124: #{tiny_rnn_lm_forward.1} parent=97 // pred_fallthru
                _
            $region98: #{tiny_rnn_lm_forward.1} parent=93 // pred_fallthru
              _
            // Predicated region
            $region99: #{tiny_rnn_lm_forward.1} parent=93 // pred_check
              _
            $region100: #{tiny_rnn_lm_forward.1} parent=93 // pred_check_branch
              %6101 = sbr.rel target = $region102
            $region101: #{tiny_rnn_lm_forward.1} parent=93 // pred_region
              loop: start=0, step=1, limit=1
              $region103: #{tiny_rnn_lm_forward.1} parent=101 // loop_pre_header
                _
              $region104: #{tiny_rnn_lm_forward.1} parent=101 // loop_header
                %s6104 = sphi 0, %s6108
                %p6105 = scmp.ge.s32.totalorder %s6104, 1
                %s6109 = sphi %s6087, %s6087
                %s6110 = sphi %s6095, %s6095
              $region105: #{tiny_rnn_lm_forward.1} parent=101 // loop_header_branch
                %6107 = sbr.rel (%p6105) target = $region109
              $region106: #{tiny_rnn_lm_forward.1} parent=101 // loop_body
                %v6111 = vld [vmem:[%s6109] sm:$0xff]
                %6112 = vst [vmem:[%s6110] sm:$0xff] %v6111
                %v6113 = vld [vmem:[%s6109 + $0x8] sm:$0xff]
                %6114 = vst [vmem:[%s6110 + $0x10] sm:$0xff] %v6113
                %v6115 = vld [vmem:[%s6109 + $0x10] sm:$0xff]
                %6116 = vst [vmem:[%s6110 + $0x20] sm:$0xff] %v6115
                %v6117 = vld [vmem:[%s6109 + $0x18] sm:$0xff]
                %6118 = vst [vmem:[%s6110 + $0x30] sm:$0xff] %v6117
                %v6119 = vld [vmem:[%s6109 + $0x20] sm:$0xff]
                %6120 = vst [vmem:[%s6110 + $0x40] sm:$0xff] %v6119
                %v6121 = vld [vmem:[%s6109 + $0x28] sm:$0xff]
                %6122 = vst [vmem:[%s6110 + $0x50] sm:$0xff] %v6121
                %v6123 = vld [vmem:[%s6109 + $0x30] sm:$0xff]
                %6124 = vst [vmem:[%s6110 + $0x60] sm:$0xff] %v6123
                %v6125 = vld [vmem:[%s6109 + $0x38] sm:$0xff]
                %6126 = vst [vmem:[%s6110 + $0x70] sm:$0xff] %v6125
              $region107: #{tiny_rnn_lm_forward.1} parent=101 // loop_footer
                %s6108 = sadd.s32 1, %s6104
              $region108: #{tiny_rnn_lm_forward.1} parent=101 // loop_footer_branch
                %6103 = sbr.rel target = $region104
              $region109: #{tiny_rnn_lm_forward.1} parent=101 // loop_exit
                _
            $region102: #{tiny_rnn_lm_forward.1} parent=93 // pred_fallthru
              _
          $region94: #{tiny_rnn_lm_forward.1} parent=89 // pred_fallthru
            _
          %6155 = vnop
        $region90: #{tiny_rnn_lm_forward.1} parent=77 // pred_fallthru
          _
      $region78: #{tiny_rnn_lm_forward.1} parent=5 // pred_fallthru
        _
      %p6156 = scmp.le.s32.totalorder 2, %s12
      // Predicated region
      $region125: #{tiny_rnn_lm_forward.1} parent=5 // pred_check
        %p6157 = pneg %p6156
      $region126: #{tiny_rnn_lm_forward.1} parent=5 // pred_check_branch
        %6159 = sbr.rel (%p6157) target = $region128
      $region127: #{tiny_rnn_lm_forward.1} parent=5 // pred_region
        %s6160 = ssub.s32 %s12, 2
        // Predicated region
        $region129: #{tiny_rnn_lm_forward.1} parent=127 // pred_check
          %p6161 = pneg %p188
        $region130: #{tiny_rnn_lm_forward.1} parent=127 // pred_check_branch
          %6163 = sbr.rel (%p6161) target = $region132
        $region131: #{tiny_rnn_lm_forward.1} parent=127 // pred_region
          %s6164 = sand.u32 %s173, 1
          %s6165 = sand.u32 %s173, 1
          %s6166 = smul.addr %s6165, 64
          %s6167 = scalar_lea.vmem [#allocation6], %s6166
        $region132: #{tiny_rnn_lm_forward.1} parent=127 // pred_fallthru
          _
      $region128: #{tiny_rnn_lm_forward.1} parent=5 // pred_fallthru
        _
    $region6: #{tiny_rnn_lm_forward.1} parent=1 // loop_footer
      %s16 = sadd.s32 1, %s12
    $region7: #{tiny_rnn_lm_forward.1} parent=1 // loop_footer_branch
      %11 = sbr.rel target = $region3
    $region8: #{tiny_rnn_lm_forward.1} parent=1 // loop_exit
      _

</llo_original>
